<compile_context>
chip_gen: v5e
topology: v5e:2x2
jax: 0.10.0
libtpu: 0.0.40
codegen_flags: <defaults>
</compile_context>

<pallas_src>
import functools
import math

import jax
import jax.numpy as jnp
from jax.experimental import pallas as pl
from jax.experimental.pallas import tpu as pltpu

LN_EPS = 1e-5  # nn.LayerNorm default


# ----------------------------- in-kernel math -----------------------------

def _layernorm(x, g, b):
    mu = jnp.mean(x, axis=-1, keepdims=True)
    xc = x - mu
    var = jnp.mean(xc * xc, axis=-1, keepdims=True)
    inv = jax.lax.rsqrt(var + LN_EPS)
    return xc * inv * g + b


def _softmax(s):
    m = jnp.max(s, axis=-1, keepdims=True)
    e = jnp.exp(s - m)
    return e * pl.reciprocal(jnp.sum(e, axis=-1, keepdims=True), approx=True)


def _erf(x):
    # Abramowitz & Stegun 7.1.26 (|err| < 1.5e-7) — only exp/mul/add, Mosaic-safe.
    ax = jnp.abs(x)
    t = 1.0 / (1.0 + 0.3275911 * ax)
    poly = ((((1.061405429 * t - 1.453152027) * t + 1.421413741) * t
             - 0.284496736) * t + 0.254829592) * t
    y = 1.0 - poly * jnp.exp(-ax * ax)
    return jnp.where(x >= 0.0, y, -y)


def _gelu_exact(x):
    # matches PyTorch F.gelu default (erf form) to ~1e-7
    return 0.5 * x * (1.0 + _erf(x * 0.7071067811865476))


def _mha(q, k, v, heads, dh):
    """Multi-head attention core, batched over the BB batch rows.

    q: (BB, N, heads*dh), k/v: (BB, M, heads*dh).  The softmax scale is
    already folded into the q projection weights.  Returns (BB, N, heads*dh)
    in f32 (per-head outputs concatenated along the feature axis).
    """
    outs = []
    for h in range(heads):
        sl = slice(h * dh, (h + 1) * dh)
        qh = q[:, :, sl].astype(jnp.bfloat16)
        kh = k[:, :, sl].astype(jnp.bfloat16)
        vh = v[:, :, sl].astype(jnp.bfloat16)
        sim = jnp.einsum('bnd,bmd->bnm', qh, kh,
                         preferred_element_type=jnp.float32)
        p = _softmax(sim)  # post-softmax attn (returned by torch module, then discarded)
        outs.append(jnp.einsum('bnm,bmd->bnd', p.astype(jnp.bfloat16), vh,
                               preferred_element_type=jnp.float32))
    return jnp.concatenate(outs, axis=-1)


# ------------------------------ Pallas kernel ------------------------------

def _transformer_kernel(depth, heads, dim_head,
                        x_ref, cond_ref,
                        ca_wq, ca_bq, ca_wk, ca_bk, ca_wv, ca_bv, ca_wo, ca_bo,
                        sa_lng, sa_lnb, sa_wq, sa_wk, sa_wv, sa_wout,
                        ff_lng, ff_lnb, ff_w1, ff_b1, ff_w2, ff_b2,
                        fin_lng, fin_lnb, fin_w, fin_b,
                        logits_ref):
    bb, n, dim = x_ref.shape
    _, n_cond, d_cross = cond_ref.shape
    inner = heads * dim_head
    dh_cross = dim // heads
    dim_out = logits_ref.shape[-1]

    # Flatten tokens of the whole batch block -> big-M matmuls everywhere.
    x = x_ref[...].reshape(bb * n, dim)                      # (BB*N, DIM) f32
    cond_bf = cond_ref[...].reshape(bb * n_cond, d_cross).astype(jnp.bfloat16)

    for l in range(depth):
        # ------------- cross attention (x attends to condition) -------------
        # scale 1/sqrt(dim//heads) folded into ca_wq / ca_bq.
        xb = x.astype(jnp.bfloat16)
        q = jnp.dot(xb, ca_wq[l], preferred_element_type=jnp.float32) + ca_bq[l]
        k = jnp.dot(cond_bf, ca_wk[l], preferred_element_type=jnp.float32) + ca_bk[l]
        v = jnp.dot(cond_bf, ca_wv[l], preferred_element_type=jnp.float32) + ca_bv[l]
        o = _mha(q.reshape(bb, n, dim),
                 k.reshape(bb, n_cond, dim),
                 v.reshape(bb, n_cond, dim), heads, dh_cross)
        o = o.reshape(bb * n, dim).astype(jnp.bfloat16)
        x = x + jnp.dot(o, ca_wo[l], preferred_element_type=jnp.float32) + ca_bo[l]

        # --------------------------- self attention --------------------------
        # scale dim_head**-0.5 folded into sa_wq.
        xn = _layernorm(x, sa_lng[l], sa_lnb[l]).astype(jnp.bfloat16)
        q = jnp.dot(xn, sa_wq[l], preferred_element_type=jnp.float32)
        k = jnp.dot(xn, sa_wk[l], preferred_element_type=jnp.float32)
        v = jnp.dot(xn, sa_wv[l], preferred_element_type=jnp.float32)
        o = _mha(q.reshape(bb, n, inner),
                 k.reshape(bb, n, inner),
                 v.reshape(bb, n, inner), heads, dim_head)
        o = o.reshape(bb * n, inner).astype(jnp.bfloat16)
        x = x + jnp.dot(o, sa_wout[l], preferred_element_type=jnp.float32)

        # ---------------- feed-forward: LN -> Linear -> GEGLU -> Linear -------
        xn = _layernorm(x, ff_lng[l], ff_lnb[l]).astype(jnp.bfloat16)
        hcat = jnp.dot(xn, ff_w1[l], preferred_element_type=jnp.float32) + ff_b1[l]
        half = hcat.shape[-1] // 2
        geglu = (hcat[:, :half] * _gelu_exact(hcat[:, half:])).astype(jnp.bfloat16)
        x = x + jnp.dot(geglu, ff_w2[l], preferred_element_type=jnp.float32) + ff_b2[l]

    # ------------- to_logits on CLS token: LN -> ReLU -> Linear --------------
    cls = x.reshape(bb, n, dim)[:, 0, :]                     # (BB, DIM)
    y = jnp.maximum(_layernorm(cls, fin_lng[...], fin_lnb[...]), 0.0)
    out = jnp.dot(y.astype(jnp.bfloat16), fin_w[...],
                  preferred_element_type=jnp.float32) + fin_b[...]
    logits_ref[...] = out.reshape(bb, 1, dim_out)


def transformer_cross_pallas(x, condition, params, block_b=8):
    b, n, dim = x.shape
    _, n_cond, d_cross = condition.shape
    depth = params['depth']
    heads = params['heads']
    dim_head = params['dim_head']
    inner = heads * dim_head
    dim_out = params['fin_w'].shape[-1]
    cross_scale = 1.0 / math.sqrt(dim // heads)
    self_scale = dim_head ** -0.5
    bf = jnp.bfloat16

    # --- batch blocking: BB rows per grid step (pad batch if needed) ---------
    bb = max(1, min(block_b, b))
    b_pad = ((b + bb - 1) // bb) * bb
    if b_pad != b:
        x = jnp.pad(x, ((0, b_pad - b), (0, 0), (0, 0)))
        condition = jnp.pad(condition, ((0, b_pad - b), (0, 0), (0, 0)))

    # --- weight prep: fold scales, split qkv, bf16 matmul operands -----------
    sa_wqkv = params['sa_wqkv']
    weights = [
        (params['ca_wq'] * cross_scale).astype(bf), params['ca_bq'] * cross_scale,
        params['ca_wk'].astype(bf), params['ca_bk'],
        params['ca_wv'].astype(bf), params['ca_bv'],
        params['ca_wo'].astype(bf), params['ca_bo'],
        params['sa_lng'], params['sa_lnb'],
        (sa_wqkv[:, :, 0:inner] * self_scale).astype(bf),
        sa_wqkv[:, :, inner:2 * inner].astype(bf),
        sa_wqkv[:, :, 2 * inner:3 * inner].astype(bf),
        params['sa_wout'].astype(bf),
        params['ff_lng'], params['ff_lnb'],
        params['ff_w1'].astype(bf), params['ff_b1'],
        params['ff_w2'].astype(bf), params['ff_b2'],
        params['fin_lng'], params['fin_lnb'],
        params['fin_w'].astype(bf), params['fin_b'],
    ]

    def full_spec(a):
        nd = a.ndim
        return pl.BlockSpec(a.shape, lambda i, _n=nd: (0,) * _n)

    kernel = functools.partial(_transformer_kernel, depth, heads, dim_head)

    logits = pl.pallas_call(
        kernel,
        out_shape=jax.ShapeDtypeStruct((b_pad, 1, dim_out), jnp.float32),
        grid=(b_pad // bb,),
        in_specs=[pl.BlockSpec((bb, n, dim), lambda i: (i, 0, 0)),
                  pl.BlockSpec((bb, n_cond, d_cross), lambda i: (i, 0, 0))]
                 + [full_spec(w) for w in weights],
        out_specs=pl.BlockSpec((bb, 1, dim_out), lambda i: (i, 0, 0)),
        compiler_params=pltpu.CompilerParams(dimension_semantics=("parallel",)),
    )(x, condition, *weights)
    return logits[:b]


# ------------------------------- params / glue ------------------------------

def init_params(key, *, categories, num_continuous, dim, depth, heads, dim_head,
                dim_out, num_special_tokens, dim_cross):
    keys = iter(jax.random.split(key, 64))

    def nrm(shape, scale=1.0):
        return scale * jax.random.normal(next(keys), shape, jnp.float32)

    total_tokens = sum(categories) + num_special_tokens
    inner = heads * dim_head
    # offsets = cumsum(pad(categories, front=num_special_tokens))[:-1]
    cat_offset = jnp.cumsum(
        jnp.array((num_special_tokens,) + tuple(categories[:-1]), jnp.int32))

    p = {
        'depth': depth, 'heads': heads, 'dim_head': dim_head,
        'categories_offset': cat_offset,
        'cat_embed': nrm((total_tokens, dim)),
        'num_w': nrm((num_continuous, dim)),
        'num_b': nrm((num_continuous, dim)),
        'cls_token': nrm((1, 1, dim)),
        # cross attention (q from x, k/v from condition)
        'ca_wq': nrm((depth, dim, dim), 1.0 / math.sqrt(dim)),
        'ca_bq': nrm((depth, 1, dim), 0.02),
        'ca_wk': nrm((depth, dim_cross, dim), 1.0 / math.sqrt(dim_cross)),
        'ca_bk': nrm((depth, 1, dim), 0.02),
        'ca_wv': nrm((depth, dim_cross, dim), 1.0 / math.sqrt(dim_cross)),
        'ca_bv': nrm((depth, 1, dim), 0.02),
        'ca_wo': nrm((depth, dim, dim), 1.0 / math.sqrt(dim)),
        'ca_bo': nrm((depth, 1, dim), 0.02),
        # self attention
        'sa_lng': jnp.ones((depth, 1, dim), jnp.float32),
        'sa_lnb': jnp.zeros((depth, 1, dim), jnp.float32),
        'sa_wqkv': nrm((depth, dim, 3 * inner), 1.0 / math.sqrt(dim)),
        'sa_wout': nrm((depth, inner, dim), 1.0 / math.sqrt(inner)),
        # feed-forward (mult=4, GEGLU doubles hidden)
        'ff_lng': jnp.ones((depth, 1, dim), jnp.float32),
        'ff_lnb': jnp.zeros((depth, 1, dim), jnp.float32),
        'ff_w1': nrm((depth, dim, dim * 8), 1.0 / math.sqrt(dim)),
        'ff_b1': nrm((depth, 1, dim * 8), 0.02),
        'ff_w2': nrm((depth, dim * 4, dim), 1.0 / math.sqrt(dim * 4)),
        'ff_b2': nrm((depth, 1, dim), 0.02),
        # to_logits head
        'fin_lng': jnp.ones((1, dim), jnp.float32),
        'fin_lnb': jnp.zeros((1, dim), jnp.float32),
        'fin_w': nrm((dim, dim_out), 1.0 / math.sqrt(dim)),
        'fin_b': nrm((1, dim_out), 0.02),
    }
    return p


def ft_transformer_cross_forward(params, x_categ, x_numer, condition):
    dim = params['cat_embed'].shape[-1]
    b = x_categ.shape[0]
    # categorical embedding (gather) + numerical embedder — plain-JAX glue
    xc = x_categ + params['categories_offset']
    x_cat = params['cat_embed'][xc]                                   # (b, n_cat, dim)
    x_num = x_numer[:, :, None] * params['num_w'] + params['num_b']   # (b, n_num, dim)
    cls = jnp.broadcast_to(params['cls_token'], (b, 1, dim))
    x = jnp.concatenate([cls, x_cat, x_num], axis=1).astype(jnp.float32)
    logits = transformer_cross_pallas(x, condition.astype(jnp.float32), params)
    return logits.reshape(b, -1)                                      # (b, dim_out)


# ------------------------------------ main ----------------------------------

if __name__ == "__main__":
    categories = (3, 5, 4)
    num_continuous = 4
    dim = 32
    depth = 2
    heads = 4
    dim_head = 16
    dim_out = 1
    num_special_tokens = 2
    dim_cross = 16
    n_cond = 6
    batch = 2

    key = jax.random.PRNGKey(0)
    k_par, k_cat, k_num, k_cond = jax.random.split(key, 4)

    params = init_params(k_par, categories=categories, num_continuous=num_continuous,
                         dim=dim, depth=depth, heads=heads, dim_head=dim_head,
                         dim_out=dim_out, num_special_tokens=num_special_tokens,
                         dim_cross=dim_cross)

    x_categ = jnp.stack(
        [jax.random.randint(jax.random.fold_in(k_cat, i), (batch,), 0, c)
         for i, c in enumerate(categories)], axis=1)                  # (batch, 3) int32
    x_numer = jax.random.normal(k_num, (batch, num_continuous), jnp.float32)
    condition = jax.random.normal(k_cond, (batch, n_cond, dim_cross), jnp.float32)

    logits = ft_transformer_cross_forward(params, x_categ, x_numer, condition)
    jax.block_until_ready(logits)
    assert logits.shape == (batch, dim_out)
    print("KERNEL_OK")
</pallas_src>

<mosaic_0001>
module attributes {stable_mosaic.version = 11 : i64} {
  func.func @_transformer_kernel(%arg0: i32, %arg1: memref<2x8x32xf32, #tpu.memory_space<vmem>>, %arg2: memref<2x6x16xf32, #tpu.memory_space<vmem>>, %arg3: memref<2x32x32xbf16, #tpu.memory_space<vmem>>, %arg4: memref<2x1x32xf32, #tpu.memory_space<vmem>>, %arg5: memref<2x16x32xbf16, #tpu.memory_space<vmem>>, %arg6: memref<2x1x32xf32, #tpu.memory_space<vmem>>, %arg7: memref<2x16x32xbf16, #tpu.memory_space<vmem>>, %arg8: memref<2x1x32xf32, #tpu.memory_space<vmem>>, %arg9: memref<2x32x32xbf16, #tpu.memory_space<vmem>>, %arg10: memref<2x1x32xf32, #tpu.memory_space<vmem>>, %arg11: memref<2x1x32xf32, #tpu.memory_space<vmem>>, %arg12: memref<2x1x32xf32, #tpu.memory_space<vmem>>, %arg13: memref<2x32x64xbf16, #tpu.memory_space<vmem>>, %arg14: memref<2x32x64xbf16, #tpu.memory_space<vmem>>, %arg15: memref<2x32x64xbf16, #tpu.memory_space<vmem>>, %arg16: memref<2x64x32xbf16, #tpu.memory_space<vmem>>, %arg17: memref<2x1x32xf32, #tpu.memory_space<vmem>>, %arg18: memref<2x1x32xf32, #tpu.memory_space<vmem>>, %arg19: memref<2x32x256xbf16, #tpu.memory_space<vmem>>, %arg20: memref<2x1x256xf32, #tpu.memory_space<vmem>>, %arg21: memref<2x128x32xbf16, #tpu.memory_space<vmem>>, %arg22: memref<2x1x32xf32, #tpu.memory_space<vmem>>, %arg23: memref<1x32xf32, #tpu.memory_space<vmem>>, %arg24: memref<1x32xf32, #tpu.memory_space<vmem>>, %arg25: memref<32x1xbf16, #tpu.memory_space<vmem>>, %arg26: memref<1x1xf32, #tpu.memory_space<vmem>>, %arg27: memref<2x1x1xf32, #tpu.memory_space<vmem>>) attributes {dimension_semantics = [#tpu.dimension_semantics<parallel>], iteration_bounds = array<i64: 1>, scalar_prefetch = 0 : i64, scratch_operands = 0 : i64, tpu.core_type = #tpu.core_type<tc>, window_params = [{transform_indices = @transform_0, window_bounds = array<i64: 2, 8, 32>}, {transform_indices = @transform_1, window_bounds = array<i64: 2, 6, 16>}, {pipeline_mode = #tpu.pipeline_mode<synchronous>, transform_indices = @transform_2, window_bounds = array<i64: 2, 32, 32>}, {pipeline_mode = #tpu.pipeline_mode<synchronous>, transform_indices = @transform_3, window_bounds = array<i64: 2, 1, 32>}, {pipeline_mode = #tpu.pipeline_mode<synchronous>, transform_indices = @transform_4, window_bounds = array<i64: 2, 16, 32>}, {pipeline_mode = #tpu.pipeline_mode<synchronous>, transform_indices = @transform_5, window_bounds = array<i64: 2, 1, 32>}, {pipeline_mode = #tpu.pipeline_mode<synchronous>, transform_indices = @transform_6, window_bounds = array<i64: 2, 16, 32>}, {pipeline_mode = #tpu.pipeline_mode<synchronous>, transform_indices = @transform_7, window_bounds = array<i64: 2, 1, 32>}, {pipeline_mode = #tpu.pipeline_mode<synchronous>, transform_indices = @transform_8, window_bounds = array<i64: 2, 32, 32>}, {pipeline_mode = #tpu.pipeline_mode<synchronous>, transform_indices = @transform_9, window_bounds = array<i64: 2, 1, 32>}, {pipeline_mode = #tpu.pipeline_mode<synchronous>, transform_indices = @transform_10, window_bounds = array<i64: 2, 1, 32>}, {pipeline_mode = #tpu.pipeline_mode<synchronous>, transform_indices = @transform_11, window_bounds = array<i64: 2, 1, 32>}, {pipeline_mode = #tpu.pipeline_mode<synchronous>, transform_indices = @transform_12, window_bounds = array<i64: 2, 32, 64>}, {pipeline_mode = #tpu.pipeline_mode<synchronous>, transform_indices = @transform_13, window_bounds = array<i64: 2, 32, 64>}, {pipeline_mode = #tpu.pipeline_mode<synchronous>, transform_indices = @transform_14, window_bounds = array<i64: 2, 32, 64>}, {pipeline_mode = #tpu.pipeline_mode<synchronous>, transform_indices = @transform_15, window_bounds = array<i64: 2, 64, 32>}, {pipeline_mode = #tpu.pipeline_mode<synchronous>, transform_indices = @transform_16, window_bounds = array<i64: 2, 1, 32>}, {pipeline_mode = #tpu.pipeline_mode<synchronous>, transform_indices = @transform_17, window_bounds = array<i64: 2, 1, 32>}, {pipeline_mode = #tpu.pipeline_mode<synchronous>, transform_indices = @transform_18, window_bounds = array<i64: 2, 32, 256>}, {pipeline_mode = #tpu.pipeline_mode<synchronous>, transform_indices = @transform_19, window_bounds = array<i64: 2, 1, 256>}, {pipeline_mode = #tpu.pipeline_mode<synchronous>, transform_indices = @transform_20, window_bounds = array<i64: 2, 128, 32>}, {pipeline_mode = #tpu.pipeline_mode<synchronous>, transform_indices = @transform_21, window_bounds = array<i64: 2, 1, 32>}, {pipeline_mode = #tpu.pipeline_mode<synchronous>, transform_indices = @transform_22, window_bounds = array<i64: 1, 32>}, {pipeline_mode = #tpu.pipeline_mode<synchronous>, transform_indices = @transform_23, window_bounds = array<i64: 1, 32>}, {pipeline_mode = #tpu.pipeline_mode<synchronous>, transform_indices = @transform_24, window_bounds = array<i64: 32, 1>}, {pipeline_mode = #tpu.pipeline_mode<synchronous>, transform_indices = @transform_25, window_bounds = array<i64: 1, 1>}, {transform_indices = @transform_26, window_bounds = array<i64: 2, 1, 1>}]} {
    %c0 = arith.constant 0 : index
    %c0_0 = arith.constant 0 : index
    %c0_1 = arith.constant 0 : index
    %0 = vector.load %arg1[%c0, %c0_0, %c0_1] : memref<2x8x32xf32, #tpu.memory_space<vmem>>, vector<2x8x32xf32>
    %1 = vector.shape_cast %0 : vector<2x8x32xf32> to vector<16x32xf32>
    %c0_2 = arith.constant 0 : index
    %c0_3 = arith.constant 0 : index
    %c0_4 = arith.constant 0 : index
    %2 = vector.load %arg2[%c0_2, %c0_3, %c0_4] : memref<2x6x16xf32, #tpu.memory_space<vmem>>, vector<2x6x16xf32>
    %3 = vector.shape_cast %2 : vector<2x6x16xf32> to vector<12x16xf32>
    %4 = arith.truncf %3 : vector<12x16xf32> to vector<12x16xbf16>
    %5 = arith.truncf %1 : vector<16x32xf32> to vector<16x32xbf16>
    %c0_5 = arith.constant 0 : index
    %c0_6 = arith.constant 0 : index
    %c0_7 = arith.constant 0 : index
    %6 = vector.load %arg3[%c0_5, %c0_6, %c0_7] : memref<2x32x32xbf16, #tpu.memory_space<vmem>>, vector<1x32x32xbf16>
    %7 = vector.shape_cast %6 : vector<1x32x32xbf16> to vector<32x32xbf16>
    %cst = arith.constant dense<0.000000e+00> : vector<16x32xf32>
    %8 = tpu.matmul %5, %7, %cst {dimension_numbers = #tpu.dot_dimension_numbers<[1], [0], [0], [1], [0, 0, 1, 1], [], []>} : vector<16x32xbf16>, vector<32x32xbf16>, vector<16x32xf32> -> vector<16x32xf32>
    %c0_8 = arith.constant 0 : index
    %c0_9 = arith.constant 0 : index
    %c0_10 = arith.constant 0 : index
    %9 = vector.load %arg4[%c0_8, %c0_9, %c0_10] : memref<2x1x32xf32, #tpu.memory_space<vmem>>, vector<1x1x32xf32>
    %10 = vector.shape_cast %9 : vector<1x1x32xf32> to vector<1x32xf32>
    %11 = vector.broadcast %10 : vector<1x32xf32> to vector<16x32xf32>
    %12 = arith.addf %8, %11 : vector<16x32xf32>
    %c0_11 = arith.constant 0 : index
    %c0_12 = arith.constant 0 : index
    %c0_13 = arith.constant 0 : index
    %13 = vector.load %arg5[%c0_11, %c0_12, %c0_13] : memref<2x16x32xbf16, #tpu.memory_space<vmem>>, vector<1x16x32xbf16>
    %14 = vector.shape_cast %13 : vector<1x16x32xbf16> to vector<16x32xbf16>
    %cst_14 = arith.constant dense<0.000000e+00> : vector<12x32xf32>
    %15 = tpu.matmul %4, %14, %cst_14 {dimension_numbers = #tpu.dot_dimension_numbers<[1], [0], [0], [1], [0, 0, 1, 1], [], []>} : vector<12x16xbf16>, vector<16x32xbf16>, vector<12x32xf32> -> vector<12x32xf32>
    %c0_15 = arith.constant 0 : index
    %c0_16 = arith.constant 0 : index
    %c0_17 = arith.constant 0 : index
    %16 = vector.load %arg6[%c0_15, %c0_16, %c0_17] : memref<2x1x32xf32, #tpu.memory_space<vmem>>, vector<1x1x32xf32>
    %17 = vector.shape_cast %16 : vector<1x1x32xf32> to vector<1x32xf32>
    %18 = vector.broadcast %17 : vector<1x32xf32> to vector<12x32xf32>
    %19 = arith.addf %15, %18 : vector<12x32xf32>
    %c0_18 = arith.constant 0 : index
    %c0_19 = arith.constant 0 : index
    %c0_20 = arith.constant 0 : index
    %20 = vector.load %arg7[%c0_18, %c0_19, %c0_20] : memref<2x16x32xbf16, #tpu.memory_space<vmem>>, vector<1x16x32xbf16>
    %21 = vector.shape_cast %20 : vector<1x16x32xbf16> to vector<16x32xbf16>
    %cst_21 = arith.constant dense<0.000000e+00> : vector<12x32xf32>
    %22 = tpu.matmul %4, %21, %cst_21 {dimension_numbers = #tpu.dot_dimension_numbers<[1], [0], [0], [1], [0, 0, 1, 1], [], []>} : vector<12x16xbf16>, vector<16x32xbf16>, vector<12x32xf32> -> vector<12x32xf32>
    %c0_22 = arith.constant 0 : index
    %c0_23 = arith.constant 0 : index
    %c0_24 = arith.constant 0 : index
    %23 = vector.load %arg8[%c0_22, %c0_23, %c0_24] : memref<2x1x32xf32, #tpu.memory_space<vmem>>, vector<1x1x32xf32>
    %24 = vector.shape_cast %23 : vector<1x1x32xf32> to vector<1x32xf32>
    %25 = vector.broadcast %24 : vector<1x32xf32> to vector<12x32xf32>
    %26 = arith.addf %22, %25 : vector<12x32xf32>
    %27 = vector.shape_cast %12 : vector<16x32xf32> to vector<2x8x32xf32>
    %28 = vector.shape_cast %19 : vector<12x32xf32> to vector<2x6x32xf32>
    %29 = vector.shape_cast %26 : vector<12x32xf32> to vector<2x6x32xf32>
    %30 = vector.extract_strided_slice %27 {offsets = [0, 0, 0], sizes = [2, 8, 8], strides = [1, 1, 1]} : vector<2x8x32xf32> to vector<2x8x8xf32>
    %31 = arith.truncf %30 : vector<2x8x8xf32> to vector<2x8x8xbf16>
    %32 = vector.extract_strided_slice %28 {offsets = [0, 0, 0], sizes = [2, 6, 8], strides = [1, 1, 1]} : vector<2x6x32xf32> to vector<2x6x8xf32>
    %33 = arith.truncf %32 : vector<2x6x8xf32> to vector<2x6x8xbf16>
    %34 = vector.extract_strided_slice %29 {offsets = [0, 0, 0], sizes = [2, 6, 8], strides = [1, 1, 1]} : vector<2x6x32xf32> to vector<2x6x8xf32>
    %35 = arith.truncf %34 : vector<2x6x8xf32> to vector<2x6x8xbf16>
    "tpu.trace_start"() <{level = 10 : i32, message = "bnd,bmd->bnm"}> : () -> ()
    %cst_25 = arith.constant dense<0.000000e+00> : vector<2x8x6xf32>
    %36 = tpu.matmul %31, %33, %cst_25 {dimension_numbers = #tpu.dot_dimension_numbers<[2], [2], [1], [1], [0, 0, 0, 1, 1, 1], [0], [0]>} : vector<2x8x8xbf16>, vector<2x6x8xbf16>, vector<2x8x6xf32> -> vector<2x8x6xf32>
    "tpu.trace_stop"() : () -> ()
    %cst_26 = arith.constant dense<0xFF800000> : vector<2x8xf32>
    %37 = vector.multi_reduction <maximumf>, %36, %cst_26 [2] : vector<2x8x6xf32> to vector<2x8xf32>
    %38 = vector.shape_cast %37 : vector<2x8xf32> to vector<2x8x1xf32>
    %39 = vector.broadcast %38 : vector<2x8x1xf32> to vector<2x8x6xf32>
    %40 = arith.subf %36, %39 : vector<2x8x6xf32>
    %41 = math.exp %40 : vector<2x8x6xf32>
    %cst_27 = arith.constant dense<0.000000e+00> : vector<2x8xf32>
    %42 = vector.multi_reduction <add>, %41, %cst_27 [2] : vector<2x8x6xf32> to vector<2x8xf32>
    %43 = vector.shape_cast %42 : vector<2x8xf32> to vector<2x8x1xf32>
    %44 = tpu.reciprocal %43 {approx = true} : vector<2x8x1xf32> -> vector<2x8x1xf32>
    %45 = vector.broadcast %44 : vector<2x8x1xf32> to vector<2x8x6xf32>
    %46 = arith.mulf %41, %45 : vector<2x8x6xf32>
    %47 = arith.truncf %46 : vector<2x8x6xf32> to vector<2x8x6xbf16>
    "tpu.trace_start"() <{level = 10 : i32, message = "bnm,bmd->bnd"}> : () -> ()
    %cst_28 = arith.constant dense<0.000000e+00> : vector<2x8x8xf32>
    %48 = tpu.matmul %47, %35, %cst_28 {dimension_numbers = #tpu.dot_dimension_numbers<[2], [1], [1], [2], [0, 0, 0, 1, 1, 2], [0], [0]>} : vector<2x8x6xbf16>, vector<2x6x8xbf16>, vector<2x8x8xf32> -> vector<2x8x8xf32>
    "tpu.trace_stop"() : () -> ()
    %49 = vector.extract_strided_slice %27 {offsets = [0, 0, 8], sizes = [2, 8, 8], strides = [1, 1, 1]} : vector<2x8x32xf32> to vector<2x8x8xf32>
    %50 = arith.truncf %49 : vector<2x8x8xf32> to vector<2x8x8xbf16>
    %51 = vector.extract_strided_slice %28 {offsets = [0, 0, 8], sizes = [2, 6, 8], strides = [1, 1, 1]} : vector<2x6x32xf32> to vector<2x6x8xf32>
    %52 = arith.truncf %51 : vector<2x6x8xf32> to vector<2x6x8xbf16>
    %53 = vector.extract_strided_slice %29 {offsets = [0, 0, 8], sizes = [2, 6, 8], strides = [1, 1, 1]} : vector<2x6x32xf32> to vector<2x6x8xf32>
    %54 = arith.truncf %53 : vector<2x6x8xf32> to vector<2x6x8xbf16>
    "tpu.trace_start"() <{level = 10 : i32, message = "bnd,bmd->bnm"}> : () -> ()
    %cst_29 = arith.constant dense<0.000000e+00> : vector<2x8x6xf32>
    %55 = tpu.matmul %50, %52, %cst_29 {dimension_numbers = #tpu.dot_dimension_numbers<[2], [2], [1], [1], [0, 0, 0, 1, 1, 1], [0], [0]>} : vector<2x8x8xbf16>, vector<2x6x8xbf16>, vector<2x8x6xf32> -> vector<2x8x6xf32>
    "tpu.trace_stop"() : () -> ()
    %cst_30 = arith.constant dense<0xFF800000> : vector<2x8xf32>
    %56 = vector.multi_reduction <maximumf>, %55, %cst_30 [2] : vector<2x8x6xf32> to vector<2x8xf32>
    %57 = vector.shape_cast %56 : vector<2x8xf32> to vector<2x8x1xf32>
    %58 = vector.broadcast %57 : vector<2x8x1xf32> to vector<2x8x6xf32>
    %59 = arith.subf %55, %58 : vector<2x8x6xf32>
    %60 = math.exp %59 : vector<2x8x6xf32>
    %cst_31 = arith.constant dense<0.000000e+00> : vector<2x8xf32>
    %61 = vector.multi_reduction <add>, %60, %cst_31 [2] : vector<2x8x6xf32> to vector<2x8xf32>
    %62 = vector.shape_cast %61 : vector<2x8xf32> to vector<2x8x1xf32>
    %63 = tpu.reciprocal %62 {approx = true} : vector<2x8x1xf32> -> vector<2x8x1xf32>
    %64 = vector.broadcast %63 : vector<2x8x1xf32> to vector<2x8x6xf32>
    %65 = arith.mulf %60, %64 : vector<2x8x6xf32>
    %66 = arith.truncf %65 : vector<2x8x6xf32> to vector<2x8x6xbf16>
    "tpu.trace_start"() <{level = 10 : i32, message = "bnm,bmd->bnd"}> : () -> ()
    %cst_32 = arith.constant dense<0.000000e+00> : vector<2x8x8xf32>
    %67 = tpu.matmul %66, %54, %cst_32 {dimension_numbers = #tpu.dot_dimension_numbers<[2], [1], [1], [2], [0, 0, 0, 1, 1, 2], [0], [0]>} : vector<2x8x6xbf16>, vector<2x6x8xbf16>, vector<2x8x8xf32> -> vector<2x8x8xf32>
    "tpu.trace_stop"() : () -> ()
    %68 = vector.extract_strided_slice %27 {offsets = [0, 0, 16], sizes = [2, 8, 8], strides = [1, 1, 1]} : vector<2x8x32xf32> to vector<2x8x8xf32>
    %69 = arith.truncf %68 : vector<2x8x8xf32> to vector<2x8x8xbf16>
    %70 = vector.extract_strided_slice %28 {offsets = [0, 0, 16], sizes = [2, 6, 8], strides = [1, 1, 1]} : vector<2x6x32xf32> to vector<2x6x8xf32>
    %71 = arith.truncf %70 : vector<2x6x8xf32> to vector<2x6x8xbf16>
    %72 = vector.extract_strided_slice %29 {offsets = [0, 0, 16], sizes = [2, 6, 8], strides = [1, 1, 1]} : vector<2x6x32xf32> to vector<2x6x8xf32>
    %73 = arith.truncf %72 : vector<2x6x8xf32> to vector<2x6x8xbf16>
    "tpu.trace_start"() <{level = 10 : i32, message = "bnd,bmd->bnm"}> : () -> ()
    %cst_33 = arith.constant dense<0.000000e+00> : vector<2x8x6xf32>
    %74 = tpu.matmul %69, %71, %cst_33 {dimension_numbers = #tpu.dot_dimension_numbers<[2], [2], [1], [1], [0, 0, 0, 1, 1, 1], [0], [0]>} : vector<2x8x8xbf16>, vector<2x6x8xbf16>, vector<2x8x6xf32> -> vector<2x8x6xf32>
    "tpu.trace_stop"() : () -> ()
    %cst_34 = arith.constant dense<0xFF800000> : vector<2x8xf32>
    %75 = vector.multi_reduction <maximumf>, %74, %cst_34 [2] : vector<2x8x6xf32> to vector<2x8xf32>
    %76 = vector.shape_cast %75 : vector<2x8xf32> to vector<2x8x1xf32>
    %77 = vector.broadcast %76 : vector<2x8x1xf32> to vector<2x8x6xf32>
    %78 = arith.subf %74, %77 : vector<2x8x6xf32>
    %79 = math.exp %78 : vector<2x8x6xf32>
    %cst_35 = arith.constant dense<0.000000e+00> : vector<2x8xf32>
    %80 = vector.multi_reduction <add>, %79, %cst_35 [2] : vector<2x8x6xf32> to vector<2x8xf32>
    %81 = vector.shape_cast %80 : vector<2x8xf32> to vector<2x8x1xf32>
    %82 = tpu.reciprocal %81 {approx = true} : vector<2x8x1xf32> -> vector<2x8x1xf32>
    %83 = vector.broadcast %82 : vector<2x8x1xf32> to vector<2x8x6xf32>
    %84 = arith.mulf %79, %83 : vector<2x8x6xf32>
    %85 = arith.truncf %84 : vector<2x8x6xf32> to vector<2x8x6xbf16>
    "tpu.trace_start"() <{level = 10 : i32, message = "bnm,bmd->bnd"}> : () -> ()
    %cst_36 = arith.constant dense<0.000000e+00> : vector<2x8x8xf32>
    %86 = tpu.matmul %85, %73, %cst_36 {dimension_numbers = #tpu.dot_dimension_numbers<[2], [1], [1], [2], [0, 0, 0, 1, 1, 2], [0], [0]>} : vector<2x8x6xbf16>, vector<2x6x8xbf16>, vector<2x8x8xf32> -> vector<2x8x8xf32>
    "tpu.trace_stop"() : () -> ()
    %87 = vector.extract_strided_slice %27 {offsets = [0, 0, 24], sizes = [2, 8, 8], strides = [1, 1, 1]} : vector<2x8x32xf32> to vector<2x8x8xf32>
    %88 = arith.truncf %87 : vector<2x8x8xf32> to vector<2x8x8xbf16>
    %89 = vector.extract_strided_slice %28 {offsets = [0, 0, 24], sizes = [2, 6, 8], strides = [1, 1, 1]} : vector<2x6x32xf32> to vector<2x6x8xf32>
    %90 = arith.truncf %89 : vector<2x6x8xf32> to vector<2x6x8xbf16>
    %91 = vector.extract_strided_slice %29 {offsets = [0, 0, 24], sizes = [2, 6, 8], strides = [1, 1, 1]} : vector<2x6x32xf32> to vector<2x6x8xf32>
    %92 = arith.truncf %91 : vector<2x6x8xf32> to vector<2x6x8xbf16>
    "tpu.trace_start"() <{level = 10 : i32, message = "bnd,bmd->bnm"}> : () -> ()
    %cst_37 = arith.constant dense<0.000000e+00> : vector<2x8x6xf32>
    %93 = tpu.matmul %88, %90, %cst_37 {dimension_numbers = #tpu.dot_dimension_numbers<[2], [2], [1], [1], [0, 0, 0, 1, 1, 1], [0], [0]>} : vector<2x8x8xbf16>, vector<2x6x8xbf16>, vector<2x8x6xf32> -> vector<2x8x6xf32>
    "tpu.trace_stop"() : () -> ()
    %cst_38 = arith.constant dense<0xFF800000> : vector<2x8xf32>
    %94 = vector.multi_reduction <maximumf>, %93, %cst_38 [2] : vector<2x8x6xf32> to vector<2x8xf32>
    %95 = vector.shape_cast %94 : vector<2x8xf32> to vector<2x8x1xf32>
    %96 = vector.broadcast %95 : vector<2x8x1xf32> to vector<2x8x6xf32>
    %97 = arith.subf %93, %96 : vector<2x8x6xf32>
    %98 = math.exp %97 : vector<2x8x6xf32>
    %cst_39 = arith.constant dense<0.000000e+00> : vector<2x8xf32>
    %99 = vector.multi_reduction <add>, %98, %cst_39 [2] : vector<2x8x6xf32> to vector<2x8xf32>
    %100 = vector.shape_cast %99 : vector<2x8xf32> to vector<2x8x1xf32>
    %101 = tpu.reciprocal %100 {approx = true} : vector<2x8x1xf32> -> vector<2x8x1xf32>
    %102 = vector.broadcast %101 : vector<2x8x1xf32> to vector<2x8x6xf32>
    %103 = arith.mulf %98, %102 : vector<2x8x6xf32>
    %104 = arith.truncf %103 : vector<2x8x6xf32> to vector<2x8x6xbf16>
    "tpu.trace_start"() <{level = 10 : i32, message = "bnm,bmd->bnd"}> : () -> ()
    %cst_40 = arith.constant dense<0.000000e+00> : vector<2x8x8xf32>
    %105 = tpu.matmul %104, %92, %cst_40 {dimension_numbers = #tpu.dot_dimension_numbers<[2], [1], [1], [2], [0, 0, 0, 1, 1, 2], [0], [0]>} : vector<2x8x6xbf16>, vector<2x6x8xbf16>, vector<2x8x8xf32> -> vector<2x8x8xf32>
    "tpu.trace_stop"() : () -> ()
    %106 = tpu.concatenate %48, %67, %86, %105 in 2 : vector<2x8x8xf32>, vector<2x8x8xf32>, vector<2x8x8xf32>, vector<2x8x8xf32> -> vector<2x8x32xf32>
    %107 = vector.shape_cast %106 : vector<2x8x32xf32> to vector<16x32xf32>
    %108 = arith.truncf %107 : vector<16x32xf32> to vector<16x32xbf16>
    %c0_41 = arith.constant 0 : index
    %c0_42 = arith.constant 0 : index
    %c0_43 = arith.constant 0 : index
    %109 = vector.load %arg9[%c0_41, %c0_42, %c0_43] : memref<2x32x32xbf16, #tpu.memory_space<vmem>>, vector<1x32x32xbf16>
    %110 = vector.shape_cast %109 : vector<1x32x32xbf16> to vector<32x32xbf16>
    %cst_44 = arith.constant dense<0.000000e+00> : vector<16x32xf32>
    %111 = tpu.matmul %108, %110, %cst_44 {dimension_numbers = #tpu.dot_dimension_numbers<[1], [0], [0], [1], [0, 0, 1, 1], [], []>} : vector<16x32xbf16>, vector<32x32xbf16>, vector<16x32xf32> -> vector<16x32xf32>
    %112 = arith.addf %1, %111 : vector<16x32xf32>
    %c0_45 = arith.constant 0 : index
    %c0_46 = arith.constant 0 : index
    %c0_47 = arith.constant 0 : index
    %113 = vector.load %arg10[%c0_45, %c0_46, %c0_47] : memref<2x1x32xf32, #tpu.memory_space<vmem>>, vector<1x1x32xf32>
    %114 = vector.shape_cast %113 : vector<1x1x32xf32> to vector<1x32xf32>
    %115 = vector.broadcast %114 : vector<1x32xf32> to vector<16x32xf32>
    %116 = arith.addf %112, %115 : vector<16x32xf32>
    %c0_48 = arith.constant 0 : index
    %c0_49 = arith.constant 0 : index
    %c0_50 = arith.constant 0 : index
    %117 = vector.load %arg11[%c0_48, %c0_49, %c0_50] : memref<2x1x32xf32, #tpu.memory_space<vmem>>, vector<1x1x32xf32>
    %118 = vector.shape_cast %117 : vector<1x1x32xf32> to vector<1x32xf32>
    %c0_51 = arith.constant 0 : index
    %c0_52 = arith.constant 0 : index
    %c0_53 = arith.constant 0 : index
    %119 = vector.load %arg12[%c0_51, %c0_52, %c0_53] : memref<2x1x32xf32, #tpu.memory_space<vmem>>, vector<1x1x32xf32>
    %120 = vector.shape_cast %119 : vector<1x1x32xf32> to vector<1x32xf32>
    %cst_54 = arith.constant dense<0.000000e+00> : vector<16xf32>
    %121 = vector.multi_reduction <add>, %116, %cst_54 [1] : vector<16x32xf32> to vector<16xf32>
    %122 = vector.shape_cast %121 : vector<16xf32> to vector<16x1xf32>
    %cst_55 = arith.constant 3.200000e+01 : f32
    %123 = vector.broadcast %cst_55 : f32 to vector<16x1xf32>
    %124 = arith.divf %122, %123 : vector<16x1xf32>
    %125 = vector.broadcast %124 : vector<16x1xf32> to vector<16x32xf32>
    %126 = arith.subf %116, %125 : vector<16x32xf32>
    %127 = arith.mulf %126, %126 : vector<16x32xf32>
    %cst_56 = arith.constant dense<0.000000e+00> : vector<16xf32>
    %128 = vector.multi_reduction <add>, %127, %cst_56 [1] : vector<16x32xf32> to vector<16xf32>
    %129 = vector.shape_cast %128 : vector<16xf32> to vector<16x1xf32>
    %cst_57 = arith.constant 3.200000e+01 : f32
    %130 = vector.broadcast %cst_57 : f32 to vector<16x1xf32>
    %131 = arith.divf %129, %130 : vector<16x1xf32>
    %cst_58 = arith.constant 9.99999974E-6 : f32
    %132 = vector.broadcast %cst_58 : f32 to vector<16x1xf32>
    %133 = arith.addf %131, %132 : vector<16x1xf32>
    %134 = math.rsqrt %133 : vector<16x1xf32>
    %135 = vector.broadcast %134 : vector<16x1xf32> to vector<16x32xf32>
    %136 = arith.mulf %126, %135 : vector<16x32xf32>
    %137 = vector.broadcast %118 : vector<1x32xf32> to vector<16x32xf32>
    %138 = arith.mulf %136, %137 : vector<16x32xf32>
    %139 = vector.broadcast %120 : vector<1x32xf32> to vector<16x32xf32>
    %140 = arith.addf %138, %139 : vector<16x32xf32>
    %141 = arith.truncf %140 : vector<16x32xf32> to vector<16x32xbf16>
    %c0_59 = arith.constant 0 : index
    %c0_60 = arith.constant 0 : index
    %c0_61 = arith.constant 0 : index
    %142 = vector.load %arg13[%c0_59, %c0_60, %c0_61] : memref<2x32x64xbf16, #tpu.memory_space<vmem>>, vector<1x32x64xbf16>
    %143 = vector.shape_cast %142 : vector<1x32x64xbf16> to vector<32x64xbf16>
    %cst_62 = arith.constant dense<0.000000e+00> : vector<16x64xf32>
    %144 = tpu.matmul %141, %143, %cst_62 {dimension_numbers = #tpu.dot_dimension_numbers<[1], [0], [0], [1], [0, 0, 1, 1], [], []>} : vector<16x32xbf16>, vector<32x64xbf16>, vector<16x64xf32> -> vector<16x64xf32>
    %c0_63 = arith.constant 0 : index
    %c0_64 = arith.constant 0 : index
    %c0_65 = arith.constant 0 : index
    %145 = vector.load %arg14[%c0_63, %c0_64, %c0_65] : memref<2x32x64xbf16, #tpu.memory_space<vmem>>, vector<1x32x64xbf16>
    %146 = vector.shape_cast %145 : vector<1x32x64xbf16> to vector<32x64xbf16>
    %cst_66 = arith.constant dense<0.000000e+00> : vector<16x64xf32>
    %147 = tpu.matmul %141, %146, %cst_66 {dimension_numbers = #tpu.dot_dimension_numbers<[1], [0], [0], [1], [0, 0, 1, 1], [], []>} : vector<16x32xbf16>, vector<32x64xbf16>, vector<16x64xf32> -> vector<16x64xf32>
    %c0_67 = arith.constant 0 : index
    %c0_68 = arith.constant 0 : index
    %c0_69 = arith.constant 0 : index
    %148 = vector.load %arg15[%c0_67, %c0_68, %c0_69] : memref<2x32x64xbf16, #tpu.memory_space<vmem>>, vector<1x32x64xbf16>
    %149 = vector.shape_cast %148 : vector<1x32x64xbf16> to vector<32x64xbf16>
    %cst_70 = arith.constant dense<0.000000e+00> : vector<16x64xf32>
    %150 = tpu.matmul %141, %149, %cst_70 {dimension_numbers = #tpu.dot_dimension_numbers<[1], [0], [0], [1], [0, 0, 1, 1], [], []>} : vector<16x32xbf16>, vector<32x64xbf16>, vector<16x64xf32> -> vector<16x64xf32>
    %151 = vector.shape_cast %144 : vector<16x64xf32> to vector<2x8x64xf32>
    %152 = vector.shape_cast %147 : vector<16x64xf32> to vector<2x8x64xf32>
    %153 = vector.shape_cast %150 : vector<16x64xf32> to vector<2x8x64xf32>
    %154 = vector.extract_strided_slice %151 {offsets = [0, 0, 0], sizes = [2, 8, 16], strides = [1, 1, 1]} : vector<2x8x64xf32> to vector<2x8x16xf32>
    %155 = arith.truncf %154 : vector<2x8x16xf32> to vector<2x8x16xbf16>
    %156 = vector.extract_strided_slice %152 {offsets = [0, 0, 0], sizes = [2, 8, 16], strides = [1, 1, 1]} : vector<2x8x64xf32> to vector<2x8x16xf32>
    %157 = arith.truncf %156 : vector<2x8x16xf32> to vector<2x8x16xbf16>
    %158 = vector.extract_strided_slice %153 {offsets = [0, 0, 0], sizes = [2, 8, 16], strides = [1, 1, 1]} : vector<2x8x64xf32> to vector<2x8x16xf32>
    %159 = arith.truncf %158 : vector<2x8x16xf32> to vector<2x8x16xbf16>
    "tpu.trace_start"() <{level = 10 : i32, message = "bnd,bmd->bnm"}> : () -> ()
    %cst_71 = arith.constant dense<0.000000e+00> : vector<2x8x8xf32>
    %160 = tpu.matmul %155, %157, %cst_71 {dimension_numbers = #tpu.dot_dimension_numbers<[2], [2], [1], [1], [0, 0, 0, 1, 1, 1], [0], [0]>} : vector<2x8x16xbf16>, vector<2x8x16xbf16>, vector<2x8x8xf32> -> vector<2x8x8xf32>
    "tpu.trace_stop"() : () -> ()
    %cst_72 = arith.constant dense<0xFF800000> : vector<2x8xf32>
    %161 = vector.multi_reduction <maximumf>, %160, %cst_72 [2] : vector<2x8x8xf32> to vector<2x8xf32>
    %162 = vector.shape_cast %161 : vector<2x8xf32> to vector<2x8x1xf32>
    %163 = vector.broadcast %162 : vector<2x8x1xf32> to vector<2x8x8xf32>
    %164 = arith.subf %160, %163 : vector<2x8x8xf32>
    %165 = math.exp %164 : vector<2x8x8xf32>
    %cst_73 = arith.constant dense<0.000000e+00> : vector<2x8xf32>
    %166 = vector.multi_reduction <add>, %165, %cst_73 [2] : vector<2x8x8xf32> to vector<2x8xf32>
    %167 = vector.shape_cast %166 : vector<2x8xf32> to vector<2x8x1xf32>
    %168 = tpu.reciprocal %167 {approx = true} : vector<2x8x1xf32> -> vector<2x8x1xf32>
    %169 = vector.broadcast %168 : vector<2x8x1xf32> to vector<2x8x8xf32>
    %170 = arith.mulf %165, %169 : vector<2x8x8xf32>
    %171 = arith.truncf %170 : vector<2x8x8xf32> to vector<2x8x8xbf16>
    "tpu.trace_start"() <{level = 10 : i32, message = "bnm,bmd->bnd"}> : () -> ()
    %cst_74 = arith.constant dense<0.000000e+00> : vector<2x8x16xf32>
    %172 = tpu.matmul %171, %159, %cst_74 {dimension_numbers = #tpu.dot_dimension_numbers<[2], [1], [1], [2], [0, 0, 0, 1, 1, 2], [0], [0]>} : vector<2x8x8xbf16>, vector<2x8x16xbf16>, vector<2x8x16xf32> -> vector<2x8x16xf32>
    "tpu.trace_stop"() : () -> ()
    %173 = vector.extract_strided_slice %151 {offsets = [0, 0, 16], sizes = [2, 8, 16], strides = [1, 1, 1]} : vector<2x8x64xf32> to vector<2x8x16xf32>
    %174 = arith.truncf %173 : vector<2x8x16xf32> to vector<2x8x16xbf16>
    %175 = vector.extract_strided_slice %152 {offsets = [0, 0, 16], sizes = [2, 8, 16], strides = [1, 1, 1]} : vector<2x8x64xf32> to vector<2x8x16xf32>
    %176 = arith.truncf %175 : vector<2x8x16xf32> to vector<2x8x16xbf16>
    %177 = vector.extract_strided_slice %153 {offsets = [0, 0, 16], sizes = [2, 8, 16], strides = [1, 1, 1]} : vector<2x8x64xf32> to vector<2x8x16xf32>
    %178 = arith.truncf %177 : vector<2x8x16xf32> to vector<2x8x16xbf16>
    "tpu.trace_start"() <{level = 10 : i32, message = "bnd,bmd->bnm"}> : () -> ()
    %cst_75 = arith.constant dense<0.000000e+00> : vector<2x8x8xf32>
    %179 = tpu.matmul %174, %176, %cst_75 {dimension_numbers = #tpu.dot_dimension_numbers<[2], [2], [1], [1], [0, 0, 0, 1, 1, 1], [0], [0]>} : vector<2x8x16xbf16>, vector<2x8x16xbf16>, vector<2x8x8xf32> -> vector<2x8x8xf32>
    "tpu.trace_stop"() : () -> ()
    %cst_76 = arith.constant dense<0xFF800000> : vector<2x8xf32>
    %180 = vector.multi_reduction <maximumf>, %179, %cst_76 [2] : vector<2x8x8xf32> to vector<2x8xf32>
    %181 = vector.shape_cast %180 : vector<2x8xf32> to vector<2x8x1xf32>
    %182 = vector.broadcast %181 : vector<2x8x1xf32> to vector<2x8x8xf32>
    %183 = arith.subf %179, %182 : vector<2x8x8xf32>
    %184 = math.exp %183 : vector<2x8x8xf32>
    %cst_77 = arith.constant dense<0.000000e+00> : vector<2x8xf32>
    %185 = vector.multi_reduction <add>, %184, %cst_77 [2] : vector<2x8x8xf32> to vector<2x8xf32>
    %186 = vector.shape_cast %185 : vector<2x8xf32> to vector<2x8x1xf32>
    %187 = tpu.reciprocal %186 {approx = true} : vector<2x8x1xf32> -> vector<2x8x1xf32>
    %188 = vector.broadcast %187 : vector<2x8x1xf32> to vector<2x8x8xf32>
    %189 = arith.mulf %184, %188 : vector<2x8x8xf32>
    %190 = arith.truncf %189 : vector<2x8x8xf32> to vector<2x8x8xbf16>
    "tpu.trace_start"() <{level = 10 : i32, message = "bnm,bmd->bnd"}> : () -> ()
    %cst_78 = arith.constant dense<0.000000e+00> : vector<2x8x16xf32>
    %191 = tpu.matmul %190, %178, %cst_78 {dimension_numbers = #tpu.dot_dimension_numbers<[2], [1], [1], [2], [0, 0, 0, 1, 1, 2], [0], [0]>} : vector<2x8x8xbf16>, vector<2x8x16xbf16>, vector<2x8x16xf32> -> vector<2x8x16xf32>
    "tpu.trace_stop"() : () -> ()
    %192 = vector.extract_strided_slice %151 {offsets = [0, 0, 32], sizes = [2, 8, 16], strides = [1, 1, 1]} : vector<2x8x64xf32> to vector<2x8x16xf32>
    %193 = arith.truncf %192 : vector<2x8x16xf32> to vector<2x8x16xbf16>
    %194 = vector.extract_strided_slice %152 {offsets = [0, 0, 32], sizes = [2, 8, 16], strides = [1, 1, 1]} : vector<2x8x64xf32> to vector<2x8x16xf32>
    %195 = arith.truncf %194 : vector<2x8x16xf32> to vector<2x8x16xbf16>
    %196 = vector.extract_strided_slice %153 {offsets = [0, 0, 32], sizes = [2, 8, 16], strides = [1, 1, 1]} : vector<2x8x64xf32> to vector<2x8x16xf32>
    %197 = arith.truncf %196 : vector<2x8x16xf32> to vector<2x8x16xbf16>
    "tpu.trace_start"() <{level = 10 : i32, message = "bnd,bmd->bnm"}> : () -> ()
    %cst_79 = arith.constant dense<0.000000e+00> : vector<2x8x8xf32>
    %198 = tpu.matmul %193, %195, %cst_79 {dimension_numbers = #tpu.dot_dimension_numbers<[2], [2], [1], [1], [0, 0, 0, 1, 1, 1], [0], [0]>} : vector<2x8x16xbf16>, vector<2x8x16xbf16>, vector<2x8x8xf32> -> vector<2x8x8xf32>
    "tpu.trace_stop"() : () -> ()
    %cst_80 = arith.constant dense<0xFF800000> : vector<2x8xf32>
    %199 = vector.multi_reduction <maximumf>, %198, %cst_80 [2] : vector<2x8x8xf32> to vector<2x8xf32>
    %200 = vector.shape_cast %199 : vector<2x8xf32> to vector<2x8x1xf32>
    %201 = vector.broadcast %200 : vector<2x8x1xf32> to vector<2x8x8xf32>
    %202 = arith.subf %198, %201 : vector<2x8x8xf32>
    %203 = math.exp %202 : vector<2x8x8xf32>
    %cst_81 = arith.constant dense<0.000000e+00> : vector<2x8xf32>
    %204 = vector.multi_reduction <add>, %203, %cst_81 [2] : vector<2x8x8xf32> to vector<2x8xf32>
    %205 = vector.shape_cast %204 : vector<2x8xf32> to vector<2x8x1xf32>
    %206 = tpu.reciprocal %205 {approx = true} : vector<2x8x1xf32> -> vector<2x8x1xf32>
    %207 = vector.broadcast %206 : vector<2x8x1xf32> to vector<2x8x8xf32>
    %208 = arith.mulf %203, %207 : vector<2x8x8xf32>
    %209 = arith.truncf %208 : vector<2x8x8xf32> to vector<2x8x8xbf16>
    "tpu.trace_start"() <{level = 10 : i32, message = "bnm,bmd->bnd"}> : () -> ()
    %cst_82 = arith.constant dense<0.000000e+00> : vector<2x8x16xf32>
    %210 = tpu.matmul %209, %197, %cst_82 {dimension_numbers = #tpu.dot_dimension_numbers<[2], [1], [1], [2], [0, 0, 0, 1, 1, 2], [0], [0]>} : vector<2x8x8xbf16>, vector<2x8x16xbf16>, vector<2x8x16xf32> -> vector<2x8x16xf32>
    "tpu.trace_stop"() : () -> ()
    %211 = vector.extract_strided_slice %151 {offsets = [0, 0, 48], sizes = [2, 8, 16], strides = [1, 1, 1]} : vector<2x8x64xf32> to vector<2x8x16xf32>
    %212 = arith.truncf %211 : vector<2x8x16xf32> to vector<2x8x16xbf16>
    %213 = vector.extract_strided_slice %152 {offsets = [0, 0, 48], sizes = [2, 8, 16], strides = [1, 1, 1]} : vector<2x8x64xf32> to vector<2x8x16xf32>
    %214 = arith.truncf %213 : vector<2x8x16xf32> to vector<2x8x16xbf16>
    %215 = vector.extract_strided_slice %153 {offsets = [0, 0, 48], sizes = [2, 8, 16], strides = [1, 1, 1]} : vector<2x8x64xf32> to vector<2x8x16xf32>
    %216 = arith.truncf %215 : vector<2x8x16xf32> to vector<2x8x16xbf16>
    "tpu.trace_start"() <{level = 10 : i32, message = "bnd,bmd->bnm"}> : () -> ()
    %cst_83 = arith.constant dense<0.000000e+00> : vector<2x8x8xf32>
    %217 = tpu.matmul %212, %214, %cst_83 {dimension_numbers = #tpu.dot_dimension_numbers<[2], [2], [1], [1], [0, 0, 0, 1, 1, 1], [0], [0]>} : vector<2x8x16xbf16>, vector<2x8x16xbf16>, vector<2x8x8xf32> -> vector<2x8x8xf32>
    "tpu.trace_stop"() : () -> ()
    %cst_84 = arith.constant dense<0xFF800000> : vector<2x8xf32>
    %218 = vector.multi_reduction <maximumf>, %217, %cst_84 [2] : vector<2x8x8xf32> to vector<2x8xf32>
    %219 = vector.shape_cast %218 : vector<2x8xf32> to vector<2x8x1xf32>
    %220 = vector.broadcast %219 : vector<2x8x1xf32> to vector<2x8x8xf32>
    %221 = arith.subf %217, %220 : vector<2x8x8xf32>
    %222 = math.exp %221 : vector<2x8x8xf32>
    %cst_85 = arith.constant dense<0.000000e+00> : vector<2x8xf32>
    %223 = vector.multi_reduction <add>, %222, %cst_85 [2] : vector<2x8x8xf32> to vector<2x8xf32>
    %224 = vector.shape_cast %223 : vector<2x8xf32> to vector<2x8x1xf32>
    %225 = tpu.reciprocal %224 {approx = true} : vector<2x8x1xf32> -> vector<2x8x1xf32>
    %226 = vector.broadcast %225 : vector<2x8x1xf32> to vector<2x8x8xf32>
    %227 = arith.mulf %222, %226 : vector<2x8x8xf32>
    %228 = arith.truncf %227 : vector<2x8x8xf32> to vector<2x8x8xbf16>
    "tpu.trace_start"() <{level = 10 : i32, message = "bnm,bmd->bnd"}> : () -> ()
    %cst_86 = arith.constant dense<0.000000e+00> : vector<2x8x16xf32>
    %229 = tpu.matmul %228, %216, %cst_86 {dimension_numbers = #tpu.dot_dimension_numbers<[2], [1], [1], [2], [0, 0, 0, 1, 1, 2], [0], [0]>} : vector<2x8x8xbf16>, vector<2x8x16xbf16>, vector<2x8x16xf32> -> vector<2x8x16xf32>
    "tpu.trace_stop"() : () -> ()
    %230 = tpu.concatenate %172, %191, %210, %229 in 2 : vector<2x8x16xf32>, vector<2x8x16xf32>, vector<2x8x16xf32>, vector<2x8x16xf32> -> vector<2x8x64xf32>
    %231 = vector.shape_cast %230 : vector<2x8x64xf32> to vector<16x64xf32>
    %232 = arith.truncf %231 : vector<16x64xf32> to vector<16x64xbf16>
    %c0_87 = arith.constant 0 : index
    %c0_88 = arith.constant 0 : index
    %c0_89 = arith.constant 0 : index
    %233 = vector.load %arg16[%c0_87, %c0_88, %c0_89] : memref<2x64x32xbf16, #tpu.memory_space<vmem>>, vector<1x64x32xbf16>
    %234 = vector.shape_cast %233 : vector<1x64x32xbf16> to vector<64x32xbf16>
    %cst_90 = arith.constant dense<0.000000e+00> : vector<16x32xf32>
    %235 = tpu.matmul %232, %234, %cst_90 {dimension_numbers = #tpu.dot_dimension_numbers<[1], [0], [0], [1], [0, 0, 1, 1], [], []>} : vector<16x64xbf16>, vector<64x32xbf16>, vector<16x32xf32> -> vector<16x32xf32>
    %236 = arith.addf %116, %235 : vector<16x32xf32>
    %c0_91 = arith.constant 0 : index
    %c0_92 = arith.constant 0 : index
    %c0_93 = arith.constant 0 : index
    %237 = vector.load %arg17[%c0_91, %c0_92, %c0_93] : memref<2x1x32xf32, #tpu.memory_space<vmem>>, vector<1x1x32xf32>
    %238 = vector.shape_cast %237 : vector<1x1x32xf32> to vector<1x32xf32>
    %c0_94 = arith.constant 0 : index
    %c0_95 = arith.constant 0 : index
    %c0_96 = arith.constant 0 : index
    %239 = vector.load %arg18[%c0_94, %c0_95, %c0_96] : memref<2x1x32xf32, #tpu.memory_space<vmem>>, vector<1x1x32xf32>
    %240 = vector.shape_cast %239 : vector<1x1x32xf32> to vector<1x32xf32>
    %cst_97 = arith.constant dense<0.000000e+00> : vector<16xf32>
    %241 = vector.multi_reduction <add>, %236, %cst_97 [1] : vector<16x32xf32> to vector<16xf32>
    %242 = vector.shape_cast %241 : vector<16xf32> to vector<16x1xf32>
    %cst_98 = arith.constant 3.200000e+01 : f32
    %243 = vector.broadcast %cst_98 : f32 to vector<16x1xf32>
    %244 = arith.divf %242, %243 : vector<16x1xf32>
    %245 = vector.broadcast %244 : vector<16x1xf32> to vector<16x32xf32>
    %246 = arith.subf %236, %245 : vector<16x32xf32>
    %247 = arith.mulf %246, %246 : vector<16x32xf32>
    %cst_99 = arith.constant dense<0.000000e+00> : vector<16xf32>
    %248 = vector.multi_reduction <add>, %247, %cst_99 [1] : vector<16x32xf32> to vector<16xf32>
    %249 = vector.shape_cast %248 : vector<16xf32> to vector<16x1xf32>
    %cst_100 = arith.constant 3.200000e+01 : f32
    %250 = vector.broadcast %cst_100 : f32 to vector<16x1xf32>
    %251 = arith.divf %249, %250 : vector<16x1xf32>
    %cst_101 = arith.constant 9.99999974E-6 : f32
    %252 = vector.broadcast %cst_101 : f32 to vector<16x1xf32>
    %253 = arith.addf %251, %252 : vector<16x1xf32>
    %254 = math.rsqrt %253 : vector<16x1xf32>
    %255 = vector.broadcast %254 : vector<16x1xf32> to vector<16x32xf32>
    %256 = arith.mulf %246, %255 : vector<16x32xf32>
    %257 = vector.broadcast %238 : vector<1x32xf32> to vector<16x32xf32>
    %258 = arith.mulf %256, %257 : vector<16x32xf32>
    %259 = vector.broadcast %240 : vector<1x32xf32> to vector<16x32xf32>
    %260 = arith.addf %258, %259 : vector<16x32xf32>
    %261 = arith.truncf %260 : vector<16x32xf32> to vector<16x32xbf16>
    %c0_102 = arith.constant 0 : index
    %c0_103 = arith.constant 0 : index
    %c0_104 = arith.constant 0 : index
    %262 = vector.load %arg19[%c0_102, %c0_103, %c0_104] : memref<2x32x256xbf16, #tpu.memory_space<vmem>>, vector<1x32x256xbf16>
    %263 = vector.shape_cast %262 : vector<1x32x256xbf16> to vector<32x256xbf16>
    %cst_105 = arith.constant dense<0.000000e+00> : vector<16x256xf32>
    %264 = tpu.matmul %261, %263, %cst_105 {dimension_numbers = #tpu.dot_dimension_numbers<[1], [0], [0], [1], [0, 0, 1, 1], [], []>} : vector<16x32xbf16>, vector<32x256xbf16>, vector<16x256xf32> -> vector<16x256xf32>
    %c0_106 = arith.constant 0 : index
    %c0_107 = arith.constant 0 : index
    %c0_108 = arith.constant 0 : index
    %265 = vector.load %arg20[%c0_106, %c0_107, %c0_108] : memref<2x1x256xf32, #tpu.memory_space<vmem>>, vector<1x1x256xf32>
    %266 = vector.shape_cast %265 : vector<1x1x256xf32> to vector<1x256xf32>
    %267 = vector.broadcast %266 : vector<1x256xf32> to vector<16x256xf32>
    %268 = arith.addf %264, %267 : vector<16x256xf32>
    %269 = vector.extract_strided_slice %268 {offsets = [0, 0], sizes = [16, 128], strides = [1, 1]} : vector<16x256xf32> to vector<16x128xf32>
    %270 = vector.extract_strided_slice %268 {offsets = [0, 128], sizes = [16, 128], strides = [1, 1]} : vector<16x256xf32> to vector<16x128xf32>
    %cst_109 = arith.constant 5.000000e-01 : f32
    %271 = vector.broadcast %cst_109 : f32 to vector<16x128xf32>
    %272 = arith.mulf %271, %270 : vector<16x128xf32>
    %cst_110 = arith.constant 0.707106769 : f32
    %273 = vector.broadcast %cst_110 : f32 to vector<16x128xf32>
    %274 = arith.mulf %270, %273 : vector<16x128xf32>
    %275 = math.absf %274 : vector<16x128xf32>
    %cst_111 = arith.constant 0.327591091 : f32
    %276 = vector.broadcast %cst_111 : f32 to vector<16x128xf32>
    %277 = arith.mulf %276, %275 : vector<16x128xf32>
    %cst_112 = arith.constant 1.000000e+00 : f32
    %278 = vector.broadcast %cst_112 : f32 to vector<16x128xf32>
    %279 = arith.addf %278, %277 : vector<16x128xf32>
    %cst_113 = arith.constant 1.000000e+00 : f32
    %280 = vector.broadcast %cst_113 : f32 to vector<16x128xf32>
    %281 = arith.divf %280, %279 : vector<16x128xf32>
    %cst_114 = arith.constant 1.06140542 : f32
    %282 = vector.broadcast %cst_114 : f32 to vector<16x128xf32>
    %283 = arith.mulf %282, %281 : vector<16x128xf32>
    %cst_115 = arith.constant 1.45315206 : f32
    %284 = vector.broadcast %cst_115 : f32 to vector<16x128xf32>
    %285 = arith.subf %283, %284 : vector<16x128xf32>
    %286 = arith.mulf %285, %281 : vector<16x128xf32>
    %cst_116 = arith.constant 1.42141378 : f32
    %287 = vector.broadcast %cst_116 : f32 to vector<16x128xf32>
    %288 = arith.addf %286, %287 : vector<16x128xf32>
    %289 = arith.mulf %288, %281 : vector<16x128xf32>
    %cst_117 = arith.constant 0.284496725 : f32
    %290 = vector.broadcast %cst_117 : f32 to vector<16x128xf32>
    %291 = arith.subf %289, %290 : vector<16x128xf32>
    %292 = arith.mulf %291, %281 : vector<16x128xf32>
    %cst_118 = arith.constant 0.254829586 : f32
    %293 = vector.broadcast %cst_118 : f32 to vector<16x128xf32>
    %294 = arith.addf %292, %293 : vector<16x128xf32>
    %295 = arith.mulf %294, %281 : vector<16x128xf32>
    %cst_119 = arith.constant 0.000000e+00 : f32
    %296 = vector.broadcast %cst_119 : f32 to vector<16x128xf32>
    %297 = arith.subf %296, %275 : vector<16x128xf32>
    %298 = arith.mulf %297, %275 : vector<16x128xf32>
    %299 = math.exp %298 : vector<16x128xf32>
    %300 = arith.mulf %295, %299 : vector<16x128xf32>
    %cst_120 = arith.constant 1.000000e+00 : f32
    %301 = vector.broadcast %cst_120 : f32 to vector<16x128xf32>
    %302 = arith.subf %301, %300 : vector<16x128xf32>
    %cst_121 = arith.constant 0.000000e+00 : f32
    %303 = vector.broadcast %cst_121 : f32 to vector<16x128xf32>
    %304 = arith.cmpf oge, %274, %303 : vector<16x128xf32>
    %cst_122 = arith.constant 0.000000e+00 : f32
    %305 = vector.broadcast %cst_122 : f32 to vector<16x128xf32>
    %306 = arith.subf %305, %302 : vector<16x128xf32>
    %307 = arith.select %304, %302, %306 : vector<16x128xi1>, vector<16x128xf32>
    %cst_123 = arith.constant 1.000000e+00 : f32
    %308 = vector.broadcast %cst_123 : f32 to vector<16x128xf32>
    %309 = arith.addf %308, %307 : vector<16x128xf32>
    %310 = arith.mulf %272, %309 : vector<16x128xf32>
    %311 = arith.mulf %269, %310 : vector<16x128xf32>
    %312 = arith.truncf %311 : vector<16x128xf32> to vector<16x128xbf16>
    %c0_124 = arith.constant 0 : index
    %c0_125 = arith.constant 0 : index
    %c0_126 = arith.constant 0 : index
    %313 = vector.load %arg21[%c0_124, %c0_125, %c0_126] : memref<2x128x32xbf16, #tpu.memory_space<vmem>>, vector<1x128x32xbf16>
    %314 = vector.shape_cast %313 : vector<1x128x32xbf16> to vector<128x32xbf16>
    %cst_127 = arith.constant dense<0.000000e+00> : vector<16x32xf32>
    %315 = tpu.matmul %312, %314, %cst_127 {dimension_numbers = #tpu.dot_dimension_numbers<[1], [0], [0], [1], [0, 0, 1, 1], [], []>} : vector<16x128xbf16>, vector<128x32xbf16>, vector<16x32xf32> -> vector<16x32xf32>
    %316 = arith.addf %236, %315 : vector<16x32xf32>
    %c0_128 = arith.constant 0 : index
    %c0_129 = arith.constant 0 : index
    %c0_130 = arith.constant 0 : index
    %317 = vector.load %arg22[%c0_128, %c0_129, %c0_130] : memref<2x1x32xf32, #tpu.memory_space<vmem>>, vector<1x1x32xf32>
    %318 = vector.shape_cast %317 : vector<1x1x32xf32> to vector<1x32xf32>
    %319 = vector.broadcast %318 : vector<1x32xf32> to vector<16x32xf32>
    %320 = arith.addf %316, %319 : vector<16x32xf32>
    %321 = arith.truncf %320 : vector<16x32xf32> to vector<16x32xbf16>
    %c1 = arith.constant 1 : index
    %c0_131 = arith.constant 0 : index
    %c0_132 = arith.constant 0 : index
    %322 = vector.load %arg3[%c1, %c0_131, %c0_132] : memref<2x32x32xbf16, #tpu.memory_space<vmem>>, vector<1x32x32xbf16>
    %323 = vector.shape_cast %322 : vector<1x32x32xbf16> to vector<32x32xbf16>
    %cst_133 = arith.constant dense<0.000000e+00> : vector<16x32xf32>
    %324 = tpu.matmul %321, %323, %cst_133 {dimension_numbers = #tpu.dot_dimension_numbers<[1], [0], [0], [1], [0, 0, 1, 1], [], []>} : vector<16x32xbf16>, vector<32x32xbf16>, vector<16x32xf32> -> vector<16x32xf32>
    %c1_134 = arith.constant 1 : index
    %c0_135 = arith.constant 0 : index
    %c0_136 = arith.constant 0 : index
    %325 = vector.load %arg4[%c1_134, %c0_135, %c0_136] : memref<2x1x32xf32, #tpu.memory_space<vmem>>, vector<1x1x32xf32>
    %326 = vector.shape_cast %325 : vector<1x1x32xf32> to vector<1x32xf32>
    %327 = vector.broadcast %326 : vector<1x32xf32> to vector<16x32xf32>
    %328 = arith.addf %324, %327 : vector<16x32xf32>
    %c1_137 = arith.constant 1 : index
    %c0_138 = arith.constant 0 : index
    %c0_139 = arith.constant 0 : index
    %329 = vector.load %arg5[%c1_137, %c0_138, %c0_139] : memref<2x16x32xbf16, #tpu.memory_space<vmem>>, vector<1x16x32xbf16>
    %330 = vector.shape_cast %329 : vector<1x16x32xbf16> to vector<16x32xbf16>
    %cst_140 = arith.constant dense<0.000000e+00> : vector<12x32xf32>
    %331 = tpu.matmul %4, %330, %cst_140 {dimension_numbers = #tpu.dot_dimension_numbers<[1], [0], [0], [1], [0, 0, 1, 1], [], []>} : vector<12x16xbf16>, vector<16x32xbf16>, vector<12x32xf32> -> vector<12x32xf32>
    %c1_141 = arith.constant 1 : index
    %c0_142 = arith.constant 0 : index
    %c0_143 = arith.constant 0 : index
    %332 = vector.load %arg6[%c1_141, %c0_142, %c0_143] : memref<2x1x32xf32, #tpu.memory_space<vmem>>, vector<1x1x32xf32>
    %333 = vector.shape_cast %332 : vector<1x1x32xf32> to vector<1x32xf32>
    %334 = vector.broadcast %333 : vector<1x32xf32> to vector<12x32xf32>
    %335 = arith.addf %331, %334 : vector<12x32xf32>
    %c1_144 = arith.constant 1 : index
    %c0_145 = arith.constant 0 : index
    %c0_146 = arith.constant 0 : index
    %336 = vector.load %arg7[%c1_144, %c0_145, %c0_146] : memref<2x16x32xbf16, #tpu.memory_space<vmem>>, vector<1x16x32xbf16>
    %337 = vector.shape_cast %336 : vector<1x16x32xbf16> to vector<16x32xbf16>
    %cst_147 = arith.constant dense<0.000000e+00> : vector<12x32xf32>
    %338 = tpu.matmul %4, %337, %cst_147 {dimension_numbers = #tpu.dot_dimension_numbers<[1], [0], [0], [1], [0, 0, 1, 1], [], []>} : vector<12x16xbf16>, vector<16x32xbf16>, vector<12x32xf32> -> vector<12x32xf32>
    %c1_148 = arith.constant 1 : index
    %c0_149 = arith.constant 0 : index
    %c0_150 = arith.constant 0 : index
    %339 = vector.load %arg8[%c1_148, %c0_149, %c0_150] : memref<2x1x32xf32, #tpu.memory_space<vmem>>, vector<1x1x32xf32>
    %340 = vector.shape_cast %339 : vector<1x1x32xf32> to vector<1x32xf32>
    %341 = vector.broadcast %340 : vector<1x32xf32> to vector<12x32xf32>
    %342 = arith.addf %338, %341 : vector<12x32xf32>
    %343 = vector.shape_cast %328 : vector<16x32xf32> to vector<2x8x32xf32>
    %344 = vector.shape_cast %335 : vector<12x32xf32> to vector<2x6x32xf32>
    %345 = vector.shape_cast %342 : vector<12x32xf32> to vector<2x6x32xf32>
    %346 = vector.extract_strided_slice %343 {offsets = [0, 0, 0], sizes = [2, 8, 8], strides = [1, 1, 1]} : vector<2x8x32xf32> to vector<2x8x8xf32>
    %347 = arith.truncf %346 : vector<2x8x8xf32> to vector<2x8x8xbf16>
    %348 = vector.extract_strided_slice %344 {offsets = [0, 0, 0], sizes = [2, 6, 8], strides = [1, 1, 1]} : vector<2x6x32xf32> to vector<2x6x8xf32>
    %349 = arith.truncf %348 : vector<2x6x8xf32> to vector<2x6x8xbf16>
    %350 = vector.extract_strided_slice %345 {offsets = [0, 0, 0], sizes = [2, 6, 8], strides = [1, 1, 1]} : vector<2x6x32xf32> to vector<2x6x8xf32>
    %351 = arith.truncf %350 : vector<2x6x8xf32> to vector<2x6x8xbf16>
    "tpu.trace_start"() <{level = 10 : i32, message = "bnd,bmd->bnm"}> : () -> ()
    %cst_151 = arith.constant dense<0.000000e+00> : vector<2x8x6xf32>
    %352 = tpu.matmul %347, %349, %cst_151 {dimension_numbers = #tpu.dot_dimension_numbers<[2], [2], [1], [1], [0, 0, 0, 1, 1, 1], [0], [0]>} : vector<2x8x8xbf16>, vector<2x6x8xbf16>, vector<2x8x6xf32> -> vector<2x8x6xf32>
    "tpu.trace_stop"() : () -> ()
    %cst_152 = arith.constant dense<0xFF800000> : vector<2x8xf32>
    %353 = vector.multi_reduction <maximumf>, %352, %cst_152 [2] : vector<2x8x6xf32> to vector<2x8xf32>
    %354 = vector.shape_cast %353 : vector<2x8xf32> to vector<2x8x1xf32>
    %355 = vector.broadcast %354 : vector<2x8x1xf32> to vector<2x8x6xf32>
    %356 = arith.subf %352, %355 : vector<2x8x6xf32>
    %357 = math.exp %356 : vector<2x8x6xf32>
    %cst_153 = arith.constant dense<0.000000e+00> : vector<2x8xf32>
    %358 = vector.multi_reduction <add>, %357, %cst_153 [2] : vector<2x8x6xf32> to vector<2x8xf32>
    %359 = vector.shape_cast %358 : vector<2x8xf32> to vector<2x8x1xf32>
    %360 = tpu.reciprocal %359 {approx = true} : vector<2x8x1xf32> -> vector<2x8x1xf32>
    %361 = vector.broadcast %360 : vector<2x8x1xf32> to vector<2x8x6xf32>
    %362 = arith.mulf %357, %361 : vector<2x8x6xf32>
    %363 = arith.truncf %362 : vector<2x8x6xf32> to vector<2x8x6xbf16>
    "tpu.trace_start"() <{level = 10 : i32, message = "bnm,bmd->bnd"}> : () -> ()
    %cst_154 = arith.constant dense<0.000000e+00> : vector<2x8x8xf32>
    %364 = tpu.matmul %363, %351, %cst_154 {dimension_numbers = #tpu.dot_dimension_numbers<[2], [1], [1], [2], [0, 0, 0, 1, 1, 2], [0], [0]>} : vector<2x8x6xbf16>, vector<2x6x8xbf16>, vector<2x8x8xf32> -> vector<2x8x8xf32>
    "tpu.trace_stop"() : () -> ()
    %365 = vector.extract_strided_slice %343 {offsets = [0, 0, 8], sizes = [2, 8, 8], strides = [1, 1, 1]} : vector<2x8x32xf32> to vector<2x8x8xf32>
    %366 = arith.truncf %365 : vector<2x8x8xf32> to vector<2x8x8xbf16>
    %367 = vector.extract_strided_slice %344 {offsets = [0, 0, 8], sizes = [2, 6, 8], strides = [1, 1, 1]} : vector<2x6x32xf32> to vector<2x6x8xf32>
    %368 = arith.truncf %367 : vector<2x6x8xf32> to vector<2x6x8xbf16>
    %369 = vector.extract_strided_slice %345 {offsets = [0, 0, 8], sizes = [2, 6, 8], strides = [1, 1, 1]} : vector<2x6x32xf32> to vector<2x6x8xf32>
    %370 = arith.truncf %369 : vector<2x6x8xf32> to vector<2x6x8xbf16>
    "tpu.trace_start"() <{level = 10 : i32, message = "bnd,bmd->bnm"}> : () -> ()
    %cst_155 = arith.constant dense<0.000000e+00> : vector<2x8x6xf32>
    %371 = tpu.matmul %366, %368, %cst_155 {dimension_numbers = #tpu.dot_dimension_numbers<[2], [2], [1], [1], [0, 0, 0, 1, 1, 1], [0], [0]>} : vector<2x8x8xbf16>, vector<2x6x8xbf16>, vector<2x8x6xf32> -> vector<2x8x6xf32>
    "tpu.trace_stop"() : () -> ()
    %cst_156 = arith.constant dense<0xFF800000> : vector<2x8xf32>
    %372 = vector.multi_reduction <maximumf>, %371, %cst_156 [2] : vector<2x8x6xf32> to vector<2x8xf32>
    %373 = vector.shape_cast %372 : vector<2x8xf32> to vector<2x8x1xf32>
    %374 = vector.broadcast %373 : vector<2x8x1xf32> to vector<2x8x6xf32>
    %375 = arith.subf %371, %374 : vector<2x8x6xf32>
    %376 = math.exp %375 : vector<2x8x6xf32>
    %cst_157 = arith.constant dense<0.000000e+00> : vector<2x8xf32>
    %377 = vector.multi_reduction <add>, %376, %cst_157 [2] : vector<2x8x6xf32> to vector<2x8xf32>
    %378 = vector.shape_cast %377 : vector<2x8xf32> to vector<2x8x1xf32>
    %379 = tpu.reciprocal %378 {approx = true} : vector<2x8x1xf32> -> vector<2x8x1xf32>
    %380 = vector.broadcast %379 : vector<2x8x1xf32> to vector<2x8x6xf32>
    %381 = arith.mulf %376, %380 : vector<2x8x6xf32>
    %382 = arith.truncf %381 : vector<2x8x6xf32> to vector<2x8x6xbf16>
    "tpu.trace_start"() <{level = 10 : i32, message = "bnm,bmd->bnd"}> : () -> ()
    %cst_158 = arith.constant dense<0.000000e+00> : vector<2x8x8xf32>
    %383 = tpu.matmul %382, %370, %cst_158 {dimension_numbers = #tpu.dot_dimension_numbers<[2], [1], [1], [2], [0, 0, 0, 1, 1, 2], [0], [0]>} : vector<2x8x6xbf16>, vector<2x6x8xbf16>, vector<2x8x8xf32> -> vector<2x8x8xf32>
    "tpu.trace_stop"() : () -> ()
    %384 = vector.extract_strided_slice %343 {offsets = [0, 0, 16], sizes = [2, 8, 8], strides = [1, 1, 1]} : vector<2x8x32xf32> to vector<2x8x8xf32>
    %385 = arith.truncf %384 : vector<2x8x8xf32> to vector<2x8x8xbf16>
    %386 = vector.extract_strided_slice %344 {offsets = [0, 0, 16], sizes = [2, 6, 8], strides = [1, 1, 1]} : vector<2x6x32xf32> to vector<2x6x8xf32>
    %387 = arith.truncf %386 : vector<2x6x8xf32> to vector<2x6x8xbf16>
    %388 = vector.extract_strided_slice %345 {offsets = [0, 0, 16], sizes = [2, 6, 8], strides = [1, 1, 1]} : vector<2x6x32xf32> to vector<2x6x8xf32>
    %389 = arith.truncf %388 : vector<2x6x8xf32> to vector<2x6x8xbf16>
    "tpu.trace_start"() <{level = 10 : i32, message = "bnd,bmd->bnm"}> : () -> ()
    %cst_159 = arith.constant dense<0.000000e+00> : vector<2x8x6xf32>
    %390 = tpu.matmul %385, %387, %cst_159 {dimension_numbers = #tpu.dot_dimension_numbers<[2], [2], [1], [1], [0, 0, 0, 1, 1, 1], [0], [0]>} : vector<2x8x8xbf16>, vector<2x6x8xbf16>, vector<2x8x6xf32> -> vector<2x8x6xf32>
    "tpu.trace_stop"() : () -> ()
    %cst_160 = arith.constant dense<0xFF800000> : vector<2x8xf32>
    %391 = vector.multi_reduction <maximumf>, %390, %cst_160 [2] : vector<2x8x6xf32> to vector<2x8xf32>
    %392 = vector.shape_cast %391 : vector<2x8xf32> to vector<2x8x1xf32>
    %393 = vector.broadcast %392 : vector<2x8x1xf32> to vector<2x8x6xf32>
    %394 = arith.subf %390, %393 : vector<2x8x6xf32>
    %395 = math.exp %394 : vector<2x8x6xf32>
    %cst_161 = arith.constant dense<0.000000e+00> : vector<2x8xf32>
    %396 = vector.multi_reduction <add>, %395, %cst_161 [2] : vector<2x8x6xf32> to vector<2x8xf32>
    %397 = vector.shape_cast %396 : vector<2x8xf32> to vector<2x8x1xf32>
    %398 = tpu.reciprocal %397 {approx = true} : vector<2x8x1xf32> -> vector<2x8x1xf32>
    %399 = vector.broadcast %398 : vector<2x8x1xf32> to vector<2x8x6xf32>
    %400 = arith.mulf %395, %399 : vector<2x8x6xf32>
    %401 = arith.truncf %400 : vector<2x8x6xf32> to vector<2x8x6xbf16>
    "tpu.trace_start"() <{level = 10 : i32, message = "bnm,bmd->bnd"}> : () -> ()
    %cst_162 = arith.constant dense<0.000000e+00> : vector<2x8x8xf32>
    %402 = tpu.matmul %401, %389, %cst_162 {dimension_numbers = #tpu.dot_dimension_numbers<[2], [1], [1], [2], [0, 0, 0, 1, 1, 2], [0], [0]>} : vector<2x8x6xbf16>, vector<2x6x8xbf16>, vector<2x8x8xf32> -> vector<2x8x8xf32>
    "tpu.trace_stop"() : () -> ()
    %403 = vector.extract_strided_slice %343 {offsets = [0, 0, 24], sizes = [2, 8, 8], strides = [1, 1, 1]} : vector<2x8x32xf32> to vector<2x8x8xf32>
    %404 = arith.truncf %403 : vector<2x8x8xf32> to vector<2x8x8xbf16>
    %405 = vector.extract_strided_slice %344 {offsets = [0, 0, 24], sizes = [2, 6, 8], strides = [1, 1, 1]} : vector<2x6x32xf32> to vector<2x6x8xf32>
    %406 = arith.truncf %405 : vector<2x6x8xf32> to vector<2x6x8xbf16>
    %407 = vector.extract_strided_slice %345 {offsets = [0, 0, 24], sizes = [2, 6, 8], strides = [1, 1, 1]} : vector<2x6x32xf32> to vector<2x6x8xf32>
    %408 = arith.truncf %407 : vector<2x6x8xf32> to vector<2x6x8xbf16>
    "tpu.trace_start"() <{level = 10 : i32, message = "bnd,bmd->bnm"}> : () -> ()
    %cst_163 = arith.constant dense<0.000000e+00> : vector<2x8x6xf32>
    %409 = tpu.matmul %404, %406, %cst_163 {dimension_numbers = #tpu.dot_dimension_numbers<[2], [2], [1], [1], [0, 0, 0, 1, 1, 1], [0], [0]>} : vector<2x8x8xbf16>, vector<2x6x8xbf16>, vector<2x8x6xf32> -> vector<2x8x6xf32>
    "tpu.trace_stop"() : () -> ()
    %cst_164 = arith.constant dense<0xFF800000> : vector<2x8xf32>
    %410 = vector.multi_reduction <maximumf>, %409, %cst_164 [2] : vector<2x8x6xf32> to vector<2x8xf32>
    %411 = vector.shape_cast %410 : vector<2x8xf32> to vector<2x8x1xf32>
    %412 = vector.broadcast %411 : vector<2x8x1xf32> to vector<2x8x6xf32>
    %413 = arith.subf %409, %412 : vector<2x8x6xf32>
    %414 = math.exp %413 : vector<2x8x6xf32>
    %cst_165 = arith.constant dense<0.000000e+00> : vector<2x8xf32>
    %415 = vector.multi_reduction <add>, %414, %cst_165 [2] : vector<2x8x6xf32> to vector<2x8xf32>
    %416 = vector.shape_cast %415 : vector<2x8xf32> to vector<2x8x1xf32>
    %417 = tpu.reciprocal %416 {approx = true} : vector<2x8x1xf32> -> vector<2x8x1xf32>
    %418 = vector.broadcast %417 : vector<2x8x1xf32> to vector<2x8x6xf32>
    %419 = arith.mulf %414, %418 : vector<2x8x6xf32>
    %420 = arith.truncf %419 : vector<2x8x6xf32> to vector<2x8x6xbf16>
    "tpu.trace_start"() <{level = 10 : i32, message = "bnm,bmd->bnd"}> : () -> ()
    %cst_166 = arith.constant dense<0.000000e+00> : vector<2x8x8xf32>
    %421 = tpu.matmul %420, %408, %cst_166 {dimension_numbers = #tpu.dot_dimension_numbers<[2], [1], [1], [2], [0, 0, 0, 1, 1, 2], [0], [0]>} : vector<2x8x6xbf16>, vector<2x6x8xbf16>, vector<2x8x8xf32> -> vector<2x8x8xf32>
    "tpu.trace_stop"() : () -> ()
    %422 = tpu.concatenate %364, %383, %402, %421 in 2 : vector<2x8x8xf32>, vector<2x8x8xf32>, vector<2x8x8xf32>, vector<2x8x8xf32> -> vector<2x8x32xf32>
    %423 = vector.shape_cast %422 : vector<2x8x32xf32> to vector<16x32xf32>
    %424 = arith.truncf %423 : vector<16x32xf32> to vector<16x32xbf16>
    %c1_167 = arith.constant 1 : index
    %c0_168 = arith.constant 0 : index
    %c0_169 = arith.constant 0 : index
    %425 = vector.load %arg9[%c1_167, %c0_168, %c0_169] : memref<2x32x32xbf16, #tpu.memory_space<vmem>>, vector<1x32x32xbf16>
    %426 = vector.shape_cast %425 : vector<1x32x32xbf16> to vector<32x32xbf16>
    %cst_170 = arith.constant dense<0.000000e+00> : vector<16x32xf32>
    %427 = tpu.matmul %424, %426, %cst_170 {dimension_numbers = #tpu.dot_dimension_numbers<[1], [0], [0], [1], [0, 0, 1, 1], [], []>} : vector<16x32xbf16>, vector<32x32xbf16>, vector<16x32xf32> -> vector<16x32xf32>
    %428 = arith.addf %320, %427 : vector<16x32xf32>
    %c1_171 = arith.constant 1 : index
    %c0_172 = arith.constant 0 : index
    %c0_173 = arith.constant 0 : index
    %429 = vector.load %arg10[%c1_171, %c0_172, %c0_173] : memref<2x1x32xf32, #tpu.memory_space<vmem>>, vector<1x1x32xf32>
    %430 = vector.shape_cast %429 : vector<1x1x32xf32> to vector<1x32xf32>
    %431 = vector.broadcast %430 : vector<1x32xf32> to vector<16x32xf32>
    %432 = arith.addf %428, %431 : vector<16x32xf32>
    %c1_174 = arith.constant 1 : index
    %c0_175 = arith.constant 0 : index
    %c0_176 = arith.constant 0 : index
    %433 = vector.load %arg11[%c1_174, %c0_175, %c0_176] : memref<2x1x32xf32, #tpu.memory_space<vmem>>, vector<1x1x32xf32>
    %434 = vector.shape_cast %433 : vector<1x1x32xf32> to vector<1x32xf32>
    %c1_177 = arith.constant 1 : index
    %c0_178 = arith.constant 0 : index
    %c0_179 = arith.constant 0 : index
    %435 = vector.load %arg12[%c1_177, %c0_178, %c0_179] : memref<2x1x32xf32, #tpu.memory_space<vmem>>, vector<1x1x32xf32>
    %436 = vector.shape_cast %435 : vector<1x1x32xf32> to vector<1x32xf32>
    %cst_180 = arith.constant dense<0.000000e+00> : vector<16xf32>
    %437 = vector.multi_reduction <add>, %432, %cst_180 [1] : vector<16x32xf32> to vector<16xf32>
    %438 = vector.shape_cast %437 : vector<16xf32> to vector<16x1xf32>
    %cst_181 = arith.constant 3.200000e+01 : f32
    %439 = vector.broadcast %cst_181 : f32 to vector<16x1xf32>
    %440 = arith.divf %438, %439 : vector<16x1xf32>
    %441 = vector.broadcast %440 : vector<16x1xf32> to vector<16x32xf32>
    %442 = arith.subf %432, %441 : vector<16x32xf32>
    %443 = arith.mulf %442, %442 : vector<16x32xf32>
    %cst_182 = arith.constant dense<0.000000e+00> : vector<16xf32>
    %444 = vector.multi_reduction <add>, %443, %cst_182 [1] : vector<16x32xf32> to vector<16xf32>
    %445 = vector.shape_cast %444 : vector<16xf32> to vector<16x1xf32>
    %cst_183 = arith.constant 3.200000e+01 : f32
    %446 = vector.broadcast %cst_183 : f32 to vector<16x1xf32>
    %447 = arith.divf %445, %446 : vector<16x1xf32>
    %cst_184 = arith.constant 9.99999974E-6 : f32
    %448 = vector.broadcast %cst_184 : f32 to vector<16x1xf32>
    %449 = arith.addf %447, %448 : vector<16x1xf32>
    %450 = math.rsqrt %449 : vector<16x1xf32>
    %451 = vector.broadcast %450 : vector<16x1xf32> to vector<16x32xf32>
    %452 = arith.mulf %442, %451 : vector<16x32xf32>
    %453 = vector.broadcast %434 : vector<1x32xf32> to vector<16x32xf32>
    %454 = arith.mulf %452, %453 : vector<16x32xf32>
    %455 = vector.broadcast %436 : vector<1x32xf32> to vector<16x32xf32>
    %456 = arith.addf %454, %455 : vector<16x32xf32>
    %457 = arith.truncf %456 : vector<16x32xf32> to vector<16x32xbf16>
    %c1_185 = arith.constant 1 : index
    %c0_186 = arith.constant 0 : index
    %c0_187 = arith.constant 0 : index
    %458 = vector.load %arg13[%c1_185, %c0_186, %c0_187] : memref<2x32x64xbf16, #tpu.memory_space<vmem>>, vector<1x32x64xbf16>
    %459 = vector.shape_cast %458 : vector<1x32x64xbf16> to vector<32x64xbf16>
    %cst_188 = arith.constant dense<0.000000e+00> : vector<16x64xf32>
    %460 = tpu.matmul %457, %459, %cst_188 {dimension_numbers = #tpu.dot_dimension_numbers<[1], [0], [0], [1], [0, 0, 1, 1], [], []>} : vector<16x32xbf16>, vector<32x64xbf16>, vector<16x64xf32> -> vector<16x64xf32>
    %c1_189 = arith.constant 1 : index
    %c0_190 = arith.constant 0 : index
    %c0_191 = arith.constant 0 : index
    %461 = vector.load %arg14[%c1_189, %c0_190, %c0_191] : memref<2x32x64xbf16, #tpu.memory_space<vmem>>, vector<1x32x64xbf16>
    %462 = vector.shape_cast %461 : vector<1x32x64xbf16> to vector<32x64xbf16>
    %cst_192 = arith.constant dense<0.000000e+00> : vector<16x64xf32>
    %463 = tpu.matmul %457, %462, %cst_192 {dimension_numbers = #tpu.dot_dimension_numbers<[1], [0], [0], [1], [0, 0, 1, 1], [], []>} : vector<16x32xbf16>, vector<32x64xbf16>, vector<16x64xf32> -> vector<16x64xf32>
    %c1_193 = arith.constant 1 : index
    %c0_194 = arith.constant 0 : index
    %c0_195 = arith.constant 0 : index
    %464 = vector.load %arg15[%c1_193, %c0_194, %c0_195] : memref<2x32x64xbf16, #tpu.memory_space<vmem>>, vector<1x32x64xbf16>
    %465 = vector.shape_cast %464 : vector<1x32x64xbf16> to vector<32x64xbf16>
    %cst_196 = arith.constant dense<0.000000e+00> : vector<16x64xf32>
    %466 = tpu.matmul %457, %465, %cst_196 {dimension_numbers = #tpu.dot_dimension_numbers<[1], [0], [0], [1], [0, 0, 1, 1], [], []>} : vector<16x32xbf16>, vector<32x64xbf16>, vector<16x64xf32> -> vector<16x64xf32>
    %467 = vector.shape_cast %460 : vector<16x64xf32> to vector<2x8x64xf32>
    %468 = vector.shape_cast %463 : vector<16x64xf32> to vector<2x8x64xf32>
    %469 = vector.shape_cast %466 : vector<16x64xf32> to vector<2x8x64xf32>
    %470 = vector.extract_strided_slice %467 {offsets = [0, 0, 0], sizes = [2, 8, 16], strides = [1, 1, 1]} : vector<2x8x64xf32> to vector<2x8x16xf32>
    %471 = arith.truncf %470 : vector<2x8x16xf32> to vector<2x8x16xbf16>
    %472 = vector.extract_strided_slice %468 {offsets = [0, 0, 0], sizes = [2, 8, 16], strides = [1, 1, 1]} : vector<2x8x64xf32> to vector<2x8x16xf32>
    %473 = arith.truncf %472 : vector<2x8x16xf32> to vector<2x8x16xbf16>
    %474 = vector.extract_strided_slice %469 {offsets = [0, 0, 0], sizes = [2, 8, 16], strides = [1, 1, 1]} : vector<2x8x64xf32> to vector<2x8x16xf32>
    %475 = arith.truncf %474 : vector<2x8x16xf32> to vector<2x8x16xbf16>
    "tpu.trace_start"() <{level = 10 : i32, message = "bnd,bmd->bnm"}> : () -> ()
    %cst_197 = arith.constant dense<0.000000e+00> : vector<2x8x8xf32>
    %476 = tpu.matmul %471, %473, %cst_197 {dimension_numbers = #tpu.dot_dimension_numbers<[2], [2], [1], [1], [0, 0, 0, 1, 1, 1], [0], [0]>} : vector<2x8x16xbf16>, vector<2x8x16xbf16>, vector<2x8x8xf32> -> vector<2x8x8xf32>
    "tpu.trace_stop"() : () -> ()
    %cst_198 = arith.constant dense<0xFF800000> : vector<2x8xf32>
    %477 = vector.multi_reduction <maximumf>, %476, %cst_198 [2] : vector<2x8x8xf32> to vector<2x8xf32>
    %478 = vector.shape_cast %477 : vector<2x8xf32> to vector<2x8x1xf32>
    %479 = vector.broadcast %478 : vector<2x8x1xf32> to vector<2x8x8xf32>
    %480 = arith.subf %476, %479 : vector<2x8x8xf32>
    %481 = math.exp %480 : vector<2x8x8xf32>
    %cst_199 = arith.constant dense<0.000000e+00> : vector<2x8xf32>
    %482 = vector.multi_reduction <add>, %481, %cst_199 [2] : vector<2x8x8xf32> to vector<2x8xf32>
    %483 = vector.shape_cast %482 : vector<2x8xf32> to vector<2x8x1xf32>
    %484 = tpu.reciprocal %483 {approx = true} : vector<2x8x1xf32> -> vector<2x8x1xf32>
    %485 = vector.broadcast %484 : vector<2x8x1xf32> to vector<2x8x8xf32>
    %486 = arith.mulf %481, %485 : vector<2x8x8xf32>
    %487 = arith.truncf %486 : vector<2x8x8xf32> to vector<2x8x8xbf16>
    "tpu.trace_start"() <{level = 10 : i32, message = "bnm,bmd->bnd"}> : () -> ()
    %cst_200 = arith.constant dense<0.000000e+00> : vector<2x8x16xf32>
    %488 = tpu.matmul %487, %475, %cst_200 {dimension_numbers = #tpu.dot_dimension_numbers<[2], [1], [1], [2], [0, 0, 0, 1, 1, 2], [0], [0]>} : vector<2x8x8xbf16>, vector<2x8x16xbf16>, vector<2x8x16xf32> -> vector<2x8x16xf32>
    "tpu.trace_stop"() : () -> ()
    %489 = vector.extract_strided_slice %467 {offsets = [0, 0, 16], sizes = [2, 8, 16], strides = [1, 1, 1]} : vector<2x8x64xf32> to vector<2x8x16xf32>
    %490 = arith.truncf %489 : vector<2x8x16xf32> to vector<2x8x16xbf16>
    %491 = vector.extract_strided_slice %468 {offsets = [0, 0, 16], sizes = [2, 8, 16], strides = [1, 1, 1]} : vector<2x8x64xf32> to vector<2x8x16xf32>
    %492 = arith.truncf %491 : vector<2x8x16xf32> to vector<2x8x16xbf16>
    %493 = vector.extract_strided_slice %469 {offsets = [0, 0, 16], sizes = [2, 8, 16], strides = [1, 1, 1]} : vector<2x8x64xf32> to vector<2x8x16xf32>
    %494 = arith.truncf %493 : vector<2x8x16xf32> to vector<2x8x16xbf16>
    "tpu.trace_start"() <{level = 10 : i32, message = "bnd,bmd->bnm"}> : () -> ()
    %cst_201 = arith.constant dense<0.000000e+00> : vector<2x8x8xf32>
    %495 = tpu.matmul %490, %492, %cst_201 {dimension_numbers = #tpu.dot_dimension_numbers<[2], [2], [1], [1], [0, 0, 0, 1, 1, 1], [0], [0]>} : vector<2x8x16xbf16>, vector<2x8x16xbf16>, vector<2x8x8xf32> -> vector<2x8x8xf32>
    "tpu.trace_stop"() : () -> ()
    %cst_202 = arith.constant dense<0xFF800000> : vector<2x8xf32>
    %496 = vector.multi_reduction <maximumf>, %495, %cst_202 [2] : vector<2x8x8xf32> to vector<2x8xf32>
    %497 = vector.shape_cast %496 : vector<2x8xf32> to vector<2x8x1xf32>
    %498 = vector.broadcast %497 : vector<2x8x1xf32> to vector<2x8x8xf32>
    %499 = arith.subf %495, %498 : vector<2x8x8xf32>
    %500 = math.exp %499 : vector<2x8x8xf32>
    %cst_203 = arith.constant dense<0.000000e+00> : vector<2x8xf32>
    %501 = vector.multi_reduction <add>, %500, %cst_203 [2] : vector<2x8x8xf32> to vector<2x8xf32>
    %502 = vector.shape_cast %501 : vector<2x8xf32> to vector<2x8x1xf32>
    %503 = tpu.reciprocal %502 {approx = true} : vector<2x8x1xf32> -> vector<2x8x1xf32>
    %504 = vector.broadcast %503 : vector<2x8x1xf32> to vector<2x8x8xf32>
    %505 = arith.mulf %500, %504 : vector<2x8x8xf32>
    %506 = arith.truncf %505 : vector<2x8x8xf32> to vector<2x8x8xbf16>
    "tpu.trace_start"() <{level = 10 : i32, message = "bnm,bmd->bnd"}> : () -> ()
    %cst_204 = arith.constant dense<0.000000e+00> : vector<2x8x16xf32>
    %507 = tpu.matmul %506, %494, %cst_204 {dimension_numbers = #tpu.dot_dimension_numbers<[2], [1], [1], [2], [0, 0, 0, 1, 1, 2], [0], [0]>} : vector<2x8x8xbf16>, vector<2x8x16xbf16>, vector<2x8x16xf32> -> vector<2x8x16xf32>
    "tpu.trace_stop"() : () -> ()
    %508 = vector.extract_strided_slice %467 {offsets = [0, 0, 32], sizes = [2, 8, 16], strides = [1, 1, 1]} : vector<2x8x64xf32> to vector<2x8x16xf32>
    %509 = arith.truncf %508 : vector<2x8x16xf32> to vector<2x8x16xbf16>
    %510 = vector.extract_strided_slice %468 {offsets = [0, 0, 32], sizes = [2, 8, 16], strides = [1, 1, 1]} : vector<2x8x64xf32> to vector<2x8x16xf32>
    %511 = arith.truncf %510 : vector<2x8x16xf32> to vector<2x8x16xbf16>
    %512 = vector.extract_strided_slice %469 {offsets = [0, 0, 32], sizes = [2, 8, 16], strides = [1, 1, 1]} : vector<2x8x64xf32> to vector<2x8x16xf32>
    %513 = arith.truncf %512 : vector<2x8x16xf32> to vector<2x8x16xbf16>
    "tpu.trace_start"() <{level = 10 : i32, message = "bnd,bmd->bnm"}> : () -> ()
    %cst_205 = arith.constant dense<0.000000e+00> : vector<2x8x8xf32>
    %514 = tpu.matmul %509, %511, %cst_205 {dimension_numbers = #tpu.dot_dimension_numbers<[2], [2], [1], [1], [0, 0, 0, 1, 1, 1], [0], [0]>} : vector<2x8x16xbf16>, vector<2x8x16xbf16>, vector<2x8x8xf32> -> vector<2x8x8xf32>
    "tpu.trace_stop"() : () -> ()
    %cst_206 = arith.constant dense<0xFF800000> : vector<2x8xf32>
    %515 = vector.multi_reduction <maximumf>, %514, %cst_206 [2] : vector<2x8x8xf32> to vector<2x8xf32>
    %516 = vector.shape_cast %515 : vector<2x8xf32> to vector<2x8x1xf32>
    %517 = vector.broadcast %516 : vector<2x8x1xf32> to vector<2x8x8xf32>
    %518 = arith.subf %514, %517 : vector<2x8x8xf32>
    %519 = math.exp %518 : vector<2x8x8xf32>
    %cst_207 = arith.constant dense<0.000000e+00> : vector<2x8xf32>
    %520 = vector.multi_reduction <add>, %519, %cst_207 [2] : vector<2x8x8xf32> to vector<2x8xf32>
    %521 = vector.shape_cast %520 : vector<2x8xf32> to vector<2x8x1xf32>
    %522 = tpu.reciprocal %521 {approx = true} : vector<2x8x1xf32> -> vector<2x8x1xf32>
    %523 = vector.broadcast %522 : vector<2x8x1xf32> to vector<2x8x8xf32>
    %524 = arith.mulf %519, %523 : vector<2x8x8xf32>
    %525 = arith.truncf %524 : vector<2x8x8xf32> to vector<2x8x8xbf16>
    "tpu.trace_start"() <{level = 10 : i32, message = "bnm,bmd->bnd"}> : () -> ()
    %cst_208 = arith.constant dense<0.000000e+00> : vector<2x8x16xf32>
    %526 = tpu.matmul %525, %513, %cst_208 {dimension_numbers = #tpu.dot_dimension_numbers<[2], [1], [1], [2], [0, 0, 0, 1, 1, 2], [0], [0]>} : vector<2x8x8xbf16>, vector<2x8x16xbf16>, vector<2x8x16xf32> -> vector<2x8x16xf32>
    "tpu.trace_stop"() : () -> ()
    %527 = vector.extract_strided_slice %467 {offsets = [0, 0, 48], sizes = [2, 8, 16], strides = [1, 1, 1]} : vector<2x8x64xf32> to vector<2x8x16xf32>
    %528 = arith.truncf %527 : vector<2x8x16xf32> to vector<2x8x16xbf16>
    %529 = vector.extract_strided_slice %468 {offsets = [0, 0, 48], sizes = [2, 8, 16], strides = [1, 1, 1]} : vector<2x8x64xf32> to vector<2x8x16xf32>
    %530 = arith.truncf %529 : vector<2x8x16xf32> to vector<2x8x16xbf16>
    %531 = vector.extract_strided_slice %469 {offsets = [0, 0, 48], sizes = [2, 8, 16], strides = [1, 1, 1]} : vector<2x8x64xf32> to vector<2x8x16xf32>
    %532 = arith.truncf %531 : vector<2x8x16xf32> to vector<2x8x16xbf16>
    "tpu.trace_start"() <{level = 10 : i32, message = "bnd,bmd->bnm"}> : () -> ()
    %cst_209 = arith.constant dense<0.000000e+00> : vector<2x8x8xf32>
    %533 = tpu.matmul %528, %530, %cst_209 {dimension_numbers = #tpu.dot_dimension_numbers<[2], [2], [1], [1], [0, 0, 0, 1, 1, 1], [0], [0]>} : vector<2x8x16xbf16>, vector<2x8x16xbf16>, vector<2x8x8xf32> -> vector<2x8x8xf32>
    "tpu.trace_stop"() : () -> ()
    %cst_210 = arith.constant dense<0xFF800000> : vector<2x8xf32>
    %534 = vector.multi_reduction <maximumf>, %533, %cst_210 [2] : vector<2x8x8xf32> to vector<2x8xf32>
    %535 = vector.shape_cast %534 : vector<2x8xf32> to vector<2x8x1xf32>
    %536 = vector.broadcast %535 : vector<2x8x1xf32> to vector<2x8x8xf32>
    %537 = arith.subf %533, %536 : vector<2x8x8xf32>
    %538 = math.exp %537 : vector<2x8x8xf32>
    %cst_211 = arith.constant dense<0.000000e+00> : vector<2x8xf32>
    %539 = vector.multi_reduction <add>, %538, %cst_211 [2] : vector<2x8x8xf32> to vector<2x8xf32>
    %540 = vector.shape_cast %539 : vector<2x8xf32> to vector<2x8x1xf32>
    %541 = tpu.reciprocal %540 {approx = true} : vector<2x8x1xf32> -> vector<2x8x1xf32>
    %542 = vector.broadcast %541 : vector<2x8x1xf32> to vector<2x8x8xf32>
    %543 = arith.mulf %538, %542 : vector<2x8x8xf32>
    %544 = arith.truncf %543 : vector<2x8x8xf32> to vector<2x8x8xbf16>
    "tpu.trace_start"() <{level = 10 : i32, message = "bnm,bmd->bnd"}> : () -> ()
    %cst_212 = arith.constant dense<0.000000e+00> : vector<2x8x16xf32>
    %545 = tpu.matmul %544, %532, %cst_212 {dimension_numbers = #tpu.dot_dimension_numbers<[2], [1], [1], [2], [0, 0, 0, 1, 1, 2], [0], [0]>} : vector<2x8x8xbf16>, vector<2x8x16xbf16>, vector<2x8x16xf32> -> vector<2x8x16xf32>
    "tpu.trace_stop"() : () -> ()
    %546 = tpu.concatenate %488, %507, %526, %545 in 2 : vector<2x8x16xf32>, vector<2x8x16xf32>, vector<2x8x16xf32>, vector<2x8x16xf32> -> vector<2x8x64xf32>
    %547 = vector.shape_cast %546 : vector<2x8x64xf32> to vector<16x64xf32>
    %548 = arith.truncf %547 : vector<16x64xf32> to vector<16x64xbf16>
    %c1_213 = arith.constant 1 : index
    %c0_214 = arith.constant 0 : index
    %c0_215 = arith.constant 0 : index
    %549 = vector.load %arg16[%c1_213, %c0_214, %c0_215] : memref<2x64x32xbf16, #tpu.memory_space<vmem>>, vector<1x64x32xbf16>
    %550 = vector.shape_cast %549 : vector<1x64x32xbf16> to vector<64x32xbf16>
    %cst_216 = arith.constant dense<0.000000e+00> : vector<16x32xf32>
    %551 = tpu.matmul %548, %550, %cst_216 {dimension_numbers = #tpu.dot_dimension_numbers<[1], [0], [0], [1], [0, 0, 1, 1], [], []>} : vector<16x64xbf16>, vector<64x32xbf16>, vector<16x32xf32> -> vector<16x32xf32>
    %552 = arith.addf %432, %551 : vector<16x32xf32>
    %c1_217 = arith.constant 1 : index
    %c0_218 = arith.constant 0 : index
    %c0_219 = arith.constant 0 : index
    %553 = vector.load %arg17[%c1_217, %c0_218, %c0_219] : memref<2x1x32xf32, #tpu.memory_space<vmem>>, vector<1x1x32xf32>
    %554 = vector.shape_cast %553 : vector<1x1x32xf32> to vector<1x32xf32>
    %c1_220 = arith.constant 1 : index
    %c0_221 = arith.constant 0 : index
    %c0_222 = arith.constant 0 : index
    %555 = vector.load %arg18[%c1_220, %c0_221, %c0_222] : memref<2x1x32xf32, #tpu.memory_space<vmem>>, vector<1x1x32xf32>
    %556 = vector.shape_cast %555 : vector<1x1x32xf32> to vector<1x32xf32>
    %cst_223 = arith.constant dense<0.000000e+00> : vector<16xf32>
    %557 = vector.multi_reduction <add>, %552, %cst_223 [1] : vector<16x32xf32> to vector<16xf32>
    %558 = vector.shape_cast %557 : vector<16xf32> to vector<16x1xf32>
    %cst_224 = arith.constant 3.200000e+01 : f32
    %559 = vector.broadcast %cst_224 : f32 to vector<16x1xf32>
    %560 = arith.divf %558, %559 : vector<16x1xf32>
    %561 = vector.broadcast %560 : vector<16x1xf32> to vector<16x32xf32>
    %562 = arith.subf %552, %561 : vector<16x32xf32>
    %563 = arith.mulf %562, %562 : vector<16x32xf32>
    %cst_225 = arith.constant dense<0.000000e+00> : vector<16xf32>
    %564 = vector.multi_reduction <add>, %563, %cst_225 [1] : vector<16x32xf32> to vector<16xf32>
    %565 = vector.shape_cast %564 : vector<16xf32> to vector<16x1xf32>
    %cst_226 = arith.constant 3.200000e+01 : f32
    %566 = vector.broadcast %cst_226 : f32 to vector<16x1xf32>
    %567 = arith.divf %565, %566 : vector<16x1xf32>
    %cst_227 = arith.constant 9.99999974E-6 : f32
    %568 = vector.broadcast %cst_227 : f32 to vector<16x1xf32>
    %569 = arith.addf %567, %568 : vector<16x1xf32>
    %570 = math.rsqrt %569 : vector<16x1xf32>
    %571 = vector.broadcast %570 : vector<16x1xf32> to vector<16x32xf32>
    %572 = arith.mulf %562, %571 : vector<16x32xf32>
    %573 = vector.broadcast %554 : vector<1x32xf32> to vector<16x32xf32>
    %574 = arith.mulf %572, %573 : vector<16x32xf32>
    %575 = vector.broadcast %556 : vector<1x32xf32> to vector<16x32xf32>
    %576 = arith.addf %574, %575 : vector<16x32xf32>
    %577 = arith.truncf %576 : vector<16x32xf32> to vector<16x32xbf16>
    %c1_228 = arith.constant 1 : index
    %c0_229 = arith.constant 0 : index
    %c0_230 = arith.constant 0 : index
    %578 = vector.load %arg19[%c1_228, %c0_229, %c0_230] : memref<2x32x256xbf16, #tpu.memory_space<vmem>>, vector<1x32x256xbf16>
    %579 = vector.shape_cast %578 : vector<1x32x256xbf16> to vector<32x256xbf16>
    %cst_231 = arith.constant dense<0.000000e+00> : vector<16x256xf32>
    %580 = tpu.matmul %577, %579, %cst_231 {dimension_numbers = #tpu.dot_dimension_numbers<[1], [0], [0], [1], [0, 0, 1, 1], [], []>} : vector<16x32xbf16>, vector<32x256xbf16>, vector<16x256xf32> -> vector<16x256xf32>
    %c1_232 = arith.constant 1 : index
    %c0_233 = arith.constant 0 : index
    %c0_234 = arith.constant 0 : index
    %581 = vector.load %arg20[%c1_232, %c0_233, %c0_234] : memref<2x1x256xf32, #tpu.memory_space<vmem>>, vector<1x1x256xf32>
    %582 = vector.shape_cast %581 : vector<1x1x256xf32> to vector<1x256xf32>
    %583 = vector.broadcast %582 : vector<1x256xf32> to vector<16x256xf32>
    %584 = arith.addf %580, %583 : vector<16x256xf32>
    %585 = vector.extract_strided_slice %584 {offsets = [0, 0], sizes = [16, 128], strides = [1, 1]} : vector<16x256xf32> to vector<16x128xf32>
    %586 = vector.extract_strided_slice %584 {offsets = [0, 128], sizes = [16, 128], strides = [1, 1]} : vector<16x256xf32> to vector<16x128xf32>
    %cst_235 = arith.constant 5.000000e-01 : f32
    %587 = vector.broadcast %cst_235 : f32 to vector<16x128xf32>
    %588 = arith.mulf %587, %586 : vector<16x128xf32>
    %cst_236 = arith.constant 0.707106769 : f32
    %589 = vector.broadcast %cst_236 : f32 to vector<16x128xf32>
    %590 = arith.mulf %586, %589 : vector<16x128xf32>
    %591 = math.absf %590 : vector<16x128xf32>
    %cst_237 = arith.constant 0.327591091 : f32
    %592 = vector.broadcast %cst_237 : f32 to vector<16x128xf32>
    %593 = arith.mulf %592, %591 : vector<16x128xf32>
    %cst_238 = arith.constant 1.000000e+00 : f32
    %594 = vector.broadcast %cst_238 : f32 to vector<16x128xf32>
    %595 = arith.addf %594, %593 : vector<16x128xf32>
    %cst_239 = arith.constant 1.000000e+00 : f32
    %596 = vector.broadcast %cst_239 : f32 to vector<16x128xf32>
    %597 = arith.divf %596, %595 : vector<16x128xf32>
    %cst_240 = arith.constant 1.06140542 : f32
    %598 = vector.broadcast %cst_240 : f32 to vector<16x128xf32>
    %599 = arith.mulf %598, %597 : vector<16x128xf32>
    %cst_241 = arith.constant 1.45315206 : f32
    %600 = vector.broadcast %cst_241 : f32 to vector<16x128xf32>
    %601 = arith.subf %599, %600 : vector<16x128xf32>
    %602 = arith.mulf %601, %597 : vector<16x128xf32>
    %cst_242 = arith.constant 1.42141378 : f32
    %603 = vector.broadcast %cst_242 : f32 to vector<16x128xf32>
    %604 = arith.addf %602, %603 : vector<16x128xf32>
    %605 = arith.mulf %604, %597 : vector<16x128xf32>
    %cst_243 = arith.constant 0.284496725 : f32
    %606 = vector.broadcast %cst_243 : f32 to vector<16x128xf32>
    %607 = arith.subf %605, %606 : vector<16x128xf32>
    %608 = arith.mulf %607, %597 : vector<16x128xf32>
    %cst_244 = arith.constant 0.254829586 : f32
    %609 = vector.broadcast %cst_244 : f32 to vector<16x128xf32>
    %610 = arith.addf %608, %609 : vector<16x128xf32>
    %611 = arith.mulf %610, %597 : vector<16x128xf32>
    %cst_245 = arith.constant 0.000000e+00 : f32
    %612 = vector.broadcast %cst_245 : f32 to vector<16x128xf32>
    %613 = arith.subf %612, %591 : vector<16x128xf32>
    %614 = arith.mulf %613, %591 : vector<16x128xf32>
    %615 = math.exp %614 : vector<16x128xf32>
    %616 = arith.mulf %611, %615 : vector<16x128xf32>
    %cst_246 = arith.constant 1.000000e+00 : f32
    %617 = vector.broadcast %cst_246 : f32 to vector<16x128xf32>
    %618 = arith.subf %617, %616 : vector<16x128xf32>
    %cst_247 = arith.constant 0.000000e+00 : f32
    %619 = vector.broadcast %cst_247 : f32 to vector<16x128xf32>
    %620 = arith.cmpf oge, %590, %619 : vector<16x128xf32>
    %cst_248 = arith.constant 0.000000e+00 : f32
    %621 = vector.broadcast %cst_248 : f32 to vector<16x128xf32>
    %622 = arith.subf %621, %618 : vector<16x128xf32>
    %623 = arith.select %620, %618, %622 : vector<16x128xi1>, vector<16x128xf32>
    %cst_249 = arith.constant 1.000000e+00 : f32
    %624 = vector.broadcast %cst_249 : f32 to vector<16x128xf32>
    %625 = arith.addf %624, %623 : vector<16x128xf32>
    %626 = arith.mulf %588, %625 : vector<16x128xf32>
    %627 = arith.mulf %585, %626 : vector<16x128xf32>
    %628 = arith.truncf %627 : vector<16x128xf32> to vector<16x128xbf16>
    %c1_250 = arith.constant 1 : index
    %c0_251 = arith.constant 0 : index
    %c0_252 = arith.constant 0 : index
    %629 = vector.load %arg21[%c1_250, %c0_251, %c0_252] : memref<2x128x32xbf16, #tpu.memory_space<vmem>>, vector<1x128x32xbf16>
    %630 = vector.shape_cast %629 : vector<1x128x32xbf16> to vector<128x32xbf16>
    %cst_253 = arith.constant dense<0.000000e+00> : vector<16x32xf32>
    %631 = tpu.matmul %628, %630, %cst_253 {dimension_numbers = #tpu.dot_dimension_numbers<[1], [0], [0], [1], [0, 0, 1, 1], [], []>} : vector<16x128xbf16>, vector<128x32xbf16>, vector<16x32xf32> -> vector<16x32xf32>
    %632 = arith.addf %552, %631 : vector<16x32xf32>
    %c1_254 = arith.constant 1 : index
    %c0_255 = arith.constant 0 : index
    %c0_256 = arith.constant 0 : index
    %633 = vector.load %arg22[%c1_254, %c0_255, %c0_256] : memref<2x1x32xf32, #tpu.memory_space<vmem>>, vector<1x1x32xf32>
    %634 = vector.shape_cast %633 : vector<1x1x32xf32> to vector<1x32xf32>
    %635 = vector.broadcast %634 : vector<1x32xf32> to vector<16x32xf32>
    %636 = arith.addf %632, %635 : vector<16x32xf32>
    %637 = vector.shape_cast %636 : vector<16x32xf32> to vector<2x8x32xf32>
    %638 = vector.extract_strided_slice %637 {offsets = [0, 0, 0], sizes = [2, 1, 32], strides = [1, 1, 1]} : vector<2x8x32xf32> to vector<2x1x32xf32>
    %639 = vector.shape_cast %638 : vector<2x1x32xf32> to vector<2x32xf32>
    %c0_257 = arith.constant 0 : index
    %c0_258 = arith.constant 0 : index
    %640 = vector.load %arg23[%c0_257, %c0_258] : memref<1x32xf32, #tpu.memory_space<vmem>>, vector<1x32xf32>
    %c0_259 = arith.constant 0 : index
    %c0_260 = arith.constant 0 : index
    %641 = vector.load %arg24[%c0_259, %c0_260] : memref<1x32xf32, #tpu.memory_space<vmem>>, vector<1x32xf32>
    %cst_261 = arith.constant dense<0.000000e+00> : vector<2xf32>
    %642 = vector.multi_reduction <add>, %639, %cst_261 [1] : vector<2x32xf32> to vector<2xf32>
    %643 = vector.shape_cast %642 : vector<2xf32> to vector<2x1xf32>
    %cst_262 = arith.constant 3.200000e+01 : f32
    %644 = vector.broadcast %cst_262 : f32 to vector<2x1xf32>
    %645 = arith.divf %643, %644 : vector<2x1xf32>
    %646 = vector.broadcast %645 : vector<2x1xf32> to vector<2x32xf32>
    %647 = arith.subf %639, %646 : vector<2x32xf32>
    %648 = arith.mulf %647, %647 : vector<2x32xf32>
    %cst_263 = arith.constant dense<0.000000e+00> : vector<2xf32>
    %649 = vector.multi_reduction <add>, %648, %cst_263 [1] : vector<2x32xf32> to vector<2xf32>
    %650 = vector.shape_cast %649 : vector<2xf32> to vector<2x1xf32>
    %cst_264 = arith.constant 3.200000e+01 : f32
    %651 = vector.broadcast %cst_264 : f32 to vector<2x1xf32>
    %652 = arith.divf %650, %651 : vector<2x1xf32>
    %cst_265 = arith.constant 9.99999974E-6 : f32
    %653 = vector.broadcast %cst_265 : f32 to vector<2x1xf32>
    %654 = arith.addf %652, %653 : vector<2x1xf32>
    %655 = math.rsqrt %654 : vector<2x1xf32>
    %656 = vector.broadcast %655 : vector<2x1xf32> to vector<2x32xf32>
    %657 = arith.mulf %647, %656 : vector<2x32xf32>
    %658 = vector.broadcast %640 : vector<1x32xf32> to vector<2x32xf32>
    %659 = arith.mulf %657, %658 : vector<2x32xf32>
    %660 = vector.broadcast %641 : vector<1x32xf32> to vector<2x32xf32>
    %661 = arith.addf %659, %660 : vector<2x32xf32>
    %cst_266 = arith.constant 0.000000e+00 : f32
    %662 = vector.broadcast %cst_266 : f32 to vector<2x32xf32>
    %663 = arith.maximumf %661, %662 : vector<2x32xf32>
    %664 = arith.truncf %663 : vector<2x32xf32> to vector<2x32xbf16>
    %c0_267 = arith.constant 0 : index
    %c0_268 = arith.constant 0 : index
    %665 = vector.load %arg25[%c0_267, %c0_268] : memref<32x1xbf16, #tpu.memory_space<vmem>>, vector<32x1xbf16>
    %cst_269 = arith.constant dense<0.000000e+00> : vector<2x1xf32>
    %666 = tpu.matmul %664, %665, %cst_269 {dimension_numbers = #tpu.dot_dimension_numbers<[1], [0], [0], [1], [0, 0, 1, 1], [], []>} : vector<2x32xbf16>, vector<32x1xbf16>, vector<2x1xf32> -> vector<2x1xf32>
    %c0_270 = arith.constant 0 : index
    %c0_271 = arith.constant 0 : index
    %667 = vector.load %arg26[%c0_270, %c0_271] : memref<1x1xf32, #tpu.memory_space<vmem>>, vector<1x1xf32>
    %668 = vector.broadcast %667 : vector<1x1xf32> to vector<2x1xf32>
    %669 = arith.addf %666, %668 : vector<2x1xf32>
    %670 = vector.shape_cast %669 : vector<2x1xf32> to vector<2x1x1xf32>
    %c0_272 = arith.constant 0 : index
    %c0_273 = arith.constant 0 : index
    %c0_274 = arith.constant 0 : index
    %671 = vector.load %arg27[%c0_272, %c0_273, %c0_274] : memref<2x1x1xf32, #tpu.memory_space<vmem>>, vector<2x1x1xf32>
    tpu.vector_store %arg27[%c0_272, %c0_273, %c0_274], %670 {strides = array<i32>} : memref<2x1x1xf32, #tpu.memory_space<vmem>>, vector<2x1x1xf32>,
    return
  }
  func.func @transform_0(%arg0: i32) -> (i32, i32, i32) {
    %c0_i32 = arith.constant 0 : i32
    %c0_i32_0 = arith.constant 0 : i32
    %c0_i32_1 = arith.constant 0 : i32
    return %arg0, %c0_i32, %c0_i32_0 : i32, i32, i32
  }
  func.func @transform_1(%arg0: i32) -> (i32, i32, i32) {
    %c0_i32 = arith.constant 0 : i32
    %c0_i32_0 = arith.constant 0 : i32
    %c0_i32_1 = arith.constant 0 : i32
    return %arg0, %c0_i32, %c0_i32_0 : i32, i32, i32
  }
  func.func @transform_2(%arg0: i32) -> (i32, i32, i32) {
    %c0_i32 = arith.constant 0 : i32
    %c0_i32_0 = arith.constant 0 : i32
    %c0_i32_1 = arith.constant 0 : i32
    %c0_i32_2 = arith.constant 0 : i32
    return %c0_i32, %c0_i32_0, %c0_i32_1 : i32, i32, i32
  }
  func.func @transform_3(%arg0: i32) -> (i32, i32, i32) {
    %c0_i32 = arith.constant 0 : i32
    %c0_i32_0 = arith.constant 0 : i32
    %c0_i32_1 = arith.constant 0 : i32
    %c0_i32_2 = arith.constant 0 : i32
    return %c0_i32, %c0_i32_0, %c0_i32_1 : i32, i32, i32
  }
  func.func @transform_4(%arg0: i32) -> (i32, i32, i32) {
    %c0_i32 = arith.constant 0 : i32
    %c0_i32_0 = arith.constant 0 : i32
    %c0_i32_1 = arith.constant 0 : i32
    %c0_i32_2 = arith.constant 0 : i32
    return %c0_i32, %c0_i32_0, %c0_i32_1 : i32, i32, i32
  }
  func.func @transform_5(%arg0: i32) -> (i32, i32, i32) {
    %c0_i32 = arith.constant 0 : i32
    %c0_i32_0 = arith.constant 0 : i32
    %c0_i32_1 = arith.constant 0 : i32
    %c0_i32_2 = arith.constant 0 : i32
    return %c0_i32, %c0_i32_0, %c0_i32_1 : i32, i32, i32
  }
  func.func @transform_6(%arg0: i32) -> (i32, i32, i32) {
    %c0_i32 = arith.constant 0 : i32
    %c0_i32_0 = arith.constant 0 : i32
    %c0_i32_1 = arith.constant 0 : i32
    %c0_i32_2 = arith.constant 0 : i32
    return %c0_i32, %c0_i32_0, %c0_i32_1 : i32, i32, i32
  }
  func.func @transform_7(%arg0: i32) -> (i32, i32, i32) {
    %c0_i32 = arith.constant 0 : i32
    %c0_i32_0 = arith.constant 0 : i32
    %c0_i32_1 = arith.constant 0 : i32
    %c0_i32_2 = arith.constant 0 : i32
    return %c0_i32, %c0_i32_0, %c0_i32_1 : i32, i32, i32
  }
  func.func @transform_8(%arg0: i32) -> (i32, i32, i32) {
    %c0_i32 = arith.constant 0 : i32
    %c0_i32_0 = arith.constant 0 : i32
    %c0_i32_1 = arith.constant 0 : i32
    %c0_i32_2 = arith.constant 0 : i32
    return %c0_i32, %c0_i32_0, %c0_i32_1 : i32, i32, i32
  }
  func.func @transform_9(%arg0: i32) -> (i32, i32, i32) {
    %c0_i32 = arith.constant 0 : i32
    %c0_i32_0 = arith.constant 0 : i32
    %c0_i32_1 = arith.constant 0 : i32
    %c0_i32_2 = arith.constant 0 : i32
    return %c0_i32, %c0_i32_0, %c0_i32_1 : i32, i32, i32
  }
  func.func @transform_10(%arg0: i32) -> (i32, i32, i32) {
    %c0_i32 = arith.constant 0 : i32
    %c0_i32_0 = arith.constant 0 : i32
    %c0_i32_1 = arith.constant 0 : i32
    %c0_i32_2 = arith.constant 0 : i32
    return %c0_i32, %c0_i32_0, %c0_i32_1 : i32, i32, i32
  }
  func.func @transform_11(%arg0: i32) -> (i32, i32, i32) {
    %c0_i32 = arith.constant 0 : i32
    %c0_i32_0 = arith.constant 0 : i32
    %c0_i32_1 = arith.constant 0 : i32
    %c0_i32_2 = arith.constant 0 : i32
    return %c0_i32, %c0_i32_0, %c0_i32_1 : i32, i32, i32
  }
  func.func @transform_12(%arg0: i32) -> (i32, i32, i32) {
    %c0_i32 = arith.constant 0 : i32
    %c0_i32_0 = arith.constant 0 : i32
    %c0_i32_1 = arith.constant 0 : i32
    %c0_i32_2 = arith.constant 0 : i32
    return %c0_i32, %c0_i32_0, %c0_i32_1 : i32, i32, i32
  }
  func.func @transform_13(%arg0: i32) -> (i32, i32, i32) {
    %c0_i32 = arith.constant 0 : i32
    %c0_i32_0 = arith.constant 0 : i32
    %c0_i32_1 = arith.constant 0 : i32
    %c0_i32_2 = arith.constant 0 : i32
    return %c0_i32, %c0_i32_0, %c0_i32_1 : i32, i32, i32
  }
  func.func @transform_14(%arg0: i32) -> (i32, i32, i32) {
    %c0_i32 = arith.constant 0 : i32
    %c0_i32_0 = arith.constant 0 : i32
    %c0_i32_1 = arith.constant 0 : i32
    %c0_i32_2 = arith.constant 0 : i32
    return %c0_i32, %c0_i32_0, %c0_i32_1 : i32, i32, i32
  }
  func.func @transform_15(%arg0: i32) -> (i32, i32, i32) {
    %c0_i32 = arith.constant 0 : i32
    %c0_i32_0 = arith.constant 0 : i32
    %c0_i32_1 = arith.constant 0 : i32
    %c0_i32_2 = arith.constant 0 : i32
    return %c0_i32, %c0_i32_0, %c0_i32_1 : i32, i32, i32
  }
  func.func @transform_16(%arg0: i32) -> (i32, i32, i32) {
    %c0_i32 = arith.constant 0 : i32
    %c0_i32_0 = arith.constant 0 : i32
    %c0_i32_1 = arith.constant 0 : i32
    %c0_i32_2 = arith.constant 0 : i32
    return %c0_i32, %c0_i32_0, %c0_i32_1 : i32, i32, i32
  }
  func.func @transform_17(%arg0: i32) -> (i32, i32, i32) {
    %c0_i32 = arith.constant 0 : i32
    %c0_i32_0 = arith.constant 0 : i32
    %c0_i32_1 = arith.constant 0 : i32
    %c0_i32_2 = arith.constant 0 : i32
    return %c0_i32, %c0_i32_0, %c0_i32_1 : i32, i32, i32
  }
  func.func @transform_18(%arg0: i32) -> (i32, i32, i32) {
    %c0_i32 = arith.constant 0 : i32
    %c0_i32_0 = arith.constant 0 : i32
    %c0_i32_1 = arith.constant 0 : i32
    %c0_i32_2 = arith.constant 0 : i32
    return %c0_i32, %c0_i32_0, %c0_i32_1 : i32, i32, i32
  }
  func.func @transform_19(%arg0: i32) -> (i32, i32, i32) {
    %c0_i32 = arith.constant 0 : i32
    %c0_i32_0 = arith.constant 0 : i32
    %c0_i32_1 = arith.constant 0 : i32
    %c0_i32_2 = arith.constant 0 : i32
    return %c0_i32, %c0_i32_0, %c0_i32_1 : i32, i32, i32
  }
  func.func @transform_20(%arg0: i32) -> (i32, i32, i32) {
    %c0_i32 = arith.constant 0 : i32
    %c0_i32_0 = arith.constant 0 : i32
    %c0_i32_1 = arith.constant 0 : i32
    %c0_i32_2 = arith.constant 0 : i32
    return %c0_i32, %c0_i32_0, %c0_i32_1 : i32, i32, i32
  }
  func.func @transform_21(%arg0: i32) -> (i32, i32, i32) {
    %c0_i32 = arith.constant 0 : i32
    %c0_i32_0 = arith.constant 0 : i32
    %c0_i32_1 = arith.constant 0 : i32
    %c0_i32_2 = arith.constant 0 : i32
    return %c0_i32, %c0_i32_0, %c0_i32_1 : i32, i32, i32
  }
  func.func @transform_22(%arg0: i32) -> (i32, i32) {
    %c0_i32 = arith.constant 0 : i32
    %c0_i32_0 = arith.constant 0 : i32
    %c0_i32_1 = arith.constant 0 : i32
    return %c0_i32, %c0_i32_0 : i32, i32
  }
  func.func @transform_23(%arg0: i32) -> (i32, i32) {
    %c0_i32 = arith.constant 0 : i32
    %c0_i32_0 = arith.constant 0 : i32
    %c0_i32_1 = arith.constant 0 : i32
    return %c0_i32, %c0_i32_0 : i32, i32
  }
  func.func @transform_24(%arg0: i32) -> (i32, i32) {
    %c0_i32 = arith.constant 0 : i32
    %c0_i32_0 = arith.constant 0 : i32
    %c0_i32_1 = arith.constant 0 : i32
    return %c0_i32, %c0_i32_0 : i32, i32
  }
  func.func @transform_25(%arg0: i32) -> (i32, i32) {
    %c0_i32 = arith.constant 0 : i32
    %c0_i32_0 = arith.constant 0 : i32
    %c0_i32_1 = arith.constant 0 : i32
    return %c0_i32, %c0_i32_0 : i32, i32
  }
  func.func @transform_26(%arg0: i32) -> (i32, i32, i32) {
    %c0_i32 = arith.constant 0 : i32
    %c0_i32_0 = arith.constant 0 : i32
    %c0_i32_1 = arith.constant 0 : i32
    return %arg0, %c0_i32, %c0_i32_0 : i32, i32, i32
  }
}

</mosaic_0001>

<llo_original>
// kernel: tpu_custom_call.1
$region0: #{tpu_custom_call.1}
  #allocation0 [shape = 'u32[]', space=smem, size = 0x4, offset = 0x4, fixed_abs, tag = 'smem constant byte address 0x4 - core index']
  #allocation1 [shape = 'u32[72,128]{1,0:T(1,128)}', space=vmem, size = 0x9000, scoped, tag = 'internal scratch']
  #allocation2 [shape = 'f32[1,1]{1,0:T(1,128)S(1)}', space=vmem, size = 0x200, scoped, tag = 'scoped memory for tpu_custom_call.1']
  %s0 = inlined_call_operand.vmem [shape: f32[2,8,32], index: 0, kind: input, shape index: {}]
  %s1 = inlined_call_operand.vmem [shape: f32[2,6,16], index: 1, kind: input, shape index: {}]
  %s2 = inlined_call_operand.vmem [shape: bf16[2,32,32], index: 2, kind: input, shape index: {}]
  %s3 = inlined_call_operand.vmem [shape: f32[2,1,32], index: 3, kind: input, shape index: {}]
  %s4 = inlined_call_operand.hbm [shape: bf16[2,16,32], index: 4, kind: input, shape index: {}]
  %s5 = inlined_call_operand.vmem [shape: f32[2,1,32], index: 5, kind: input, shape index: {}]
  %s6 = inlined_call_operand.hbm [shape: bf16[2,16,32], index: 6, kind: input, shape index: {}]
  %s7 = inlined_call_operand.vmem [shape: f32[2,1,32], index: 7, kind: input, shape index: {}]
  %s8 = inlined_call_operand.vmem [shape: bf16[2,32,32], index: 8, kind: input, shape index: {}]
  %s9 = inlined_call_operand.vmem [shape: f32[2,1,32], index: 9, kind: input, shape index: {}]
  %s10 = inlined_call_operand.hbm [shape: f32[2,1,32], index: 10, kind: input, shape index: {}]
  %s11 = inlined_call_operand.hbm [shape: f32[2,1,32], index: 11, kind: input, shape index: {}]
  %s12 = inlined_call_operand.vmem [shape: bf16[2,32,64], index: 12, kind: input, shape index: {}]
  %s13 = inlined_call_operand.vmem [shape: bf16[2,32,64], index: 13, kind: input, shape index: {}]
  %s14 = inlined_call_operand.vmem [shape: bf16[2,32,64], index: 14, kind: input, shape index: {}]
  %s15 = inlined_call_operand.vmem [shape: bf16[2,64,32], index: 15, kind: input, shape index: {}]
  %s16 = inlined_call_operand.hbm [shape: f32[2,1,32], index: 16, kind: input, shape index: {}]
  %s17 = inlined_call_operand.hbm [shape: f32[2,1,32], index: 17, kind: input, shape index: {}]
  %s18 = inlined_call_operand.vmem [shape: bf16[2,32,256], index: 18, kind: input, shape index: {}]
  %s19 = inlined_call_operand.vmem [shape: f32[2,1,256], index: 19, kind: input, shape index: {}]
  %s20 = inlined_call_operand.vmem [shape: bf16[2,128,32], index: 20, kind: input, shape index: {}]
  %s21 = inlined_call_operand.vmem [shape: f32[2,1,32], index: 21, kind: input, shape index: {}]
  %s22 = inlined_call_operand.vmem [shape: f32[1,32], index: 22, kind: input, shape index: {}]
  %s23 = inlined_call_operand.vmem [shape: f32[1,32], index: 23, kind: input, shape index: {}]
  %s24 = inlined_call_operand.vmem [shape: bf16[32,1], index: 24, kind: input, shape index: {}]
  %s25 = inlined_call_operand.<no memory space> [shape: f32[1,1], index: 25, kind: input, shape index: {}]
  %s26 = inlined_call_operand.vmem [shape: f32[2,1,1], index: 26, kind: output, shape index: {}]
  %s27 = sld [smem:[#allocation0]]
  $region138: #{tpu_custom_call.1} parent=0
    _
  %s29 = ssub.s32 1, %s27
  %s30 = scalar_select 0, %s29, %s27
  %v31 = vstv %s25
  %32 = vst [vmem:[#allocation2] sm:$0x1] %v31
  $region1: #{tpu_custom_call.1} parent=0
    #allocation3 [shape = 'u8[8192]{0}', space=vmem, size = 0x2000, scoped, tag = 'input window, operand 4, single buffered']
    #allocation4 [shape = 's32[1]{0}', space=sflag, size = 0x4, scoped, tag = 'scoped memory for tpu_custom_call.1']
    #allocation5 [shape = 'u8[8192]{0}', space=vmem, size = 0x2000, scoped, tag = 'input window, operand 6, single buffered']
    #allocation6 [shape = 's32[1]{0}', space=sflag, size = 0x4, scoped, tag = 'scoped memory for tpu_custom_call.1']
    #allocation7 [shape = 'u8[1024]{0}', space=vmem, size = 0x400, scoped, tag = 'input window, operand 10, single buffered']
    #allocation8 [shape = 'u8[1024]{0}', space=vmem, size = 0x400, scoped, tag = 'input window, operand 11, single buffered']
    #allocation9 [shape = 's32[1]{0}', space=sflag, size = 0x4, scoped, tag = 'scoped memory for tpu_custom_call.1']
    #allocation10 [shape = 'u8[1024]{0}', space=vmem, size = 0x400, scoped, tag = 'input window, operand 16, single buffered']
    #allocation11 [shape = 'u8[1024]{0}', space=vmem, size = 0x400, scoped, tag = 'input window, operand 17, single buffered']
    #allocation12 [shape = 's32[1]{0}', space=sflag, size = 0x4, scoped, tag = 'scoped memory for tpu_custom_call.1']
    %33 = vsyncpa [#allocation4], 0
    %34 = vsyncpa [#allocation6], 0
    %35 = vsyncpa [#allocation9], 0
    %36 = vsyncpa [#allocation12], 0
    // Predicated region
    $region2: #{tpu_custom_call.1} parent=1 // pred_check
      _
    $region3: #{tpu_custom_call.1} parent=1 // pred_check_branch
      %38 = sbr.rel (0) target = $region5
    $region4: #{tpu_custom_call.1} parent=1 // pred_region
      _
    $region5: #{tpu_custom_call.1} parent=1 // pred_fallthru
      _
    // Predicated region
    $region6: #{tpu_custom_call.1} parent=1 // pred_check
      _
    $region7: #{tpu_custom_call.1} parent=1 // pred_check_branch
      %40 = sbr.rel (0) target = $region9
    $region8: #{tpu_custom_call.1} parent=1 // pred_region
      _
    $region9: #{tpu_custom_call.1} parent=1 // pred_fallthru
      _
    // Predicated region
    $region10: #{tpu_custom_call.1} parent=1 // pred_check
      _
    $region11: #{tpu_custom_call.1} parent=1 // pred_check_branch
      %42 = sbr.rel (0) target = $region13
    $region12: #{tpu_custom_call.1} parent=1 // pred_region
      _
    $region13: #{tpu_custom_call.1} parent=1 // pred_fallthru
      _
    // Predicated region
    $region14: #{tpu_custom_call.1} parent=1 // pred_check
      _
    $region15: #{tpu_custom_call.1} parent=1 // pred_check_branch
      %44 = sbr.rel (0) target = $region17
    $region16: #{tpu_custom_call.1} parent=1 // pred_region
      _
    $region17: #{tpu_custom_call.1} parent=1 // pred_fallthru
      _
    // Predicated region
    $region18: #{tpu_custom_call.1} parent=1 // pred_check
      _
    $region19: #{tpu_custom_call.1} parent=1 // pred_check_branch
      %46 = sbr.rel (0) target = $region21
    $region20: #{tpu_custom_call.1} parent=1 // pred_region
      %48 = vsyncadd [#allocation4], 0
      %s49 = sshll.u32 %s4, 4
      %s50 = int_to_ptr.hbm [resolvable:$true] %s49
      %s51 = sshll.u32 [#allocation3], 4
      %s52 = int_to_ptr.vmem [resolvable:$true] %s51
      %57 = dma.hbm_to_vmem [thread:$0]  %s50, 256, %s52, [#allocation4], 64, 64, 4
    $region21: #{tpu_custom_call.1} parent=1 // pred_fallthru
      _
    // Predicated region
    $region22: #{tpu_custom_call.1} parent=1 // pred_check
      _
    $region23: #{tpu_custom_call.1} parent=1 // pred_check_branch
      %59 = sbr.rel (0) target = $region25
    $region24: #{tpu_custom_call.1} parent=1 // pred_region
      _
    $region25: #{tpu_custom_call.1} parent=1 // pred_fallthru
      _
    // Predicated region
    $region26: #{tpu_custom_call.1} parent=1 // pred_check
      _
    $region27: #{tpu_custom_call.1} parent=1 // pred_check_branch
      %61 = sbr.rel (0) target = $region29
    $region28: #{tpu_custom_call.1} parent=1 // pred_region
      %63 = vsyncadd [#allocation6], 0
      %s64 = sshll.u32 %s6, 4
      %s65 = int_to_ptr.hbm [resolvable:$true] %s64
      %s66 = sshll.u32 [#allocation5], 4
      %s67 = int_to_ptr.vmem [resolvable:$true] %s66
      %72 = dma.hbm_to_vmem [thread:$0]  %s65, 256, %s67, [#allocation6], 64, 64, 4
    $region29: #{tpu_custom_call.1} parent=1 // pred_fallthru
      _
    // Predicated region
    $region30: #{tpu_custom_call.1} parent=1 // pred_check
      _
    $region31: #{tpu_custom_call.1} parent=1 // pred_check_branch
      %74 = sbr.rel (0) target = $region33
    $region32: #{tpu_custom_call.1} parent=1 // pred_region
      _
    $region33: #{tpu_custom_call.1} parent=1 // pred_fallthru
      _
    // Predicated region
    $region34: #{tpu_custom_call.1} parent=1 // pred_check
      _
    $region35: #{tpu_custom_call.1} parent=1 // pred_check_branch
      %76 = sbr.rel (0) target = $region37
    $region36: #{tpu_custom_call.1} parent=1 // pred_region
      _
    $region37: #{tpu_custom_call.1} parent=1 // pred_fallthru
      _
    // Predicated region
    $region38: #{tpu_custom_call.1} parent=1 // pred_check
      _
    $region39: #{tpu_custom_call.1} parent=1 // pred_check_branch
      %78 = sbr.rel (0) target = $region41
    $region40: #{tpu_custom_call.1} parent=1 // pred_region
      _
    $region41: #{tpu_custom_call.1} parent=1 // pred_fallthru
      _
    // Predicated region
    $region42: #{tpu_custom_call.1} parent=1 // pred_check
      _
    $region43: #{tpu_custom_call.1} parent=1 // pred_check_branch
      %80 = sbr.rel (0) target = $region45
    $region44: #{tpu_custom_call.1} parent=1 // pred_region
      %82 = vsyncadd [#allocation6], 0
      %s83 = sshll.u32 %s10, 4
      %s84 = int_to_ptr.hbm [resolvable:$true] %s83
      %s85 = sshll.u32 [#allocation7], 4
      %s86 = int_to_ptr.vmem [resolvable:$true] %s85
      %91 = dma.hbm_to_vmem [thread:$0]  %s84, 32, %s86, [#allocation6], 16, 16, 1
    $region45: #{tpu_custom_call.1} parent=1 // pred_fallthru
      _
    // Predicated region
    $region46: #{tpu_custom_call.1} parent=1 // pred_check
      _
    $region47: #{tpu_custom_call.1} parent=1 // pred_check_branch
      %93 = sbr.rel (0) target = $region49
    $region48: #{tpu_custom_call.1} parent=1 // pred_region
      %95 = vsyncadd [#allocation9], 0
      %s96 = sshll.u32 %s11, 4
      %s97 = int_to_ptr.hbm [resolvable:$true] %s96
      %s98 = sshll.u32 [#allocation8], 4
      %s99 = int_to_ptr.vmem [resolvable:$true] %s98
      %104 = dma.hbm_to_vmem [thread:$0]  %s97, 32, %s99, [#allocation9], 16, 16, 1
    $region49: #{tpu_custom_call.1} parent=1 // pred_fallthru
      _
    // Predicated region
    $region50: #{tpu_custom_call.1} parent=1 // pred_check
      _
    $region51: #{tpu_custom_call.1} parent=1 // pred_check_branch
      %106 = sbr.rel (0) target = $region53
    $region52: #{tpu_custom_call.1} parent=1 // pred_region
      _
    $region53: #{tpu_custom_call.1} parent=1 // pred_fallthru
      _
    // Predicated region
    $region54: #{tpu_custom_call.1} parent=1 // pred_check
      _
    $region55: #{tpu_custom_call.1} parent=1 // pred_check_branch
      %108 = sbr.rel (0) target = $region57
    $region56: #{tpu_custom_call.1} parent=1 // pred_region
      _
    $region57: #{tpu_custom_call.1} parent=1 // pred_fallthru
      _
    // Predicated region
    $region58: #{tpu_custom_call.1} parent=1 // pred_check
      _
    $region59: #{tpu_custom_call.1} parent=1 // pred_check_branch
      %110 = sbr.rel (0) target = $region61
    $region60: #{tpu_custom_call.1} parent=1 // pred_region
      _
    $region61: #{tpu_custom_call.1} parent=1 // pred_fallthru
      _
    // Predicated region
    $region62: #{tpu_custom_call.1} parent=1 // pred_check
      _
    $region63: #{tpu_custom_call.1} parent=1 // pred_check_branch
      %112 = sbr.rel (0) target = $region65
    $region64: #{tpu_custom_call.1} parent=1 // pred_region
      _
    $region65: #{tpu_custom_call.1} parent=1 // pred_fallthru
      _
    // Predicated region
    $region66: #{tpu_custom_call.1} parent=1 // pred_check
      _
    $region67: #{tpu_custom_call.1} parent=1 // pred_check_branch
      %114 = sbr.rel (0) target = $region69
    $region68: #{tpu_custom_call.1} parent=1 // pred_region
      %116 = vsyncadd [#allocation9], 0
      %s117 = sshll.u32 %s16, 4
      %s118 = int_to_ptr.hbm [resolvable:$true] %s117
      %s119 = sshll.u32 [#allocation10], 4
      %s120 = int_to_ptr.vmem [resolvable:$true] %s119
      %125 = dma.hbm_to_vmem [thread:$0]  %s118, 32, %s120, [#allocation9], 16, 16, 1
    $region69: #{tpu_custom_call.1} parent=1 // pred_fallthru
      _
    // Predicated region
    $region70: #{tpu_custom_call.1} parent=1 // pred_check
      _
    $region71: #{tpu_custom_call.1} parent=1 // pred_check_branch
      %127 = sbr.rel (0) target = $region73
    $region72: #{tpu_custom_call.1} parent=1 // pred_region
      %129 = vsyncadd [#allocation12], 0
      %s130 = sshll.u32 %s17, 4
      %s131 = int_to_ptr.hbm [resolvable:$true] %s130
      %s132 = sshll.u32 [#allocation11], 4
      %s133 = int_to_ptr.vmem [resolvable:$true] %s132
      %138 = dma.hbm_to_vmem [thread:$0]  %s131, 32, %s133, [#allocation12], 16, 16, 1
    $region73: #{tpu_custom_call.1} parent=1 // pred_fallthru
      _
    // Predicated region
    $region74: #{tpu_custom_call.1} parent=1 // pred_check
      _
    $region75: #{tpu_custom_call.1} parent=1 // pred_check_branch
      %140 = sbr.rel (0) target = $region77
    $region76: #{tpu_custom_call.1} parent=1 // pred_region
      _
    $region77: #{tpu_custom_call.1} parent=1 // pred_fallthru
      _
    // Predicated region
    $region78: #{tpu_custom_call.1} parent=1 // pred_check
      _
    $region79: #{tpu_custom_call.1} parent=1 // pred_check_branch
      %142 = sbr.rel (0) target = $region81
    $region80: #{tpu_custom_call.1} parent=1 // pred_region
      _
    $region81: #{tpu_custom_call.1} parent=1 // pred_fallthru
      _
    // Predicated region
    $region82: #{tpu_custom_call.1} parent=1 // pred_check
      _
    $region83: #{tpu_custom_call.1} parent=1 // pred_check_branch
      %144 = sbr.rel (0) target = $region85
    $region84: #{tpu_custom_call.1} parent=1 // pred_region
      _
    $region85: #{tpu_custom_call.1} parent=1 // pred_fallthru
      _
    // Predicated region
    $region86: #{tpu_custom_call.1} parent=1 // pred_check
      _
    $region87: #{tpu_custom_call.1} parent=1 // pred_check_branch
      %146 = sbr.rel (0) target = $region89
    $region88: #{tpu_custom_call.1} parent=1 // pred_region
      _
    $region89: #{tpu_custom_call.1} parent=1 // pred_fallthru
      _
    // Predicated region
    $region90: #{tpu_custom_call.1} parent=1 // pred_check
      _
    $region91: #{tpu_custom_call.1} parent=1 // pred_check_branch
      %148 = sbr.rel (0) target = $region93
    $region92: #{tpu_custom_call.1} parent=1 // pred_region
      _
    $region93: #{tpu_custom_call.1} parent=1 // pred_fallthru
      _
    // Predicated region
    $region94: #{tpu_custom_call.1} parent=1 // pred_check
      _
    $region95: #{tpu_custom_call.1} parent=1 // pred_check_branch
      %150 = sbr.rel (0) target = $region97
    $region96: #{tpu_custom_call.1} parent=1 // pred_region
      _
    $region97: #{tpu_custom_call.1} parent=1 // pred_fallthru
      _
    // Predicated region
    $region98: #{tpu_custom_call.1} parent=1 // pred_check
      _
    $region99: #{tpu_custom_call.1} parent=1 // pred_check_branch
      %152 = sbr.rel (0) target = $region101
    $region100: #{tpu_custom_call.1} parent=1 // pred_region
      _
    $region101: #{tpu_custom_call.1} parent=1 // pred_fallthru
      _
    // Predicated region
    $region102: #{tpu_custom_call.1} parent=1 // pred_check
      _
    $region103: #{tpu_custom_call.1} parent=1 // pred_check_branch
      %154 = sbr.rel (0) target = $region105
    $region104: #{tpu_custom_call.1} parent=1 // pred_region
      _
    $region105: #{tpu_custom_call.1} parent=1 // pred_fallthru
      _
    // Predicated region
    $region106: #{tpu_custom_call.1} parent=1 // pred_check
      _
    $region107: #{tpu_custom_call.1} parent=1 // pred_check_branch
      %156 = sbr.rel (0) target = $region109
    $region108: #{tpu_custom_call.1} parent=1 // pred_region
      %158 = dma.done [#allocation4], 256
    $region109: #{tpu_custom_call.1} parent=1 // pred_fallthru
      _
    // Predicated region
    $region110: #{tpu_custom_call.1} parent=1 // pred_check
      _
    $region111: #{tpu_custom_call.1} parent=1 // pred_check_branch
      %160 = sbr.rel (0) target = $region113
    $region112: #{tpu_custom_call.1} parent=1 // pred_region
      %162 = dma.done [#allocation6], 256
    $region113: #{tpu_custom_call.1} parent=1 // pred_fallthru
      _
    // Predicated region
    $region114: #{tpu_custom_call.1} parent=1 // pred_check
      _
    $region115: #{tpu_custom_call.1} parent=1 // pred_check_branch
      %164 = sbr.rel (0) target = $region117
    $region116: #{tpu_custom_call.1} parent=1 // pred_region
      %166 = dma.done [#allocation6], 32
    $region117: #{tpu_custom_call.1} parent=1 // pred_fallthru
      _
    // Predicated region
    $region118: #{tpu_custom_call.1} parent=1 // pred_check
      _
    $region119: #{tpu_custom_call.1} parent=1 // pred_check_branch
      %168 = sbr.rel (0) target = $region121
    $region120: #{tpu_custom_call.1} parent=1 // pred_region
      %170 = dma.done [#allocation9], 32
    $region121: #{tpu_custom_call.1} parent=1 // pred_fallthru
      _
    // Predicated region
    $region122: #{tpu_custom_call.1} parent=1 // pred_check
      _
    $region123: #{tpu_custom_call.1} parent=1 // pred_check_branch
      %172 = sbr.rel (0) target = $region125
    $region124: #{tpu_custom_call.1} parent=1 // pred_region
      %174 = dma.done [#allocation9], 32
    $region125: #{tpu_custom_call.1} parent=1 // pred_fallthru
      _
    // Predicated region
    $region126: #{tpu_custom_call.1} parent=1 // pred_check
      _
    $region127: #{tpu_custom_call.1} parent=1 // pred_check_branch
      %176 = sbr.rel (0) target = $region129
    $region128: #{tpu_custom_call.1} parent=1 // pred_region
      %178 = dma.done [#allocation12], 32
    $region129: #{tpu_custom_call.1} parent=1 // pred_fallthru
      _
    %v180 = vld [vmem:[%s0] sm:$0xff]
    %v181 = vld [vmem:[%s0 + $0x8] sm:$0xff]
    %v182 = vld [vmem:[%s1] sm:$0x3f]
    %v183 = vld [vmem:[%s1 + $0x8] sm:$0x3f]
    %v186 = vrot.slane %v182, 2
    %v187 = vrot.slane %v182, 4
    %v188 = vrot.slane %v183, 2
    %v189 = vrot.slane %v183, 4
    %190 = vst [vmem:[#allocation1] ss:$4 sm:$0xff] %v182
    %s191 = scalar_lea.vmem [#allocation1], 1
    %192 = vst [vmem:[%s191] ss:$4 sm:$0xff] %v186
    %s193 = scalar_lea.vmem [#allocation1], 2
    %194 = vst [vmem:[%s193] ss:$4 sm:$0xff] %v187
    %s195 = scalar_lea.vmem [#allocation1], 3
    %196 = vst [vmem:[%s195] ss:$4 sm:$0xff] %v183
    %s197 = scalar_lea.vmem [#allocation1], 32
    %198 = vst [vmem:[%s197] ss:$4 sm:$0xff] %v188
    %s199 = scalar_lea.vmem [#allocation1], 33
    %200 = vst [vmem:[%s199] ss:$4 sm:$0xff] %v189
    %v201 = vld.sshfl [vmem:[#allocation1] sm:$0xff pattern:$0x73625140]
    %v202 = vld.sshfl [vmem:[#allocation1 + $0x20] sm:$0xff pattern:$0x73625140]
    %v205 = vpack.c.bf16 %v202, %v201
    %v206 = vpack.c.bf16 %v181, %v180
    %v207 = vld [vmem:[%s2] sm:$0xf]
    %v208 = vld [vmem:[%s2 + $0x4] sm:$0xf]
    %v209 = vld [vmem:[%s2 + $0x8] sm:$0xf]
    %v210 = vld [vmem:[%s2 + $0xc] sm:$0xf]
    %v211 = vld [vmem:[%s3] sm:$0x1]
    %v213 = vperm.slane %v211, 0
    %v219 = vunpack.c.l.b16 %v207
    %v220 = vunpack.c.l.b16 %v208
    %v221 = vunpack.c.l.b16 %v209
    %v222 = vunpack.c.l.b16 %v210
    %v223 = vpack.c.b16 %v220, %v219
    %v224 = vpack.c.b16 %v222, %v221
    %vm227 = vcmask 261120
    %v229 = vsel %vm227, %v206, 0
    %231 = vmatpush.bf16.msra.mxu0 0
    %232 = vmatpush.bf16.msra.mxu0 0
    %233 = vmatpush.bf16.msra.mxu0 0
    %234 = vmatpush.bf16.msra.mxu0 0
    %235 = vmatpush.bf16.msra.mxu0 0
    %236 = vmatpush.bf16.msra.mxu0 0
    %237 = vmatpush.bf16.msra.mxu0 %v224
    %238 = vmatpush.bf16.msra.mxu0 %v223
    %239 = vmatmul.bf16.gmra.mxu0 %v229
    %v240 = vpop.f32.mrf.mxu0
    %v241 = vadd.f32 %v213, %v240
    %v242 = vpop.f32.mrf.mxu0
    %v243 = vadd.f32 %v213, %v242
    %244 = vdwg.mxu0
    %v245 = vld [vmem:[#allocation3] sm:$0xf]
    %v246 = vld [vmem:[#allocation3 + $0x4] sm:$0xf]
    %v247 = vld [vmem:[%s5] sm:$0x1]
    %v249 = vperm.slane %v247, 0
    %v253 = vunpack.c.l.b16 %v245
    %v254 = vunpack.c.l.b16 %v246
    %v255 = vpack.c.b16 %v254, %v253
    %vm257 = vcmask 130048
    %v259 = vsel %vm257, %v205, 0
    %261 = vmatpush.bf16.msra.mxu0 0
    %262 = vmatpush.bf16.msra.mxu0 0
    %263 = vmatpush.bf16.msra.mxu0 0
    %264 = vmatpush.bf16.msra.mxu0 0
    %265 = vmatpush.bf16.msra.mxu0 0
    %266 = vmatpush.bf16.msra.mxu0 0
    %267 = vmatpush.bf16.msra.mxu0 0
    %268 = vmatpush.bf16.msra.mxu0 %v255
    %269 = vmatmul.bf16.gmra.mxu0 %v259
    %v270 = vpop.f32.mrf.mxu0
    %v271 = vadd.f32 %v249, %v270
    %v272 = vpop.f32.mrf.mxu0
    %v273 = vadd.f32 %v249, %v272
    %274 = vdwg.mxu0
    %v275 = vld [vmem:[#allocation5] sm:$0xf]
    %v276 = vld [vmem:[#allocation5 + $0x4] sm:$0xf]
    %v277 = vld [vmem:[%s7] sm:$0x1]
    %v279 = vperm.slane %v277, 0
    %v283 = vunpack.c.l.b16 %v275
    %v284 = vunpack.c.l.b16 %v276
    %v285 = vpack.c.b16 %v284, %v283
    %287 = vmatpush.bf16.msra.mxu0 0
    %288 = vmatpush.bf16.msra.mxu0 0
    %289 = vmatpush.bf16.msra.mxu0 0
    %290 = vmatpush.bf16.msra.mxu0 0
    %291 = vmatpush.bf16.msra.mxu0 0
    %292 = vmatpush.bf16.msra.mxu0 0
    %293 = vmatpush.bf16.msra.mxu0 0
    %294 = vmatpush.bf16.msra.mxu0 %v285
    %295 = vmatmul.bf16.gmra.mxu0 %v259
    %v296 = vpop.f32.mrf.mxu0
    %v297 = vadd.f32 %v279, %v296
    %v298 = vpop.f32.mrf.mxu0
    %v299 = vadd.f32 %v279, %v298
    %300 = vdwg.mxu0
    %v303 = vrot.slane %v271, 2
    %v304 = vrot.slane %v271, 4
    %v305 = vrot.slane %v271, 6
    %v306 = vrot.slane %v273, 2
    %v309 = vrot.slane %v297, 2
    %v310 = vrot.slane %v297, 4
    %v311 = vrot.slane %v297, 6
    %v312 = vrot.slane %v299, 2
    %v313 = vpack.c.bf16 %v241, %v241
    %v314 = vpack.c.bf16 %v243, %v243
    %315 = vst [vmem:[#allocation1] ss:$4 sm:$0xff] %v271
    %s316 = scalar_lea.vmem [#allocation1], 1
    %317 = vst [vmem:[%s316] ss:$4 sm:$0xff] %v303
    %s318 = scalar_lea.vmem [#allocation1], 2
    %319 = vst [vmem:[%s318] ss:$4 sm:$0xff] %v304
    %v320 = vld.sshfl [vmem:[#allocation1] sm:$0xff pattern:$0x73625140]
    %s321 = scalar_lea.vmem [#allocation1], 32
    %322 = vst [vmem:[%s321] ss:$4 sm:$0xff] %v305
    %s323 = scalar_lea.vmem [#allocation1], 33
    %324 = vst [vmem:[%s323] ss:$4 sm:$0xff] %v273
    %s325 = scalar_lea.vmem [#allocation1], 34
    %326 = vst [vmem:[%s325] ss:$4 sm:$0xff] %v306
    %v327 = vld.sshfl [vmem:[#allocation1 + $0x20] sm:$0xff pattern:$0x73625140]
    %v330 = vpack.c.bf16 %v320, %v320
    %v331 = vpack.c.bf16 %v327, %v327
    %332 = vst [vmem:[#allocation1] ss:$4 sm:$0xff] %v297
    %s333 = scalar_lea.vmem [#allocation1], 1
    %334 = vst [vmem:[%s333] ss:$4 sm:$0xff] %v309
    %s335 = scalar_lea.vmem [#allocation1], 2
    %336 = vst [vmem:[%s335] ss:$4 sm:$0xff] %v310
    %v337 = vld.sshfl [vmem:[#allocation1] sm:$0xff pattern:$0x73625140]
    %s338 = scalar_lea.vmem [#allocation1], 32
    %339 = vst [vmem:[%s338] ss:$4 sm:$0xff] %v311
    %s340 = scalar_lea.vmem [#allocation1], 33
    %341 = vst [vmem:[%s340] ss:$4 sm:$0xff] %v299
    %s342 = scalar_lea.vmem [#allocation1], 34
    %343 = vst [vmem:[%s342] ss:$4 sm:$0xff] %v312
    %v344 = vld.sshfl [vmem:[#allocation1 + $0x20] sm:$0xff pattern:$0x73625140]
    %v347 = vpack.c.bf16 %v337, %v337
    %v348 = vpack.c.bf16 %v344, %v344
    %vm349 = vcmask 64512
    %v351 = vsel %vm349, %v313, 0
    %v354 = vsel %vm349, %v330, 0
    %356 = vmatpush.bf16.xpose.msra.mxu0 0
    %357 = vmatpush.bf16.xpose.msra.mxu0 0
    %358 = vmatpush.bf16.xpose.msra.mxu0 0
    %359 = vmatpush.bf16.xpose.msra.mxu0 0
    %360 = vmatpush.bf16.xpose.msra.mxu0 0
    %361 = vmatpush.bf16.xpose.msra.mxu0 0
    %362 = vmatpush.bf16.xpose.msra.mxu0 0
    %363 = vmatpush.bf16.xpose.msra.mxu0 %v354
    %364 = vmatmul.bf16.gmra.mxu0 %v351
    %v365 = vpop.f32.mrf.mxu0
    %v366 = vadd.f32 0.0, %v365
    %v367 = vpop.f32.mrf.mxu0
    %368 = vdwg.mxu0
    %v370 = vsel %vm349, %v314, 0
    %v373 = vsel %vm349, %v331, 0
    %375 = vmatpush.bf16.xpose.msra.mxu0 0
    %376 = vmatpush.bf16.xpose.msra.mxu0 0
    %377 = vmatpush.bf16.xpose.msra.mxu0 0
    %378 = vmatpush.bf16.xpose.msra.mxu0 0
    %379 = vmatpush.bf16.xpose.msra.mxu0 0
    %380 = vmatpush.bf16.xpose.msra.mxu0 0
    %381 = vmatpush.bf16.xpose.msra.mxu0 0
    %382 = vmatpush.bf16.xpose.msra.mxu0 %v373
    %383 = vmatmul.bf16.gmra.mxu0 %v370
    %v384 = vpop.f32.mrf.mxu0
    %v385 = vadd.f32 0.0, %v384
    %v386 = vpop.f32.mrf.mxu0
    %387 = vdwg.mxu0
    %vm388 = vcmask 48128
    %v389 = vsel %vm388, %v366, -inf
    %390 = vmax.xlane.f32.xlu0 %v389
    %v391 = vpop.xlane.xlu0 %390
    %v392 = vsel %vm388, %v385, -inf
    %393 = vmax.xlane.f32.xlu0 %v392
    %v394 = vpop.xlane.xlu0 %393
    %v395 = vsub.f32 %v366, %v391
    %v396 = vsub.f32 %v385, %v394
    %v397 = vmul.f32 %v395, 1.442695
    %v398 = vpow.pop %v397
    %v399 = vmul.f32 %v396, 1.442695
    %v400 = vpow.pop %v399
    %v401 = vsel %vm388, %v398, 0.0
    %402 = vadd.xlane.f32.xlu0 %v401
    %v403 = vpop.xlane.xlu0 %402
    %v404 = vsel %vm388, %v400, 0.0
    %405 = vadd.xlane.f32.xlu0 %v404
    %v406 = vpop.xlane.xlu0 %405
    %v407 = vrcp.pop %v403
    %v408 = vrcp.pop %v406
    %v409 = vmul.f32 %v398, %v407
    %v410 = vmul.f32 %v400, %v408
    %v411 = vpack.c.bf16 %v409, %v409
    %v412 = vpack.c.bf16 %v410, %v410
    %v414 = vsel %vm388, %v411, 0
    %vm416 = vcmask 1042432
    %v418 = vsel %vm416, %v347, 0
    %420 = vmatpush.bf16.msra.mxu0 0
    %421 = vmatpush.bf16.msra.mxu0 0
    %422 = vmatpush.bf16.msra.mxu0 0
    %423 = vmatpush.bf16.msra.mxu0 0
    %424 = vmatpush.bf16.msra.mxu0 0
    %425 = vmatpush.bf16.msra.mxu0 0
    %426 = vmatpush.bf16.msra.mxu0 0
    %427 = vmatpush.bf16.msra.mxu0 %v418
    %428 = vmatmul.bf16.gmra.mxu0 %v414
    %v429 = vpop.f32.mrf.mxu0
    %v430 = vadd.f32 0.0, %v429
    %v431 = vpop.f32.mrf.mxu0
    %432 = vdwg.mxu0
    %v434 = vsel %vm388, %v412, 0
    %v437 = vsel %vm416, %v348, 0
    %439 = vmatpush.bf16.msra.mxu0 0
    %440 = vmatpush.bf16.msra.mxu0 0
    %441 = vmatpush.bf16.msra.mxu0 0
    %442 = vmatpush.bf16.msra.mxu0 0
    %443 = vmatpush.bf16.msra.mxu0 0
    %444 = vmatpush.bf16.msra.mxu0 0
    %445 = vmatpush.bf16.msra.mxu0 0
    %446 = vmatpush.bf16.msra.mxu0 %v437
    %447 = vmatmul.bf16.gmra.mxu0 %v434
    %v448 = vpop.f32.mrf.mxu0
    %v449 = vadd.f32 0.0, %v448
    %v450 = vpop.f32.mrf.mxu0
    %451 = vdwg.mxu0
    %452 = vst [vmem:[#allocation1] ss:$4 sm:$0xff] %v271
    %s453 = scalar_lea.vmem [#allocation1], 1
    %454 = vst [vmem:[%s453] ss:$4 sm:$0xff] %v303
    %s455 = scalar_lea.vmem [#allocation1], 2
    %456 = vst [vmem:[%s455] ss:$4 sm:$0xff] %v304
    %v457 = vld.sshfl [vmem:[#allocation1] sm:$0xff pattern:$0x73625140]
    %s458 = scalar_lea.vmem [#allocation1], 32
    %459 = vst [vmem:[%s458] ss:$4 sm:$0xff] %v305
    %s460 = scalar_lea.vmem [#allocation1], 33
    %461 = vst [vmem:[%s460] ss:$4 sm:$0xff] %v273
    %s462 = scalar_lea.vmem [#allocation1], 34
    %463 = vst [vmem:[%s462] ss:$4 sm:$0xff] %v306
    %v464 = vld.sshfl [vmem:[#allocation1 + $0x20] sm:$0xff pattern:$0x73625140]
    %v467 = vpack.c.bf16 %v457, %v457
    %v468 = vpack.c.bf16 %v464, %v464
    %469 = vst [vmem:[#allocation1] ss:$4 sm:$0xff] %v297
    %s470 = scalar_lea.vmem [#allocation1], 1
    %471 = vst [vmem:[%s470] ss:$4 sm:$0xff] %v309
    %s472 = scalar_lea.vmem [#allocation1], 2
    %473 = vst [vmem:[%s472] ss:$4 sm:$0xff] %v310
    %v474 = vld.sshfl [vmem:[#allocation1] sm:$0xff pattern:$0x73625140]
    %s475 = scalar_lea.vmem [#allocation1], 32
    %476 = vst [vmem:[%s475] ss:$4 sm:$0xff] %v311
    %s477 = scalar_lea.vmem [#allocation1], 33
    %478 = vst [vmem:[%s477] ss:$4 sm:$0xff] %v299
    %s479 = scalar_lea.vmem [#allocation1], 34
    %480 = vst [vmem:[%s479] ss:$4 sm:$0xff] %v312
    %v481 = vld.sshfl [vmem:[#allocation1 + $0x20] sm:$0xff pattern:$0x73625140]
    %v484 = vpack.c.bf16 %v474, %v474
    %v485 = vpack.c.bf16 %v481, %v481
    %v487 = vunpack.c.l.b16 %v313
    %v488 = vpack.c.b16 %v487, %v487
    %489 = vrot.lane.b32.xlu0 %v488, 120
    %v490 = vpop.permute.xlu0 %489
    %v492 = vunpack.c.l.b16 %v467
    %v493 = vpack.c.b16 %v492, %v492
    %494 = vrot.lane.b32.xlu0 %v493, 120
    %v495 = vpop.permute.xlu0 %494
    %v497 = vsel %vm349, %v490, 0
    %v500 = vsel %vm349, %v495, 0
    %502 = vmatpush.bf16.xpose.msra.mxu0 0
    %503 = vmatpush.bf16.xpose.msra.mxu0 0
    %504 = vmatpush.bf16.xpose.msra.mxu0 0
    %505 = vmatpush.bf16.xpose.msra.mxu0 0
    %506 = vmatpush.bf16.xpose.msra.mxu0 0
    %507 = vmatpush.bf16.xpose.msra.mxu0 0
    %508 = vmatpush.bf16.xpose.msra.mxu0 0
    %509 = vmatpush.bf16.xpose.msra.mxu0 %v500
    %510 = vmatmul.bf16.gmra.mxu0 %v497
    %v511 = vpop.f32.mrf.mxu0
    %v512 = vadd.f32 0.0, %v511
    %v513 = vpop.f32.mrf.mxu0
    %514 = vdwg.mxu0
    %v516 = vunpack.c.l.b16 %v314
    %v517 = vpack.c.b16 %v516, %v516
    %518 = vrot.lane.b32.xlu0 %v517, 120
    %v519 = vpop.permute.xlu0 %518
    %v521 = vunpack.c.l.b16 %v468
    %v522 = vpack.c.b16 %v521, %v521
    %523 = vrot.lane.b32.xlu0 %v522, 120
    %v524 = vpop.permute.xlu0 %523
    %v526 = vsel %vm349, %v519, 0
    %v529 = vsel %vm349, %v524, 0
    %531 = vmatpush.bf16.xpose.msra.mxu0 0
    %532 = vmatpush.bf16.xpose.msra.mxu0 0
    %533 = vmatpush.bf16.xpose.msra.mxu0 0
    %534 = vmatpush.bf16.xpose.msra.mxu0 0
    %535 = vmatpush.bf16.xpose.msra.mxu0 0
    %536 = vmatpush.bf16.xpose.msra.mxu0 0
    %537 = vmatpush.bf16.xpose.msra.mxu0 0
    %538 = vmatpush.bf16.xpose.msra.mxu0 %v529
    %539 = vmatmul.bf16.gmra.mxu0 %v526
    %v540 = vpop.f32.mrf.mxu0
    %v541 = vadd.f32 0.0, %v540
    %v542 = vpop.f32.mrf.mxu0
    %543 = vdwg.mxu0
    %v544 = vsel %vm388, %v512, -inf
    %545 = vmax.xlane.f32.xlu0 %v544
    %v546 = vpop.xlane.xlu0 %545
    %v547 = vsel %vm388, %v541, -inf
    %548 = vmax.xlane.f32.xlu0 %v547
    %v549 = vpop.xlane.xlu0 %548
    %v550 = vsub.f32 %v512, %v546
    %v551 = vsub.f32 %v541, %v549
    %v552 = vmul.f32 %v550, 1.442695
    %v553 = vpow.pop %v552
    %v554 = vmul.f32 %v551, 1.442695
    %v555 = vpow.pop %v554
    %v556 = vsel %vm388, %v553, 0.0
    %557 = vadd.xlane.f32.xlu0 %v556
    %v558 = vpop.xlane.xlu0 %557
    %v559 = vsel %vm388, %v555, 0.0
    %560 = vadd.xlane.f32.xlu0 %v559
    %v561 = vpop.xlane.xlu0 %560
    %v562 = vrcp.pop %v558
    %v563 = vrcp.pop %v561
    %v564 = vmul.f32 %v553, %v562
    %v565 = vmul.f32 %v555, %v563
    %v566 = vpack.c.bf16 %v564, %v564
    %v567 = vpack.c.bf16 %v565, %v565
    %v569 = vunpack.c.l.b16 %v484
    %v570 = vpack.c.b16 %v569, %v569
    %571 = vrot.lane.b32.xlu0 %v570, 120
    %v572 = vpop.permute.xlu0 %571
    %v574 = vsel %vm388, %v566, 0
    %v577 = vsel %vm416, %v572, 0
    %579 = vmatpush.bf16.msra.mxu0 0
    %580 = vmatpush.bf16.msra.mxu0 0
    %581 = vmatpush.bf16.msra.mxu0 0
    %582 = vmatpush.bf16.msra.mxu0 0
    %583 = vmatpush.bf16.msra.mxu0 0
    %584 = vmatpush.bf16.msra.mxu0 0
    %585 = vmatpush.bf16.msra.mxu0 0
    %586 = vmatpush.bf16.msra.mxu0 %v577
    %587 = vmatmul.bf16.gmra.mxu0 %v574
    %v588 = vpop.f32.mrf.mxu0
    %v589 = vadd.f32 0.0, %v588
    %v590 = vpop.f32.mrf.mxu0
    %591 = vdwg.mxu0
    %v593 = vunpack.c.l.b16 %v485
    %v594 = vpack.c.b16 %v593, %v593
    %595 = vrot.lane.b32.xlu0 %v594, 120
    %v596 = vpop.permute.xlu0 %595
    %v598 = vsel %vm388, %v567, 0
    %v601 = vsel %vm416, %v596, 0
    %603 = vmatpush.bf16.msra.mxu0 0
    %604 = vmatpush.bf16.msra.mxu0 0
    %605 = vmatpush.bf16.msra.mxu0 0
    %606 = vmatpush.bf16.msra.mxu0 0
    %607 = vmatpush.bf16.msra.mxu0 0
    %608 = vmatpush.bf16.msra.mxu0 0
    %609 = vmatpush.bf16.msra.mxu0 0
    %610 = vmatpush.bf16.msra.mxu0 %v601
    %611 = vmatmul.bf16.gmra.mxu0 %v598
    %v612 = vpop.f32.mrf.mxu0
    %v613 = vadd.f32 0.0, %v612
    %v614 = vpop.f32.mrf.mxu0
    %615 = vdwg.mxu0
    %616 = vst [vmem:[#allocation1] ss:$4 sm:$0xff] %v271
    %s617 = scalar_lea.vmem [#allocation1], 1
    %618 = vst [vmem:[%s617] ss:$4 sm:$0xff] %v303
    %s619 = scalar_lea.vmem [#allocation1], 2
    %620 = vst [vmem:[%s619] ss:$4 sm:$0xff] %v304
    %v621 = vld.sshfl [vmem:[#allocation1] sm:$0xff pattern:$0x73625140]
    %s622 = scalar_lea.vmem [#allocation1], 32
    %623 = vst [vmem:[%s622] ss:$4 sm:$0xff] %v305
    %s624 = scalar_lea.vmem [#allocation1], 33
    %625 = vst [vmem:[%s624] ss:$4 sm:$0xff] %v273
    %s626 = scalar_lea.vmem [#allocation1], 34
    %627 = vst [vmem:[%s626] ss:$4 sm:$0xff] %v306
    %v628 = vld.sshfl [vmem:[#allocation1 + $0x20] sm:$0xff pattern:$0x73625140]
    %v631 = vpack.c.bf16 %v621, %v621
    %v632 = vpack.c.bf16 %v628, %v628
    %633 = vst [vmem:[#allocation1] ss:$4 sm:$0xff] %v297
    %s634 = scalar_lea.vmem [#allocation1], 1
    %635 = vst [vmem:[%s634] ss:$4 sm:$0xff] %v309
    %s636 = scalar_lea.vmem [#allocation1], 2
    %637 = vst [vmem:[%s636] ss:$4 sm:$0xff] %v310
    %v638 = vld.sshfl [vmem:[#allocation1] sm:$0xff pattern:$0x73625140]
    %s639 = scalar_lea.vmem [#allocation1], 32
    %640 = vst [vmem:[%s639] ss:$4 sm:$0xff] %v311
    %s641 = scalar_lea.vmem [#allocation1], 33
    %642 = vst [vmem:[%s641] ss:$4 sm:$0xff] %v299
    %s643 = scalar_lea.vmem [#allocation1], 34
    %644 = vst [vmem:[%s643] ss:$4 sm:$0xff] %v312
    %v645 = vld.sshfl [vmem:[#allocation1 + $0x20] sm:$0xff pattern:$0x73625140]
    %v648 = vpack.c.bf16 %v638, %v638
    %v649 = vpack.c.bf16 %v645, %v645
    %650 = vrot.lane.b32.xlu0 %v488, 112
    %v651 = vpop.permute.xlu0 %650
    %v653 = vunpack.c.l.b16 %v631
    %v654 = vpack.c.b16 %v653, %v653
    %655 = vrot.lane.b32.xlu0 %v654, 112
    %v656 = vpop.permute.xlu0 %655
    %v658 = vsel %vm349, %v651, 0
    %v661 = vsel %vm349, %v656, 0
    %663 = vmatpush.bf16.xpose.msra.mxu0 0
    %664 = vmatpush.bf16.xpose.msra.mxu0 0
    %665 = vmatpush.bf16.xpose.msra.mxu0 0
    %666 = vmatpush.bf16.xpose.msra.mxu0 0
    %667 = vmatpush.bf16.xpose.msra.mxu0 0
    %668 = vmatpush.bf16.xpose.msra.mxu0 0
    %669 = vmatpush.bf16.xpose.msra.mxu0 0
    %670 = vmatpush.bf16.xpose.msra.mxu0 %v661
    %671 = vmatmul.bf16.gmra.mxu0 %v658
    %v672 = vpop.f32.mrf.mxu0
    %v673 = vadd.f32 0.0, %v672
    %v674 = vpop.f32.mrf.mxu0
    %675 = vdwg.mxu0
    %676 = vrot.lane.b32.xlu0 %v517, 112
    %v677 = vpop.permute.xlu0 %676
    %v679 = vunpack.c.l.b16 %v632
    %v680 = vpack.c.b16 %v679, %v679
    %681 = vrot.lane.b32.xlu0 %v680, 112
    %v682 = vpop.permute.xlu0 %681
    %v684 = vsel %vm349, %v677, 0
    %v687 = vsel %vm349, %v682, 0
    %689 = vmatpush.bf16.xpose.msra.mxu0 0
    %690 = vmatpush.bf16.xpose.msra.mxu0 0
    %691 = vmatpush.bf16.xpose.msra.mxu0 0
    %692 = vmatpush.bf16.xpose.msra.mxu0 0
    %693 = vmatpush.bf16.xpose.msra.mxu0 0
    %694 = vmatpush.bf16.xpose.msra.mxu0 0
    %695 = vmatpush.bf16.xpose.msra.mxu0 0
    %696 = vmatpush.bf16.xpose.msra.mxu0 %v687
    %697 = vmatmul.bf16.gmra.mxu0 %v684
    %v698 = vpop.f32.mrf.mxu0
    %v699 = vadd.f32 0.0, %v698
    %v700 = vpop.f32.mrf.mxu0
    %701 = vdwg.mxu0
    %v702 = vsel %vm388, %v673, -inf
    %703 = vmax.xlane.f32.xlu0 %v702
    %v704 = vpop.xlane.xlu0 %703
    %v705 = vsel %vm388, %v699, -inf
    %706 = vmax.xlane.f32.xlu0 %v705
    %v707 = vpop.xlane.xlu0 %706
    %v708 = vsub.f32 %v673, %v704
    %v709 = vsub.f32 %v699, %v707
    %v710 = vmul.f32 %v708, 1.442695
    %v711 = vpow.pop %v710
    %v712 = vmul.f32 %v709, 1.442695
    %v713 = vpow.pop %v712
    %v714 = vsel %vm388, %v711, 0.0
    %715 = vadd.xlane.f32.xlu0 %v714
    %v716 = vpop.xlane.xlu0 %715
    %v717 = vsel %vm388, %v713, 0.0
    %718 = vadd.xlane.f32.xlu0 %v717
    %v719 = vpop.xlane.xlu0 %718
    %v720 = vrcp.pop %v716
    %v721 = vrcp.pop %v719
    %v722 = vmul.f32 %v711, %v720
    %v723 = vmul.f32 %v713, %v721
    %v724 = vpack.c.bf16 %v722, %v722
    %v725 = vpack.c.bf16 %v723, %v723
    %v727 = vunpack.c.l.b16 %v648
    %v728 = vpack.c.b16 %v727, %v727
    %729 = vrot.lane.b32.xlu0 %v728, 112
    %v730 = vpop.permute.xlu0 %729
    %v732 = vsel %vm388, %v724, 0
    %v735 = vsel %vm416, %v730, 0
    %737 = vmatpush.bf16.msra.mxu0 0
    %738 = vmatpush.bf16.msra.mxu0 0
    %739 = vmatpush.bf16.msra.mxu0 0
    %740 = vmatpush.bf16.msra.mxu0 0
    %741 = vmatpush.bf16.msra.mxu0 0
    %742 = vmatpush.bf16.msra.mxu0 0
    %743 = vmatpush.bf16.msra.mxu0 0
    %744 = vmatpush.bf16.msra.mxu0 %v735
    %745 = vmatmul.bf16.gmra.mxu0 %v732
    %v746 = vpop.f32.mrf.mxu0
    %v747 = vadd.f32 0.0, %v746
    %v748 = vpop.f32.mrf.mxu0
    %749 = vdwg.mxu0
    %v751 = vunpack.c.l.b16 %v649
    %v752 = vpack.c.b16 %v751, %v751
    %753 = vrot.lane.b32.xlu0 %v752, 112
    %v754 = vpop.permute.xlu0 %753
    %v756 = vsel %vm388, %v725, 0
    %v759 = vsel %vm416, %v754, 0
    %761 = vmatpush.bf16.msra.mxu0 0
    %762 = vmatpush.bf16.msra.mxu0 0
    %763 = vmatpush.bf16.msra.mxu0 0
    %764 = vmatpush.bf16.msra.mxu0 0
    %765 = vmatpush.bf16.msra.mxu0 0
    %766 = vmatpush.bf16.msra.mxu0 0
    %767 = vmatpush.bf16.msra.mxu0 0
    %768 = vmatpush.bf16.msra.mxu0 %v759
    %769 = vmatmul.bf16.gmra.mxu0 %v756
    %v770 = vpop.f32.mrf.mxu0
    %v771 = vadd.f32 0.0, %v770
    %v772 = vpop.f32.mrf.mxu0
    %773 = vdwg.mxu0
    %774 = vst [vmem:[#allocation1] ss:$4 sm:$0xff] %v271
    %s775 = scalar_lea.vmem [#allocation1], 1
    %776 = vst [vmem:[%s775] ss:$4 sm:$0xff] %v303
    %s777 = scalar_lea.vmem [#allocation1], 2
    %778 = vst [vmem:[%s777] ss:$4 sm:$0xff] %v304
    %v779 = vld.sshfl [vmem:[#allocation1] sm:$0xff pattern:$0x73625140]
    %s780 = scalar_lea.vmem [#allocation1], 32
    %781 = vst [vmem:[%s780] ss:$4 sm:$0xff] %v305
    %s782 = scalar_lea.vmem [#allocation1], 33
    %783 = vst [vmem:[%s782] ss:$4 sm:$0xff] %v273
    %s784 = scalar_lea.vmem [#allocation1], 34
    %785 = vst [vmem:[%s784] ss:$4 sm:$0xff] %v306
    %v786 = vld.sshfl [vmem:[#allocation1 + $0x20] sm:$0xff pattern:$0x73625140]
    %v789 = vpack.c.bf16 %v779, %v779
    %v790 = vpack.c.bf16 %v786, %v786
    %791 = vst [vmem:[#allocation1] ss:$4 sm:$0xff] %v297
    %s792 = scalar_lea.vmem [#allocation1], 1
    %793 = vst [vmem:[%s792] ss:$4 sm:$0xff] %v309
    %s794 = scalar_lea.vmem [#allocation1], 2
    %795 = vst [vmem:[%s794] ss:$4 sm:$0xff] %v310
    %v796 = vld.sshfl [vmem:[#allocation1] sm:$0xff pattern:$0x73625140]
    %s797 = scalar_lea.vmem [#allocation1], 32
    %798 = vst [vmem:[%s797] ss:$4 sm:$0xff] %v311
    %s799 = scalar_lea.vmem [#allocation1], 33
    %800 = vst [vmem:[%s799] ss:$4 sm:$0xff] %v299
    %s801 = scalar_lea.vmem [#allocation1], 34
    %802 = vst [vmem:[%s801] ss:$4 sm:$0xff] %v312
    %v803 = vld.sshfl [vmem:[#allocation1 + $0x20] sm:$0xff pattern:$0x73625140]
    %v806 = vpack.c.bf16 %v796, %v796
    %v807 = vpack.c.bf16 %v803, %v803
    %808 = vrot.lane.b32.xlu0 %v488, 104
    %v809 = vpop.permute.xlu0 %808
    %v811 = vunpack.c.l.b16 %v789
    %v812 = vpack.c.b16 %v811, %v811
    %813 = vrot.lane.b32.xlu0 %v812, 104
    %v814 = vpop.permute.xlu0 %813
    %v816 = vsel %vm349, %v809, 0
    %v819 = vsel %vm349, %v814, 0
    %821 = vmatpush.bf16.xpose.msra.mxu0 0
    %822 = vmatpush.bf16.xpose.msra.mxu0 0
    %823 = vmatpush.bf16.xpose.msra.mxu0 0
    %824 = vmatpush.bf16.xpose.msra.mxu0 0
    %825 = vmatpush.bf16.xpose.msra.mxu0 0
    %826 = vmatpush.bf16.xpose.msra.mxu0 0
    %827 = vmatpush.bf16.xpose.msra.mxu0 0
    %828 = vmatpush.bf16.xpose.msra.mxu0 %v819
    %829 = vmatmul.bf16.gmra.mxu0 %v816
    %v830 = vpop.f32.mrf.mxu0
    %v831 = vadd.f32 0.0, %v830
    %v832 = vpop.f32.mrf.mxu0
    %833 = vdwg.mxu0
    %834 = vrot.lane.b32.xlu0 %v517, 104
    %v835 = vpop.permute.xlu0 %834
    %v837 = vunpack.c.l.b16 %v790
    %v838 = vpack.c.b16 %v837, %v837
    %839 = vrot.lane.b32.xlu0 %v838, 104
    %v840 = vpop.permute.xlu0 %839
    %v842 = vsel %vm349, %v835, 0
    %v845 = vsel %vm349, %v840, 0
    %847 = vmatpush.bf16.xpose.msra.mxu0 0
    %848 = vmatpush.bf16.xpose.msra.mxu0 0
    %849 = vmatpush.bf16.xpose.msra.mxu0 0
    %850 = vmatpush.bf16.xpose.msra.mxu0 0
    %851 = vmatpush.bf16.xpose.msra.mxu0 0
    %852 = vmatpush.bf16.xpose.msra.mxu0 0
    %853 = vmatpush.bf16.xpose.msra.mxu0 0
    %854 = vmatpush.bf16.xpose.msra.mxu0 %v845
    %855 = vmatmul.bf16.gmra.mxu0 %v842
    %v856 = vpop.f32.mrf.mxu0
    %v857 = vadd.f32 0.0, %v856
    %v858 = vpop.f32.mrf.mxu0
    %859 = vdwg.mxu0
    %v860 = vsel %vm388, %v831, -inf
    %861 = vmax.xlane.f32.xlu0 %v860
    %v862 = vpop.xlane.xlu0 %861
    %v863 = vsel %vm388, %v857, -inf
    %864 = vmax.xlane.f32.xlu0 %v863
    %v865 = vpop.xlane.xlu0 %864
    %v866 = vsub.f32 %v831, %v862
    %v867 = vsub.f32 %v857, %v865
    %v868 = vmul.f32 %v866, 1.442695
    %v869 = vpow.pop %v868
    %v870 = vmul.f32 %v867, 1.442695
    %v871 = vpow.pop %v870
    %v872 = vsel %vm388, %v869, 0.0
    %873 = vadd.xlane.f32.xlu0 %v872
    %v874 = vpop.xlane.xlu0 %873
    %v875 = vsel %vm388, %v871, 0.0
    %876 = vadd.xlane.f32.xlu0 %v875
    %v877 = vpop.xlane.xlu0 %876
    %v878 = vrcp.pop %v874
    %v879 = vrcp.pop %v877
    %v880 = vmul.f32 %v869, %v878
    %v881 = vmul.f32 %v871, %v879
    %v882 = vpack.c.bf16 %v880, %v880
    %v883 = vpack.c.bf16 %v881, %v881
    %v885 = vunpack.c.l.b16 %v806
    %v886 = vpack.c.b16 %v885, %v885
    %887 = vrot.lane.b32.xlu0 %v886, 104
    %v888 = vpop.permute.xlu0 %887
    %v890 = vsel %vm388, %v882, 0
    %v893 = vsel %vm416, %v888, 0
    %895 = vmatpush.bf16.msra.mxu0 0
    %896 = vmatpush.bf16.msra.mxu0 0
    %897 = vmatpush.bf16.msra.mxu0 0
    %898 = vmatpush.bf16.msra.mxu0 0
    %899 = vmatpush.bf16.msra.mxu0 0
    %900 = vmatpush.bf16.msra.mxu0 0
    %901 = vmatpush.bf16.msra.mxu0 0
    %902 = vmatpush.bf16.msra.mxu0 %v893
    %903 = vmatmul.bf16.gmra.mxu0 %v890
    %v904 = vpop.f32.mrf.mxu0
    %v905 = vadd.f32 0.0, %v904
    %v906 = vpop.f32.mrf.mxu0
    %907 = vdwg.mxu0
    %v909 = vunpack.c.l.b16 %v807
    %v910 = vpack.c.b16 %v909, %v909
    %911 = vrot.lane.b32.xlu0 %v910, 104
    %v912 = vpop.permute.xlu0 %911
    %v914 = vsel %vm388, %v883, 0
    %v917 = vsel %vm416, %v912, 0
    %919 = vmatpush.bf16.msra.mxu0 0
    %920 = vmatpush.bf16.msra.mxu0 0
    %921 = vmatpush.bf16.msra.mxu0 0
    %922 = vmatpush.bf16.msra.mxu0 0
    %923 = vmatpush.bf16.msra.mxu0 0
    %924 = vmatpush.bf16.msra.mxu0 0
    %925 = vmatpush.bf16.msra.mxu0 0
    %926 = vmatpush.bf16.msra.mxu0 %v917
    %927 = vmatmul.bf16.gmra.mxu0 %v914
    %v928 = vpop.f32.mrf.mxu0
    %v929 = vadd.f32 0.0, %v928
    %v930 = vpop.f32.mrf.mxu0
    %931 = vdwg.mxu0
    %934 = vrot.lane.b32.xlu0 %v589, 8
    %v935 = vpop.permute.xlu0 %934
    %936 = vrot.lane.b32.xlu0 %v613, 8
    %v937 = vpop.permute.xlu0 %936
    %942 = vrot.lane.b32.xlu0 %v747, 16
    %v943 = vpop.permute.xlu0 %942
    %944 = vrot.lane.b32.xlu0 %v771, 16
    %v945 = vpop.permute.xlu0 %944
    %950 = vrot.lane.b32.xlu0 %v905, 24
    %v951 = vpop.permute.xlu0 %950
    %952 = vrot.lane.b32.xlu0 %v929, 24
    %v953 = vpop.permute.xlu0 %952
    %v956 = vsel %vm349, %v430, %v935
    %v957 = vsel %vm349, %v449, %v937
    %v958 = vsel %vm257, %v956, %v943
    %v959 = vsel %vm257, %v957, %v945
    %vm960 = vcmask 195584
    %v961 = vsel %vm960, %v958, %v951
    %v962 = vsel %vm960, %v959, %v953
    %v963 = vpack.c.bf16 %v962, %v961
    %v964 = vld [vmem:[%s8] sm:$0xf]
    %v965 = vld [vmem:[%s8 + $0x4] sm:$0xf]
    %v966 = vld [vmem:[%s8 + $0x8] sm:$0xf]
    %v967 = vld [vmem:[%s8 + $0xc] sm:$0xf]
    %v972 = vunpack.c.l.b16 %v964
    %v973 = vunpack.c.l.b16 %v965
    %v974 = vunpack.c.l.b16 %v966
    %v975 = vunpack.c.l.b16 %v967
    %v976 = vpack.c.b16 %v973, %v972
    %v977 = vpack.c.b16 %v975, %v974
    %v981 = vsel %vm227, %v963, 0
    %983 = vmatpush.bf16.msra.mxu0 0
    %984 = vmatpush.bf16.msra.mxu0 0
    %985 = vmatpush.bf16.msra.mxu0 0
    %986 = vmatpush.bf16.msra.mxu0 0
    %987 = vmatpush.bf16.msra.mxu0 0
    %988 = vmatpush.bf16.msra.mxu0 0
    %989 = vmatpush.bf16.msra.mxu0 %v977
    %990 = vmatpush.bf16.msra.mxu0 %v976
    %991 = vmatmul.bf16.gmra.mxu0 %v981
    %v992 = vpop.f32.mrf.mxu0
    %v993 = vadd.f32 0.0, %v992
    %v994 = vpop.f32.mrf.mxu0
    %v995 = vadd.f32 0.0, %v994
    %996 = vdwg.mxu0
    %v997 = vadd.f32 %v180, %v993
    %v998 = vadd.f32 %v181, %v995
    %v999 = vld [vmem:[%s9] sm:$0x1]
    %v1001 = vperm.slane %v999, 0
    %v1003 = vadd.f32 %v997, %v1001
    %v1004 = vadd.f32 %v998, %v1001
    %v1005 = vld [vmem:[#allocation7] sm:$0x1]
    %v1006 = vld [vmem:[#allocation8] sm:$0x1]
    %v1007 = vsel %vm227, %v1003, 0.0
    %1008 = vadd.xlane.f32.xlu0 %v1007
    %v1009 = vpop.xlane.xlu0 %1008
    %v1010 = vsel %vm227, %v1004, 0.0
    %1011 = vadd.xlane.f32.xlu0 %v1010
    %v1012 = vpop.xlane.xlu0 %1011
    %v1013 = vrcp.pop 32.0
    %v1014 = vmul.f32 32.0, %v1013
    %v1015 = vsub.f32 1.0, %v1014
    %v1016 = vmul.f32 %v1013, %v1015
    %v1017 = vadd.f32 %v1013, %v1016
    %vm1018 = vweird.f32 %v1013
    %v1019 = vsel %vm1018, %v1013, %v1017
    %v1020 = vmul.f32 %v1009, %v1019
    %v1021 = vmul.f32 %v1012, %v1019
    %v1022 = vsub.f32 %v1003, %v1020
    %v1023 = vsub.f32 %v1004, %v1021
    %v1024 = vmul.f32 %v1022, %v1022
    %v1025 = vmul.f32 %v1023, %v1023
    %v1026 = vsel %vm227, %v1024, 0.0
    %1027 = vadd.xlane.f32.xlu0 %v1026
    %v1028 = vpop.xlane.xlu0 %1027
    %v1029 = vsel %vm227, %v1025, 0.0
    %1030 = vadd.xlane.f32.xlu0 %v1029
    %v1031 = vpop.xlane.xlu0 %1030
    %v1032 = vmul.f32 %v1028, %v1019
    %v1033 = vmul.f32 %v1031, %v1019
    %v1034 = vadd.f32 %v1032, 1e-05
    %v1035 = vadd.f32 %v1033, 1e-05
    %v1036 = vrsqrt.pop %v1034
    %v1037 = vmul.f32 %v1036, %v1034
    %v1038 = vmul.f32 %v1037, %v1036
    %v1039 = vmul.f32 0.5, %v1038
    %v1040 = vsub.f32 1.5, %v1039
    %v1041 = vmul.f32 %v1036, %v1040
    %vm1042 = vweird.f32 %v1034
    %vm1043 = vweird.f32 %v1036
    %vm1044 = vmor %vm1042, %vm1043
    %v1045 = vsel %vm1044, %v1036, %v1041
    %v1046 = vrsqrt.pop %v1035
    %v1047 = vmul.f32 %v1046, %v1035
    %v1048 = vmul.f32 %v1047, %v1046
    %v1049 = vmul.f32 0.5, %v1048
    %v1050 = vsub.f32 1.5, %v1049
    %v1051 = vmul.f32 %v1046, %v1050
    %vm1052 = vweird.f32 %v1035
    %vm1053 = vweird.f32 %v1046
    %vm1054 = vmor %vm1052, %vm1053
    %v1055 = vsel %vm1054, %v1046, %v1051
    %v1056 = vmul.f32 %v1022, %v1045
    %v1057 = vmul.f32 %v1023, %v1055
    %v1059 = vperm.slane %v1005, 0
    %v1061 = vmul.f32 %v1056, %v1059
    %v1062 = vmul.f32 %v1057, %v1059
    %v1064 = vperm.slane %v1006, 0
    %v1066 = vadd.f32 %v1061, %v1064
    %v1067 = vadd.f32 %v1062, %v1064
    %v1068 = vpack.c.bf16 %v1067, %v1066
    %v1069 = vld [vmem:[%s12] sm:$0xf]
    %v1070 = vld [vmem:[%s12 + $0x4] sm:$0xf]
    %v1071 = vld [vmem:[%s12 + $0x8] sm:$0xf]
    %v1072 = vld [vmem:[%s12 + $0xc] sm:$0xf]
    %v1077 = vunpack.c.l.b16 %v1069
    %v1078 = vunpack.c.l.b16 %v1070
    %v1079 = vunpack.c.l.b16 %v1071
    %v1080 = vunpack.c.l.b16 %v1072
    %v1081 = vpack.c.b16 %v1078, %v1077
    %v1082 = vpack.c.b16 %v1080, %v1079
    %v1086 = vsel %vm227, %v1068, 0
    %1088 = vmatpush.bf16.msra.mxu0 0
    %1089 = vmatpush.bf16.msra.mxu0 0
    %1090 = vmatpush.bf16.msra.mxu0 0
    %1091 = vmatpush.bf16.msra.mxu0 0
    %1092 = vmatpush.bf16.msra.mxu0 0
    %1093 = vmatpush.bf16.msra.mxu0 0
    %1094 = vmatpush.bf16.msra.mxu0 %v1082
    %1095 = vmatpush.bf16.msra.mxu0 %v1081
    %1096 = vmatmul.bf16.gmra.mxu0 %v1086
    %v1097 = vpop.f32.mrf.mxu0
    %v1098 = vadd.f32 0.0, %v1097
    %v1099 = vpop.f32.mrf.mxu0
    %v1100 = vadd.f32 0.0, %v1099
    %1101 = vdwg.mxu0
    %v1102 = vld [vmem:[%s13] sm:$0xf]
    %v1103 = vld [vmem:[%s13 + $0x4] sm:$0xf]
    %v1104 = vld [vmem:[%s13 + $0x8] sm:$0xf]
    %v1105 = vld [vmem:[%s13 + $0xc] sm:$0xf]
    %v1110 = vunpack.c.l.b16 %v1102
    %v1111 = vunpack.c.l.b16 %v1103
    %v1112 = vunpack.c.l.b16 %v1104
    %v1113 = vunpack.c.l.b16 %v1105
    %v1114 = vpack.c.b16 %v1111, %v1110
    %v1115 = vpack.c.b16 %v1113, %v1112
    %1118 = vmatpush.bf16.msra.mxu0 0
    %1119 = vmatpush.bf16.msra.mxu0 0
    %1120 = vmatpush.bf16.msra.mxu0 0
    %1121 = vmatpush.bf16.msra.mxu0 0
    %1122 = vmatpush.bf16.msra.mxu0 0
    %1123 = vmatpush.bf16.msra.mxu0 0
    %1124 = vmatpush.bf16.msra.mxu0 %v1115
    %1125 = vmatpush.bf16.msra.mxu0 %v1114
    %1126 = vmatmul.bf16.gmra.mxu0 %v1086
    %v1127 = vpop.f32.mrf.mxu0
    %v1128 = vadd.f32 0.0, %v1127
    %v1129 = vpop.f32.mrf.mxu0
    %v1130 = vadd.f32 0.0, %v1129
    %1131 = vdwg.mxu0
    %v1132 = vld [vmem:[%s14] sm:$0xf]
    %v1133 = vld [vmem:[%s14 + $0x4] sm:$0xf]
    %v1134 = vld [vmem:[%s14 + $0x8] sm:$0xf]
    %v1135 = vld [vmem:[%s14 + $0xc] sm:$0xf]
    %v1140 = vunpack.c.l.b16 %v1132
    %v1141 = vunpack.c.l.b16 %v1133
    %v1142 = vunpack.c.l.b16 %v1134
    %v1143 = vunpack.c.l.b16 %v1135
    %v1144 = vpack.c.b16 %v1141, %v1140
    %v1145 = vpack.c.b16 %v1143, %v1142
    %1148 = vmatpush.bf16.msra.mxu0 0
    %1149 = vmatpush.bf16.msra.mxu0 0
    %1150 = vmatpush.bf16.msra.mxu0 0
    %1151 = vmatpush.bf16.msra.mxu0 0
    %1152 = vmatpush.bf16.msra.mxu0 0
    %1153 = vmatpush.bf16.msra.mxu0 0
    %1154 = vmatpush.bf16.msra.mxu0 %v1145
    %1155 = vmatpush.bf16.msra.mxu0 %v1144
    %1156 = vmatmul.bf16.gmra.mxu0 %v1086
    %v1157 = vpop.f32.mrf.mxu0
    %v1158 = vadd.f32 0.0, %v1157
    %v1159 = vpop.f32.mrf.mxu0
    %v1160 = vadd.f32 0.0, %v1159
    %1161 = vdwg.mxu0
    %v1162 = vpack.c.bf16 %v1098, %v1098
    %v1163 = vpack.c.bf16 %v1100, %v1100
    %v1164 = vpack.c.bf16 %v1128, %v1128
    %v1165 = vpack.c.bf16 %v1130, %v1130
    %v1166 = vpack.c.bf16 %v1158, %v1158
    %v1167 = vpack.c.bf16 %v1160, %v1160
    %v1169 = vsel %vm257, %v1162, 0
    %v1172 = vsel %vm257, %v1164, 0
    %1174 = vmatpush.bf16.xpose.msra.mxu0 0
    %1175 = vmatpush.bf16.xpose.msra.mxu0 0
    %1176 = vmatpush.bf16.xpose.msra.mxu0 0
    %1177 = vmatpush.bf16.xpose.msra.mxu0 0
    %1178 = vmatpush.bf16.xpose.msra.mxu0 0
    %1179 = vmatpush.bf16.xpose.msra.mxu0 0
    %1180 = vmatpush.bf16.xpose.msra.mxu0 0
    %1181 = vmatpush.bf16.xpose.msra.mxu0 %v1172
    %1182 = vmatmul.bf16.gmra.mxu0 %v1169
    %v1183 = vpop.f32.mrf.mxu0
    %v1184 = vadd.f32 0.0, %v1183
    %v1185 = vpop.f32.mrf.mxu0
    %1186 = vdwg.mxu0
    %v1188 = vsel %vm257, %v1163, 0
    %v1191 = vsel %vm257, %v1165, 0
    %1193 = vmatpush.bf16.xpose.msra.mxu0 0
    %1194 = vmatpush.bf16.xpose.msra.mxu0 0
    %1195 = vmatpush.bf16.xpose.msra.mxu0 0
    %1196 = vmatpush.bf16.xpose.msra.mxu0 0
    %1197 = vmatpush.bf16.xpose.msra.mxu0 0
    %1198 = vmatpush.bf16.xpose.msra.mxu0 0
    %1199 = vmatpush.bf16.xpose.msra.mxu0 0
    %1200 = vmatpush.bf16.xpose.msra.mxu0 %v1191
    %1201 = vmatmul.bf16.gmra.mxu0 %v1188
    %v1202 = vpop.f32.mrf.mxu0
    %v1203 = vadd.f32 0.0, %v1202
    %v1204 = vpop.f32.mrf.mxu0
    %1205 = vdwg.mxu0
    %v1206 = vsel %vm349, %v1184, -inf
    %1207 = vmax.xlane.f32.xlu0 %v1206
    %v1208 = vpop.xlane.xlu0 %1207
    %v1209 = vsel %vm349, %v1203, -inf
    %1210 = vmax.xlane.f32.xlu0 %v1209
    %v1211 = vpop.xlane.xlu0 %1210
    %v1212 = vsub.f32 %v1184, %v1208
    %v1213 = vsub.f32 %v1203, %v1211
    %v1214 = vmul.f32 %v1212, 1.442695
    %v1215 = vpow.pop %v1214
    %v1216 = vmul.f32 %v1213, 1.442695
    %v1217 = vpow.pop %v1216
    %v1218 = vsel %vm349, %v1215, 0.0
    %1219 = vadd.xlane.f32.xlu0 %v1218
    %v1220 = vpop.xlane.xlu0 %1219
    %v1221 = vsel %vm349, %v1217, 0.0
    %1222 = vadd.xlane.f32.xlu0 %v1221
    %v1223 = vpop.xlane.xlu0 %1222
    %v1224 = vrcp.pop %v1220
    %v1225 = vrcp.pop %v1223
    %v1226 = vmul.f32 %v1215, %v1224
    %v1227 = vmul.f32 %v1217, %v1225
    %v1228 = vpack.c.bf16 %v1226, %v1226
    %v1229 = vpack.c.bf16 %v1227, %v1227
    %v1231 = vsel %vm349, %v1228, 0
    %vm1233 = vcmask 1043456
    %v1235 = vsel %vm1233, %v1166, 0
    %1237 = vmatpush.bf16.msra.mxu0 0
    %1238 = vmatpush.bf16.msra.mxu0 0
    %1239 = vmatpush.bf16.msra.mxu0 0
    %1240 = vmatpush.bf16.msra.mxu0 0
    %1241 = vmatpush.bf16.msra.mxu0 0
    %1242 = vmatpush.bf16.msra.mxu0 0
    %1243 = vmatpush.bf16.msra.mxu0 0
    %1244 = vmatpush.bf16.msra.mxu0 %v1235
    %1245 = vmatmul.bf16.gmra.mxu0 %v1231
    %v1246 = vpop.f32.mrf.mxu0
    %v1247 = vadd.f32 0.0, %v1246
    %v1248 = vpop.f32.mrf.mxu0
    %1249 = vdwg.mxu0
    %v1251 = vsel %vm349, %v1229, 0
    %v1254 = vsel %vm1233, %v1167, 0
    %1256 = vmatpush.bf16.msra.mxu0 0
    %1257 = vmatpush.bf16.msra.mxu0 0
    %1258 = vmatpush.bf16.msra.mxu0 0
    %1259 = vmatpush.bf16.msra.mxu0 0
    %1260 = vmatpush.bf16.msra.mxu0 0
    %1261 = vmatpush.bf16.msra.mxu0 0
    %1262 = vmatpush.bf16.msra.mxu0 0
    %1263 = vmatpush.bf16.msra.mxu0 %v1254
    %1264 = vmatmul.bf16.gmra.mxu0 %v1251
    %v1265 = vpop.f32.mrf.mxu0
    %v1266 = vadd.f32 0.0, %v1265
    %v1267 = vpop.f32.mrf.mxu0
    %1268 = vdwg.mxu0
    %v1270 = vunpack.c.l.b16 %v1162
    %v1271 = vpack.c.b16 %v1270, %v1270
    %1272 = vrot.lane.b32.xlu0 %v1271, 112
    %v1273 = vpop.permute.xlu0 %1272
    %v1275 = vunpack.c.l.b16 %v1164
    %v1276 = vpack.c.b16 %v1275, %v1275
    %1277 = vrot.lane.b32.xlu0 %v1276, 112
    %v1278 = vpop.permute.xlu0 %1277
    %v1280 = vsel %vm257, %v1273, 0
    %v1283 = vsel %vm257, %v1278, 0
    %1285 = vmatpush.bf16.xpose.msra.mxu0 0
    %1286 = vmatpush.bf16.xpose.msra.mxu0 0
    %1287 = vmatpush.bf16.xpose.msra.mxu0 0
    %1288 = vmatpush.bf16.xpose.msra.mxu0 0
    %1289 = vmatpush.bf16.xpose.msra.mxu0 0
    %1290 = vmatpush.bf16.xpose.msra.mxu0 0
    %1291 = vmatpush.bf16.xpose.msra.mxu0 0
    %1292 = vmatpush.bf16.xpose.msra.mxu0 %v1283
    %1293 = vmatmul.bf16.gmra.mxu0 %v1280
    %v1294 = vpop.f32.mrf.mxu0
    %v1295 = vadd.f32 0.0, %v1294
    %v1296 = vpop.f32.mrf.mxu0
    %1297 = vdwg.mxu0
    %v1299 = vunpack.c.l.b16 %v1163
    %v1300 = vpack.c.b16 %v1299, %v1299
    %1301 = vrot.lane.b32.xlu0 %v1300, 112
    %v1302 = vpop.permute.xlu0 %1301
    %v1304 = vunpack.c.l.b16 %v1165
    %v1305 = vpack.c.b16 %v1304, %v1304
    %1306 = vrot.lane.b32.xlu0 %v1305, 112
    %v1307 = vpop.permute.xlu0 %1306
    %v1309 = vsel %vm257, %v1302, 0
    %v1312 = vsel %vm257, %v1307, 0
    %1314 = vmatpush.bf16.xpose.msra.mxu0 0
    %1315 = vmatpush.bf16.xpose.msra.mxu0 0
    %1316 = vmatpush.bf16.xpose.msra.mxu0 0
    %1317 = vmatpush.bf16.xpose.msra.mxu0 0
    %1318 = vmatpush.bf16.xpose.msra.mxu0 0
    %1319 = vmatpush.bf16.xpose.msra.mxu0 0
    %1320 = vmatpush.bf16.xpose.msra.mxu0 0
    %1321 = vmatpush.bf16.xpose.msra.mxu0 %v1312
    %1322 = vmatmul.bf16.gmra.mxu0 %v1309
    %v1323 = vpop.f32.mrf.mxu0
    %v1324 = vadd.f32 0.0, %v1323
    %v1325 = vpop.f32.mrf.mxu0
    %1326 = vdwg.mxu0
    %v1327 = vsel %vm349, %v1295, -inf
    %1328 = vmax.xlane.f32.xlu0 %v1327
    %v1329 = vpop.xlane.xlu0 %1328
    %v1330 = vsel %vm349, %v1324, -inf
    %1331 = vmax.xlane.f32.xlu0 %v1330
    %v1332 = vpop.xlane.xlu0 %1331
    %v1333 = vsub.f32 %v1295, %v1329
    %v1334 = vsub.f32 %v1324, %v1332
    %v1335 = vmul.f32 %v1333, 1.442695
    %v1336 = vpow.pop %v1335
    %v1337 = vmul.f32 %v1334, 1.442695
    %v1338 = vpow.pop %v1337
    %v1339 = vsel %vm349, %v1336, 0.0
    %1340 = vadd.xlane.f32.xlu0 %v1339
    %v1341 = vpop.xlane.xlu0 %1340
    %v1342 = vsel %vm349, %v1338, 0.0
    %1343 = vadd.xlane.f32.xlu0 %v1342
    %v1344 = vpop.xlane.xlu0 %1343
    %v1345 = vrcp.pop %v1341
    %v1346 = vrcp.pop %v1344
    %v1347 = vmul.f32 %v1336, %v1345
    %v1348 = vmul.f32 %v1338, %v1346
    %v1349 = vpack.c.bf16 %v1347, %v1347
    %v1350 = vpack.c.bf16 %v1348, %v1348
    %v1352 = vunpack.c.l.b16 %v1166
    %v1353 = vpack.c.b16 %v1352, %v1352
    %1354 = vrot.lane.b32.xlu0 %v1353, 112
    %v1355 = vpop.permute.xlu0 %1354
    %v1357 = vsel %vm349, %v1349, 0
    %v1360 = vsel %vm1233, %v1355, 0
    %1362 = vmatpush.bf16.msra.mxu0 0
    %1363 = vmatpush.bf16.msra.mxu0 0
    %1364 = vmatpush.bf16.msra.mxu0 0
    %1365 = vmatpush.bf16.msra.mxu0 0
    %1366 = vmatpush.bf16.msra.mxu0 0
    %1367 = vmatpush.bf16.msra.mxu0 0
    %1368 = vmatpush.bf16.msra.mxu0 0
    %1369 = vmatpush.bf16.msra.mxu0 %v1360
    %1370 = vmatmul.bf16.gmra.mxu0 %v1357
    %v1371 = vpop.f32.mrf.mxu0
    %v1372 = vadd.f32 0.0, %v1371
    %v1373 = vpop.f32.mrf.mxu0
    %1374 = vdwg.mxu0
    %v1376 = vunpack.c.l.b16 %v1167
    %v1377 = vpack.c.b16 %v1376, %v1376
    %1378 = vrot.lane.b32.xlu0 %v1377, 112
    %v1379 = vpop.permute.xlu0 %1378
    %v1381 = vsel %vm349, %v1350, 0
    %v1384 = vsel %vm1233, %v1379, 0
    %1386 = vmatpush.bf16.msra.mxu0 0
    %1387 = vmatpush.bf16.msra.mxu0 0
    %1388 = vmatpush.bf16.msra.mxu0 0
    %1389 = vmatpush.bf16.msra.mxu0 0
    %1390 = vmatpush.bf16.msra.mxu0 0
    %1391 = vmatpush.bf16.msra.mxu0 0
    %1392 = vmatpush.bf16.msra.mxu0 0
    %1393 = vmatpush.bf16.msra.mxu0 %v1384
    %1394 = vmatmul.bf16.gmra.mxu0 %v1381
    %v1395 = vpop.f32.mrf.mxu0
    %v1396 = vadd.f32 0.0, %v1395
    %v1397 = vpop.f32.mrf.mxu0
    %1398 = vdwg.mxu0
    %1399 = vrot.lane.b32.xlu0 %v1271, 96
    %v1400 = vpop.permute.xlu0 %1399
    %1401 = vrot.lane.b32.xlu0 %v1276, 96
    %v1402 = vpop.permute.xlu0 %1401
    %v1404 = vsel %vm257, %v1400, 0
    %v1407 = vsel %vm257, %v1402, 0
    %1409 = vmatpush.bf16.xpose.msra.mxu0 0
    %1410 = vmatpush.bf16.xpose.msra.mxu0 0
    %1411 = vmatpush.bf16.xpose.msra.mxu0 0
    %1412 = vmatpush.bf16.xpose.msra.mxu0 0
    %1413 = vmatpush.bf16.xpose.msra.mxu0 0
    %1414 = vmatpush.bf16.xpose.msra.mxu0 0
    %1415 = vmatpush.bf16.xpose.msra.mxu0 0
    %1416 = vmatpush.bf16.xpose.msra.mxu0 %v1407
    %1417 = vmatmul.bf16.gmra.mxu0 %v1404
    %v1418 = vpop.f32.mrf.mxu0
    %v1419 = vadd.f32 0.0, %v1418
    %v1420 = vpop.f32.mrf.mxu0
    %1421 = vdwg.mxu0
    %1422 = vrot.lane.b32.xlu0 %v1300, 96
    %v1423 = vpop.permute.xlu0 %1422
    %1424 = vrot.lane.b32.xlu0 %v1305, 96
    %v1425 = vpop.permute.xlu0 %1424
    %v1427 = vsel %vm257, %v1423, 0
    %v1430 = vsel %vm257, %v1425, 0
    %1432 = vmatpush.bf16.xpose.msra.mxu0 0
    %1433 = vmatpush.bf16.xpose.msra.mxu0 0
    %1434 = vmatpush.bf16.xpose.msra.mxu0 0
    %1435 = vmatpush.bf16.xpose.msra.mxu0 0
    %1436 = vmatpush.bf16.xpose.msra.mxu0 0
    %1437 = vmatpush.bf16.xpose.msra.mxu0 0
    %1438 = vmatpush.bf16.xpose.msra.mxu0 0
    %1439 = vmatpush.bf16.xpose.msra.mxu0 %v1430
    %1440 = vmatmul.bf16.gmra.mxu0 %v1427
    %v1441 = vpop.f32.mrf.mxu0
    %v1442 = vadd.f32 0.0, %v1441
    %v1443 = vpop.f32.mrf.mxu0
    %1444 = vdwg.mxu0
    %v1445 = vsel %vm349, %v1419, -inf
    %1446 = vmax.xlane.f32.xlu0 %v1445
    %v1447 = vpop.xlane.xlu0 %1446
    %v1448 = vsel %vm349, %v1442, -inf
    %1449 = vmax.xlane.f32.xlu0 %v1448
    %v1450 = vpop.xlane.xlu0 %1449
    %v1451 = vsub.f32 %v1419, %v1447
    %v1452 = vsub.f32 %v1442, %v1450
    %v1453 = vmul.f32 %v1451, 1.442695
    %v1454 = vpow.pop %v1453
    %v1455 = vmul.f32 %v1452, 1.442695
    %v1456 = vpow.pop %v1455
    %v1457 = vsel %vm349, %v1454, 0.0
    %1458 = vadd.xlane.f32.xlu0 %v1457
    %v1459 = vpop.xlane.xlu0 %1458
    %v1460 = vsel %vm349, %v1456, 0.0
    %1461 = vadd.xlane.f32.xlu0 %v1460
    %v1462 = vpop.xlane.xlu0 %1461
    %v1463 = vrcp.pop %v1459
    %v1464 = vrcp.pop %v1462
    %v1465 = vmul.f32 %v1454, %v1463
    %v1466 = vmul.f32 %v1456, %v1464
    %v1467 = vpack.c.bf16 %v1465, %v1465
    %v1468 = vpack.c.bf16 %v1466, %v1466
    %1469 = vrot.lane.b32.xlu0 %v1353, 96
    %v1470 = vpop.permute.xlu0 %1469
    %v1472 = vsel %vm349, %v1467, 0
    %v1475 = vsel %vm1233, %v1470, 0
    %1477 = vmatpush.bf16.msra.mxu0 0
    %1478 = vmatpush.bf16.msra.mxu0 0
    %1479 = vmatpush.bf16.msra.mxu0 0
    %1480 = vmatpush.bf16.msra.mxu0 0
    %1481 = vmatpush.bf16.msra.mxu0 0
    %1482 = vmatpush.bf16.msra.mxu0 0
    %1483 = vmatpush.bf16.msra.mxu0 0
    %1484 = vmatpush.bf16.msra.mxu0 %v1475
    %1485 = vmatmul.bf16.gmra.mxu0 %v1472
    %v1486 = vpop.f32.mrf.mxu0
    %v1487 = vadd.f32 0.0, %v1486
    %v1488 = vpop.f32.mrf.mxu0
    %1489 = vdwg.mxu0
    %1490 = vrot.lane.b32.xlu0 %v1377, 96
    %v1491 = vpop.permute.xlu0 %1490
    %v1493 = vsel %vm349, %v1468, 0
    %v1496 = vsel %vm1233, %v1491, 0
    %1498 = vmatpush.bf16.msra.mxu0 0
    %1499 = vmatpush.bf16.msra.mxu0 0
    %1500 = vmatpush.bf16.msra.mxu0 0
    %1501 = vmatpush.bf16.msra.mxu0 0
    %1502 = vmatpush.bf16.msra.mxu0 0
    %1503 = vmatpush.bf16.msra.mxu0 0
    %1504 = vmatpush.bf16.msra.mxu0 0
    %1505 = vmatpush.bf16.msra.mxu0 %v1496
    %1506 = vmatmul.bf16.gmra.mxu0 %v1493
    %v1507 = vpop.f32.mrf.mxu0
    %v1508 = vadd.f32 0.0, %v1507
    %v1509 = vpop.f32.mrf.mxu0
    %1510 = vdwg.mxu0
    %1511 = vrot.lane.b32.xlu0 %v1271, 80
    %v1512 = vpop.permute.xlu0 %1511
    %1513 = vrot.lane.b32.xlu0 %v1276, 80
    %v1514 = vpop.permute.xlu0 %1513
    %v1516 = vsel %vm257, %v1512, 0
    %v1519 = vsel %vm257, %v1514, 0
    %1521 = vmatpush.bf16.xpose.msra.mxu0 0
    %1522 = vmatpush.bf16.xpose.msra.mxu0 0
    %1523 = vmatpush.bf16.xpose.msra.mxu0 0
    %1524 = vmatpush.bf16.xpose.msra.mxu0 0
    %1525 = vmatpush.bf16.xpose.msra.mxu0 0
    %1526 = vmatpush.bf16.xpose.msra.mxu0 0
    %1527 = vmatpush.bf16.xpose.msra.mxu0 0
    %1528 = vmatpush.bf16.xpose.msra.mxu0 %v1519
    %1529 = vmatmul.bf16.gmra.mxu0 %v1516
    %v1530 = vpop.f32.mrf.mxu0
    %v1531 = vadd.f32 0.0, %v1530
    %v1532 = vpop.f32.mrf.mxu0
    %1533 = vdwg.mxu0
    %1534 = vrot.lane.b32.xlu0 %v1300, 80
    %v1535 = vpop.permute.xlu0 %1534
    %1536 = vrot.lane.b32.xlu0 %v1305, 80
    %v1537 = vpop.permute.xlu0 %1536
    %v1539 = vsel %vm257, %v1535, 0
    %v1542 = vsel %vm257, %v1537, 0
    %1544 = vmatpush.bf16.xpose.msra.mxu0 0
    %1545 = vmatpush.bf16.xpose.msra.mxu0 0
    %1546 = vmatpush.bf16.xpose.msra.mxu0 0
    %1547 = vmatpush.bf16.xpose.msra.mxu0 0
    %1548 = vmatpush.bf16.xpose.msra.mxu0 0
    %1549 = vmatpush.bf16.xpose.msra.mxu0 0
    %1550 = vmatpush.bf16.xpose.msra.mxu0 0
    %1551 = vmatpush.bf16.xpose.msra.mxu0 %v1542
    %1552 = vmatmul.bf16.gmra.mxu0 %v1539
    %v1553 = vpop.f32.mrf.mxu0
    %v1554 = vadd.f32 0.0, %v1553
    %v1555 = vpop.f32.mrf.mxu0
    %1556 = vdwg.mxu0
    %v1557 = vsel %vm349, %v1531, -inf
    %1558 = vmax.xlane.f32.xlu0 %v1557
    %v1559 = vpop.xlane.xlu0 %1558
    %v1560 = vsel %vm349, %v1554, -inf
    %1561 = vmax.xlane.f32.xlu0 %v1560
    %v1562 = vpop.xlane.xlu0 %1561
    %v1563 = vsub.f32 %v1531, %v1559
    %v1564 = vsub.f32 %v1554, %v1562
    %v1565 = vmul.f32 %v1563, 1.442695
    %v1566 = vpow.pop %v1565
    %v1567 = vmul.f32 %v1564, 1.442695
    %v1568 = vpow.pop %v1567
    %v1569 = vsel %vm349, %v1566, 0.0
    %1570 = vadd.xlane.f32.xlu0 %v1569
    %v1571 = vpop.xlane.xlu0 %1570
    %v1572 = vsel %vm349, %v1568, 0.0
    %1573 = vadd.xlane.f32.xlu0 %v1572
    %v1574 = vpop.xlane.xlu0 %1573
    %v1575 = vrcp.pop %v1571
    %v1576 = vrcp.pop %v1574
    %v1577 = vmul.f32 %v1566, %v1575
    %v1578 = vmul.f32 %v1568, %v1576
    %v1579 = vpack.c.bf16 %v1577, %v1577
    %v1580 = vpack.c.bf16 %v1578, %v1578
    %1581 = vrot.lane.b32.xlu0 %v1353, 80
    %v1582 = vpop.permute.xlu0 %1581
    %v1584 = vsel %vm349, %v1579, 0
    %v1587 = vsel %vm1233, %v1582, 0
    %1589 = vmatpush.bf16.msra.mxu0 0
    %1590 = vmatpush.bf16.msra.mxu0 0
    %1591 = vmatpush.bf16.msra.mxu0 0
    %1592 = vmatpush.bf16.msra.mxu0 0
    %1593 = vmatpush.bf16.msra.mxu0 0
    %1594 = vmatpush.bf16.msra.mxu0 0
    %1595 = vmatpush.bf16.msra.mxu0 0
    %1596 = vmatpush.bf16.msra.mxu0 %v1587
    %1597 = vmatmul.bf16.gmra.mxu0 %v1584
    %v1598 = vpop.f32.mrf.mxu0
    %v1599 = vadd.f32 0.0, %v1598
    %v1600 = vpop.f32.mrf.mxu0
    %1601 = vdwg.mxu0
    %1602 = vrot.lane.b32.xlu0 %v1377, 80
    %v1603 = vpop.permute.xlu0 %1602
    %v1605 = vsel %vm349, %v1580, 0
    %v1608 = vsel %vm1233, %v1603, 0
    %1610 = vmatpush.bf16.msra.mxu0 0
    %1611 = vmatpush.bf16.msra.mxu0 0
    %1612 = vmatpush.bf16.msra.mxu0 0
    %1613 = vmatpush.bf16.msra.mxu0 0
    %1614 = vmatpush.bf16.msra.mxu0 0
    %1615 = vmatpush.bf16.msra.mxu0 0
    %1616 = vmatpush.bf16.msra.mxu0 0
    %1617 = vmatpush.bf16.msra.mxu0 %v1608
    %1618 = vmatmul.bf16.gmra.mxu0 %v1605
    %v1619 = vpop.f32.mrf.mxu0
    %v1620 = vadd.f32 0.0, %v1619
    %v1621 = vpop.f32.mrf.mxu0
    %1622 = vdwg.mxu0
    %1625 = vrot.lane.b32.xlu0 %v1372, 16
    %v1626 = vpop.permute.xlu0 %1625
    %1627 = vrot.lane.b32.xlu0 %v1396, 16
    %v1628 = vpop.permute.xlu0 %1627
    %1633 = vrot.lane.b32.xlu0 %v1487, 32
    %v1634 = vpop.permute.xlu0 %1633
    %1635 = vrot.lane.b32.xlu0 %v1508, 32
    %v1636 = vpop.permute.xlu0 %1635
    %1641 = vrot.lane.b32.xlu0 %v1599, 48
    %v1642 = vpop.permute.xlu0 %1641
    %1643 = vrot.lane.b32.xlu0 %v1620, 48
    %v1644 = vpop.permute.xlu0 %1643
    %v1647 = vsel %vm257, %v1247, %v1626
    %v1648 = vsel %vm257, %v1266, %v1628
    %v1649 = vsel %vm227, %v1647, %v1634
    %v1650 = vsel %vm227, %v1648, %v1636
    %vm1651 = vcmask 392192
    %v1652 = vsel %vm1651, %v1649, %v1642
    %v1653 = vsel %vm1651, %v1650, %v1644
    %v1654 = vpack.c.bf16 %v1653, %v1652
    %v1655 = vld [vmem:[%s15] sm:$0xf]
    %v1656 = vld [vmem:[%s15 + $0x4] sm:$0xf]
    %v1657 = vld [vmem:[%s15 + $0x8] sm:$0xf]
    %v1658 = vld [vmem:[%s15 + $0xc] sm:$0xf]
    %v1659 = vld [vmem:[%s15 + $0x10] sm:$0xf]
    %v1660 = vld [vmem:[%s15 + $0x14] sm:$0xf]
    %v1661 = vld [vmem:[%s15 + $0x18] sm:$0xf]
    %v1662 = vld [vmem:[%s15 + $0x1c] sm:$0xf]
    %v1671 = vunpack.c.l.b16 %v1655
    %v1672 = vunpack.c.l.b16 %v1656
    %v1673 = vunpack.c.l.b16 %v1657
    %v1674 = vunpack.c.l.b16 %v1658
    %v1675 = vunpack.c.l.b16 %v1659
    %v1676 = vunpack.c.l.b16 %v1660
    %v1677 = vunpack.c.l.b16 %v1661
    %v1678 = vunpack.c.l.b16 %v1662
    %v1679 = vpack.c.b16 %v1672, %v1671
    %v1680 = vpack.c.b16 %v1674, %v1673
    %v1681 = vpack.c.b16 %v1676, %v1675
    %v1682 = vpack.c.b16 %v1678, %v1677
    %vm1687 = vcmask 523264
    %v1689 = vsel %vm1687, %v1654, 0
    %1691 = vmatpush.bf16.msra.mxu0 0
    %1692 = vmatpush.bf16.msra.mxu0 0
    %1693 = vmatpush.bf16.msra.mxu0 0
    %1694 = vmatpush.bf16.msra.mxu0 0
    %1695 = vmatpush.bf16.msra.mxu0 %v1682
    %1696 = vmatpush.bf16.msra.mxu0 %v1681
    %1697 = vmatpush.bf16.msra.mxu0 %v1680
    %1698 = vmatpush.bf16.msra.mxu0 %v1679
    %1699 = vmatmul.bf16.gmra.mxu0 %v1689
    %v1700 = vpop.f32.mrf.mxu0
    %v1701 = vadd.f32 0.0, %v1700
    %v1702 = vpop.f32.mrf.mxu0
    %v1703 = vadd.f32 0.0, %v1702
    %1704 = vdwg.mxu0
    %v1705 = vadd.f32 %v1003, %v1701
    %v1706 = vadd.f32 %v1004, %v1703
    %v1707 = vld [vmem:[#allocation10] sm:$0x1]
    %v1708 = vld [vmem:[#allocation11] sm:$0x1]
    %v1709 = vsel %vm227, %v1705, 0.0
    %1710 = vadd.xlane.f32.xlu0 %v1709
    %v1711 = vpop.xlane.xlu0 %1710
    %v1712 = vsel %vm227, %v1706, 0.0
    %1713 = vadd.xlane.f32.xlu0 %v1712
    %v1714 = vpop.xlane.xlu0 %1713
    %v1715 = vmul.f32 %v1711, %v1019
    %v1716 = vmul.f32 %v1714, %v1019
    %v1717 = vsub.f32 %v1705, %v1715
    %v1718 = vsub.f32 %v1706, %v1716
    %v1719 = vmul.f32 %v1717, %v1717
    %v1720 = vmul.f32 %v1718, %v1718
    %v1721 = vsel %vm227, %v1719, 0.0
    %1722 = vadd.xlane.f32.xlu0 %v1721
    %v1723 = vpop.xlane.xlu0 %1722
    %v1724 = vsel %vm227, %v1720, 0.0
    %1725 = vadd.xlane.f32.xlu0 %v1724
    %v1726 = vpop.xlane.xlu0 %1725
    %v1727 = vmul.f32 %v1723, %v1019
    %v1728 = vmul.f32 %v1726, %v1019
    %v1729 = vadd.f32 %v1727, 1e-05
    %v1730 = vadd.f32 %v1728, 1e-05
    %v1731 = vrsqrt.pop %v1729
    %v1732 = vmul.f32 %v1731, %v1729
    %v1733 = vmul.f32 %v1732, %v1731
    %v1734 = vmul.f32 0.5, %v1733
    %v1735 = vsub.f32 1.5, %v1734
    %v1736 = vmul.f32 %v1731, %v1735
    %vm1737 = vweird.f32 %v1729
    %vm1738 = vweird.f32 %v1731
    %vm1739 = vmor %vm1737, %vm1738
    %v1740 = vsel %vm1739, %v1731, %v1736
    %v1741 = vrsqrt.pop %v1730
    %v1742 = vmul.f32 %v1741, %v1730
    %v1743 = vmul.f32 %v1742, %v1741
    %v1744 = vmul.f32 0.5, %v1743
    %v1745 = vsub.f32 1.5, %v1744
    %v1746 = vmul.f32 %v1741, %v1745
    %vm1747 = vweird.f32 %v1730
    %vm1748 = vweird.f32 %v1741
    %vm1749 = vmor %vm1747, %vm1748
    %v1750 = vsel %vm1749, %v1741, %v1746
    %v1751 = vmul.f32 %v1717, %v1740
    %v1752 = vmul.f32 %v1718, %v1750
    %v1754 = vperm.slane %v1707, 0
    %v1756 = vmul.f32 %v1751, %v1754
    %v1757 = vmul.f32 %v1752, %v1754
    %v1759 = vperm.slane %v1708, 0
    %v1761 = vadd.f32 %v1756, %v1759
    %v1762 = vadd.f32 %v1757, %v1759
    %v1763 = vpack.c.bf16 %v1762, %v1761
    %v1764 = vld [vmem:[%s18] sm:$0xff]
    %v1765 = vld [vmem:[%s18 + $0x8] sm:$0xff]
    %v1766 = vld [vmem:[%s18 + $0x10] sm:$0xff]
    %v1767 = vld [vmem:[%s18 + $0x18] sm:$0xff]
    %v1768 = vld [vmem:[%s19] sm:$0x3]
    %v1770 = vperm.slane %v1768, 0
    %v1771 = vperm.slane %v1768, 1
    %v1778 = vunpack.c.l.b16 %v1764
    %v1779 = vunpack.c.h.b16 %v1764
    %v1780 = vunpack.c.l.b16 %v1765
    %v1781 = vunpack.c.h.b16 %v1765
    %v1782 = vunpack.c.l.b16 %v1766
    %v1783 = vunpack.c.h.b16 %v1766
    %v1784 = vunpack.c.l.b16 %v1767
    %v1785 = vunpack.c.h.b16 %v1767
    %v1786 = vpack.c.b16 %v1780, %v1778
    %v1787 = vpack.c.b16 %v1781, %v1779
    %v1788 = vpack.c.b16 %v1784, %v1782
    %v1789 = vpack.c.b16 %v1785, %v1783
    %v1795 = vsel %vm227, %v1763, 0
    %1797 = vmatpush.bf16.msra.mxu0 0
    %1798 = vmatpush.bf16.msra.mxu0 0
    %1799 = vmatpush.bf16.msra.mxu0 0
    %1800 = vmatpush.bf16.msra.mxu0 0
    %1801 = vmatpush.bf16.msra.mxu0 0
    %1802 = vmatpush.bf16.msra.mxu0 0
    %1803 = vmatpush.bf16.msra.mxu0 %v1788
    %1804 = vmatpush.bf16.msra.mxu0 %v1786
    %1805 = vmatmul.bf16.gmra.mxu0 %v1795
    %v1806 = vpop.f32.mrf.mxu0
    %v1807 = vadd.f32 %v1770, %v1806
    %v1808 = vpop.f32.mrf.mxu0
    %v1809 = vadd.f32 %v1770, %v1808
    %1810 = vdwg.mxu0
    %1811 = vmatpush.bf16.msra.mxu0 0
    %1812 = vmatpush.bf16.msra.mxu0 0
    %1813 = vmatpush.bf16.msra.mxu0 0
    %1814 = vmatpush.bf16.msra.mxu0 0
    %1815 = vmatpush.bf16.msra.mxu0 0
    %1816 = vmatpush.bf16.msra.mxu0 0
    %1817 = vmatpush.bf16.msra.mxu0 %v1789
    %1818 = vmatpush.bf16.msra.mxu0 %v1787
    %1819 = vmatmul.bf16.gmra.mxu0 %v1795
    %v1820 = vpop.f32.mrf.mxu0
    %v1821 = vadd.f32 %v1771, %v1820
    %v1822 = vpop.f32.mrf.mxu0
    %v1823 = vadd.f32 %v1771, %v1822
    %1824 = vdwg.mxu0
    %v1825 = vmul.f32 %v1821, 0.5
    %v1826 = vmul.f32 %v1823, 0.5
    %v1827 = vmul.f32 %v1821, 0.70710677
    %v1828 = vmul.f32 %v1823, 0.70710677
    %v1829 = vand.u32 2147483647, %v1827
    %v1830 = vand.u32 2147483647, %v1828
    %v1831 = vmul.f32 %v1829, 0.3275911
    %v1832 = vmul.f32 %v1830, 0.3275911
    %v1833 = vadd.f32 %v1831, 1.0
    %v1834 = vadd.f32 %v1832, 1.0
    %v1835 = vrcp.pop %v1833
    %v1836 = vmul.f32 %v1833, %v1835
    %v1837 = vsub.f32 1.0, %v1836
    %v1838 = vmul.f32 %v1835, %v1837
    %v1839 = vadd.f32 %v1835, %v1838
    %vm1840 = vweird.f32 %v1833
    %vm1841 = vweird.f32 %v1835
    %vm1842 = vmor %vm1840, %vm1841
    %v1843 = vsel %vm1842, %v1835, %v1839
    %v1844 = vand.u32 2147483647, %v1833
    %vm1845 = vcmp.eq.f32.partialorder %v1844, 8.507059e+37
    %v1846 = vand.u32 %v1833, 2147483648
    %v1847 = vor.u32 1.1754944e-38, %v1846
    %v1848 = vsel %vm1845, %v1847, %v1843
    %v1849 = vmul.f32 1.0, %v1848
    %v1850 = vrcp.pop %v1834
    %v1851 = vmul.f32 %v1834, %v1850
    %v1852 = vsub.f32 1.0, %v1851
    %v1853 = vmul.f32 %v1850, %v1852
    %v1854 = vadd.f32 %v1850, %v1853
    %vm1855 = vweird.f32 %v1834
    %vm1856 = vweird.f32 %v1850
    %vm1857 = vmor %vm1855, %vm1856
    %v1858 = vsel %vm1857, %v1850, %v1854
    %v1859 = vand.u32 2147483647, %v1834
    %vm1860 = vcmp.eq.f32.partialorder %v1859, 8.507059e+37
    %v1861 = vand.u32 %v1834, 2147483648
    %v1862 = vor.u32 1.1754944e-38, %v1861
    %v1863 = vsel %vm1860, %v1862, %v1858
    %v1864 = vmul.f32 1.0, %v1863
    %v1865 = vmul.f32 %v1849, 1.0614054
    %v1866 = vmul.f32 %v1864, 1.0614054
    %v1867 = vsub.f32 %v1865, 1.4531521
    %v1868 = vsub.f32 %v1866, 1.4531521
    %v1869 = vmul.f32 %v1867, %v1849
    %v1870 = vmul.f32 %v1868, %v1864
    %v1871 = vadd.f32 %v1869, 1.4214138
    %v1872 = vadd.f32 %v1870, 1.4214138
    %v1873 = vmul.f32 %v1871, %v1849
    %v1874 = vmul.f32 %v1872, %v1864
    %v1875 = vsub.f32 %v1873, 0.28449672
    %v1876 = vsub.f32 %v1874, 0.28449672
    %v1877 = vmul.f32 %v1875, %v1849
    %v1878 = vmul.f32 %v1876, %v1864
    %v1879 = vadd.f32 %v1877, 0.2548296
    %v1880 = vadd.f32 %v1878, 0.2548296
    %v1881 = vmul.f32 %v1879, %v1849
    %v1882 = vmul.f32 %v1880, %v1864
    %v1883 = vsub.f32 0.0, %v1829
    %v1884 = vsub.f32 0.0, %v1830
    %v1885 = vmul.f32 %v1883, %v1829
    %v1886 = vmul.f32 %v1884, %v1830
    %v1887 = vmul.f32 %v1885, 1.442695
    %v1888 = vpow.pop %v1887
    %v1889 = vmul.f32 %v1886, 1.442695
    %v1890 = vpow.pop %v1889
    %v1891 = vmul.f32 %v1881, %v1888
    %v1892 = vmul.f32 %v1882, %v1890
    %v1893 = vsub.f32 1.0, %v1891
    %v1894 = vsub.f32 1.0, %v1892
    %vm1895 = vcmp.ge.f32.partialorder %v1827, 0.0
    %vm1896 = vcmp.ge.f32.partialorder %v1828, 0.0
    %v1897 = vsub.f32 0.0, %v1893
    %v1898 = vsub.f32 0.0, %v1894
    %v1899 = vsel %vm1895, %v1893, %v1897
    %v1900 = vsel %vm1896, %v1894, %v1898
    %v1901 = vadd.f32 %v1899, 1.0
    %v1902 = vadd.f32 %v1900, 1.0
    %v1903 = vmul.f32 %v1825, %v1901
    %v1904 = vmul.f32 %v1826, %v1902
    %v1905 = vmul.f32 %v1807, %v1903
    %v1906 = vmul.f32 %v1809, %v1904
    %v1907 = vpack.c.bf16 %v1906, %v1905
    %v1908 = vld [vmem:[%s20] sm:$0xf]
    %v1909 = vld [vmem:[%s20 + $0x4] sm:$0xf]
    %v1910 = vld [vmem:[%s20 + $0x8] sm:$0xf]
    %v1911 = vld [vmem:[%s20 + $0xc] sm:$0xf]
    %v1912 = vld [vmem:[%s20 + $0x10] sm:$0xf]
    %v1913 = vld [vmem:[%s20 + $0x14] sm:$0xf]
    %v1914 = vld [vmem:[%s20 + $0x18] sm:$0xf]
    %v1915 = vld [vmem:[%s20 + $0x1c] sm:$0xf]
    %v1916 = vld [vmem:[%s20 + $0x20] sm:$0xf]
    %v1917 = vld [vmem:[%s20 + $0x24] sm:$0xf]
    %v1918 = vld [vmem:[%s20 + $0x28] sm:$0xf]
    %v1919 = vld [vmem:[%s20 + $0x2c] sm:$0xf]
    %v1920 = vld [vmem:[%s20 + $0x30] sm:$0xf]
    %v1921 = vld [vmem:[%s20 + $0x34] sm:$0xf]
    %v1922 = vld [vmem:[%s20 + $0x38] sm:$0xf]
    %v1923 = vld [vmem:[%s20 + $0x3c] sm:$0xf]
    %v1940 = vunpack.c.l.b16 %v1908
    %v1941 = vunpack.c.l.b16 %v1909
    %v1942 = vunpack.c.l.b16 %v1910
    %v1943 = vunpack.c.l.b16 %v1911
    %v1944 = vunpack.c.l.b16 %v1912
    %v1945 = vunpack.c.l.b16 %v1913
    %v1946 = vunpack.c.l.b16 %v1914
    %v1947 = vunpack.c.l.b16 %v1915
    %v1948 = vunpack.c.l.b16 %v1916
    %v1949 = vunpack.c.l.b16 %v1917
    %v1950 = vunpack.c.l.b16 %v1918
    %v1951 = vunpack.c.l.b16 %v1919
    %v1952 = vunpack.c.l.b16 %v1920
    %v1953 = vunpack.c.l.b16 %v1921
    %v1954 = vunpack.c.l.b16 %v1922
    %v1955 = vunpack.c.l.b16 %v1923
    %v1956 = vpack.c.b16 %v1941, %v1940
    %v1957 = vpack.c.b16 %v1943, %v1942
    %v1958 = vpack.c.b16 %v1945, %v1944
    %v1959 = vpack.c.b16 %v1947, %v1946
    %v1960 = vpack.c.b16 %v1949, %v1948
    %v1961 = vpack.c.b16 %v1951, %v1950
    %v1962 = vpack.c.b16 %v1953, %v1952
    %v1963 = vpack.c.b16 %v1955, %v1954
    %1972 = vmatpush.bf16.msra.mxu0 %v1963
    %1973 = vmatpush.bf16.msra.mxu0 %v1962
    %1974 = vmatpush.bf16.msra.mxu0 %v1961
    %1975 = vmatpush.bf16.msra.mxu0 %v1960
    %1976 = vmatpush.bf16.msra.mxu0 %v1959
    %1977 = vmatpush.bf16.msra.mxu0 %v1958
    %1978 = vmatpush.bf16.msra.mxu0 %v1957
    %1979 = vmatpush.bf16.msra.mxu0 %v1956
    %1980 = vmatmul.bf16.gmra.mxu0 %v1907
    %v1981 = vpop.f32.mrf.mxu0
    %v1982 = vadd.f32 0.0, %v1981
    %v1983 = vpop.f32.mrf.mxu0
    %v1984 = vadd.f32 0.0, %v1983
    %1985 = vdwg.mxu0
    %v1986 = vadd.f32 %v1705, %v1982
    %v1987 = vadd.f32 %v1706, %v1984
    %v1988 = vld [vmem:[%s21] sm:$0x1]
    %v1990 = vperm.slane %v1988, 0
    %v1992 = vadd.f32 %v1986, %v1990
    %v1993 = vadd.f32 %v1987, %v1990
    %v1994 = vpack.c.bf16 %v1993, %v1992
    %s1995 = scalar_lea.vmem %s2, 16
    %v1996 = vld [vmem:[%s1995] sm:$0xf]
    %v1997 = vld [vmem:[%s1995 + $0x4] sm:$0xf]
    %v1998 = vld [vmem:[%s1995 + $0x8] sm:$0xf]
    %v1999 = vld [vmem:[%s1995 + $0xc] sm:$0xf]
    %s2000 = scalar_lea.vmem %s3, 1
    %v2001 = vld [vmem:[%s2000] sm:$0x1]
    %v2003 = vperm.slane %v2001, 0
    %v2009 = vunpack.c.l.b16 %v1996
    %v2010 = vunpack.c.l.b16 %v1997
    %v2011 = vunpack.c.l.b16 %v1998
    %v2012 = vunpack.c.l.b16 %v1999
    %v2013 = vpack.c.b16 %v2010, %v2009
    %v2014 = vpack.c.b16 %v2012, %v2011
    %v2018 = vsel %vm227, %v1994, 0
    %2020 = vmatpush.bf16.msra.mxu0 0
    %2021 = vmatpush.bf16.msra.mxu0 0
    %2022 = vmatpush.bf16.msra.mxu0 0
    %2023 = vmatpush.bf16.msra.mxu0 0
    %2024 = vmatpush.bf16.msra.mxu0 0
    %2025 = vmatpush.bf16.msra.mxu0 0
    %2026 = vmatpush.bf16.msra.mxu0 %v2014
    %2027 = vmatpush.bf16.msra.mxu0 %v2013
    %2028 = vmatmul.bf16.gmra.mxu0 %v2018
    %v2029 = vpop.f32.mrf.mxu0
    %v2030 = vadd.f32 %v2003, %v2029
    %v2031 = vpop.f32.mrf.mxu0
    %v2032 = vadd.f32 %v2003, %v2031
    %2033 = vdwg.mxu0
    %s2034 = scalar_lea.vmem [#allocation3], 8
    %v2035 = vld [vmem:[%s2034] sm:$0xf]
    %v2036 = vld [vmem:[%s2034 + $0x4] sm:$0xf]
    %s2037 = scalar_lea.vmem %s5, 1
    %v2038 = vld [vmem:[%s2037] sm:$0x1]
    %v2040 = vperm.slane %v2038, 0
    %v2044 = vunpack.c.l.b16 %v2035
    %v2045 = vunpack.c.l.b16 %v2036
    %v2046 = vpack.c.b16 %v2045, %v2044
    %2048 = vmatpush.bf16.msra.mxu0 0
    %2049 = vmatpush.bf16.msra.mxu0 0
    %2050 = vmatpush.bf16.msra.mxu0 0
    %2051 = vmatpush.bf16.msra.mxu0 0
    %2052 = vmatpush.bf16.msra.mxu0 0
    %2053 = vmatpush.bf16.msra.mxu0 0
    %2054 = vmatpush.bf16.msra.mxu0 0
    %2055 = vmatpush.bf16.msra.mxu0 %v2046
    %2056 = vmatmul.bf16.gmra.mxu0 %v259
    %v2057 = vpop.f32.mrf.mxu0
    %v2058 = vadd.f32 %v2040, %v2057
    %v2059 = vpop.f32.mrf.mxu0
    %v2060 = vadd.f32 %v2040, %v2059
    %2061 = vdwg.mxu0
    %s2062 = scalar_lea.vmem [#allocation5], 8
    %v2063 = vld [vmem:[%s2062] sm:$0xf]
    %v2064 = vld [vmem:[%s2062 + $0x4] sm:$0xf]
    %s2065 = scalar_lea.vmem %s7, 1
    %v2066 = vld [vmem:[%s2065] sm:$0x1]
    %v2068 = vperm.slane %v2066, 0
    %v2072 = vunpack.c.l.b16 %v2063
    %v2073 = vunpack.c.l.b16 %v2064
    %v2074 = vpack.c.b16 %v2073, %v2072
    %2076 = vmatpush.bf16.msra.mxu0 0
    %2077 = vmatpush.bf16.msra.mxu0 0
    %2078 = vmatpush.bf16.msra.mxu0 0
    %2079 = vmatpush.bf16.msra.mxu0 0
    %2080 = vmatpush.bf16.msra.mxu0 0
    %2081 = vmatpush.bf16.msra.mxu0 0
    %2082 = vmatpush.bf16.msra.mxu0 0
    %2083 = vmatpush.bf16.msra.mxu0 %v2074
    %2084 = vmatmul.bf16.gmra.mxu0 %v259
    %v2085 = vpop.f32.mrf.mxu0
    %v2086 = vadd.f32 %v2068, %v2085
    %v2087 = vpop.f32.mrf.mxu0
    %v2088 = vadd.f32 %v2068, %v2087
    %2089 = vdwg.mxu0
    %v2092 = vrot.slane %v2058, 2
    %v2093 = vrot.slane %v2058, 4
    %v2094 = vrot.slane %v2058, 6
    %v2095 = vrot.slane %v2060, 2
    %v2098 = vrot.slane %v2086, 2
    %v2099 = vrot.slane %v2086, 4
    %v2100 = vrot.slane %v2086, 6
    %v2101 = vrot.slane %v2088, 2
    %v2102 = vpack.c.bf16 %v2030, %v2030
    %v2103 = vpack.c.bf16 %v2032, %v2032
    %2104 = vst [vmem:[#allocation1] ss:$4 sm:$0xff] %v2058
    %s2105 = scalar_lea.vmem [#allocation1], 1
    %2106 = vst [vmem:[%s2105] ss:$4 sm:$0xff] %v2092
    %s2107 = scalar_lea.vmem [#allocation1], 2
    %2108 = vst [vmem:[%s2107] ss:$4 sm:$0xff] %v2093
    %v2109 = vld.sshfl [vmem:[#allocation1] sm:$0xff pattern:$0x73625140]
    %s2110 = scalar_lea.vmem [#allocation1], 32
    %2111 = vst [vmem:[%s2110] ss:$4 sm:$0xff] %v2094
    %s2112 = scalar_lea.vmem [#allocation1], 33
    %2113 = vst [vmem:[%s2112] ss:$4 sm:$0xff] %v2060
    %s2114 = scalar_lea.vmem [#allocation1], 34
    %2115 = vst [vmem:[%s2114] ss:$4 sm:$0xff] %v2095
    %v2116 = vld.sshfl [vmem:[#allocation1 + $0x20] sm:$0xff pattern:$0x73625140]
    %v2119 = vpack.c.bf16 %v2109, %v2109
    %v2120 = vpack.c.bf16 %v2116, %v2116
    %2121 = vst [vmem:[#allocation1] ss:$4 sm:$0xff] %v2086
    %s2122 = scalar_lea.vmem [#allocation1], 1
    %2123 = vst [vmem:[%s2122] ss:$4 sm:$0xff] %v2098
    %s2124 = scalar_lea.vmem [#allocation1], 2
    %2125 = vst [vmem:[%s2124] ss:$4 sm:$0xff] %v2099
    %v2126 = vld.sshfl [vmem:[#allocation1] sm:$0xff pattern:$0x73625140]
    %s2127 = scalar_lea.vmem [#allocation1], 32
    %2128 = vst [vmem:[%s2127] ss:$4 sm:$0xff] %v2100
    %s2129 = scalar_lea.vmem [#allocation1], 33
    %2130 = vst [vmem:[%s2129] ss:$4 sm:$0xff] %v2088
    %s2131 = scalar_lea.vmem [#allocation1], 34
    %2132 = vst [vmem:[%s2131] ss:$4 sm:$0xff] %v2101
    %v2133 = vld.sshfl [vmem:[#allocation1 + $0x20] sm:$0xff pattern:$0x73625140]
    %v2136 = vpack.c.bf16 %v2126, %v2126
    %v2137 = vpack.c.bf16 %v2133, %v2133
    %v2139 = vsel %vm349, %v2102, 0
    %v2142 = vsel %vm349, %v2119, 0
    %2144 = vmatpush.bf16.xpose.msra.mxu0 0
    %2145 = vmatpush.bf16.xpose.msra.mxu0 0
    %2146 = vmatpush.bf16.xpose.msra.mxu0 0
    %2147 = vmatpush.bf16.xpose.msra.mxu0 0
    %2148 = vmatpush.bf16.xpose.msra.mxu0 0
    %2149 = vmatpush.bf16.xpose.msra.mxu0 0
    %2150 = vmatpush.bf16.xpose.msra.mxu0 0
    %2151 = vmatpush.bf16.xpose.msra.mxu0 %v2142
    %2152 = vmatmul.bf16.gmra.mxu0 %v2139
    %v2153 = vpop.f32.mrf.mxu0
    %v2154 = vadd.f32 0.0, %v2153
    %v2155 = vpop.f32.mrf.mxu0
    %2156 = vdwg.mxu0
    %v2158 = vsel %vm349, %v2103, 0
    %v2161 = vsel %vm349, %v2120, 0
    %2163 = vmatpush.bf16.xpose.msra.mxu0 0
    %2164 = vmatpush.bf16.xpose.msra.mxu0 0
    %2165 = vmatpush.bf16.xpose.msra.mxu0 0
    %2166 = vmatpush.bf16.xpose.msra.mxu0 0
    %2167 = vmatpush.bf16.xpose.msra.mxu0 0
    %2168 = vmatpush.bf16.xpose.msra.mxu0 0
    %2169 = vmatpush.bf16.xpose.msra.mxu0 0
    %2170 = vmatpush.bf16.xpose.msra.mxu0 %v2161
    %2171 = vmatmul.bf16.gmra.mxu0 %v2158
    %v2172 = vpop.f32.mrf.mxu0
    %v2173 = vadd.f32 0.0, %v2172
    %v2174 = vpop.f32.mrf.mxu0
    %2175 = vdwg.mxu0
    %v2176 = vsel %vm388, %v2154, -inf
    %2177 = vmax.xlane.f32.xlu0 %v2176
    %v2178 = vpop.xlane.xlu0 %2177
    %v2179 = vsel %vm388, %v2173, -inf
    %2180 = vmax.xlane.f32.xlu0 %v2179
    %v2181 = vpop.xlane.xlu0 %2180
    %v2182 = vsub.f32 %v2154, %v2178
    %v2183 = vsub.f32 %v2173, %v2181
    %v2184 = vmul.f32 %v2182, 1.442695
    %v2185 = vpow.pop %v2184
    %v2186 = vmul.f32 %v2183, 1.442695
    %v2187 = vpow.pop %v2186
    %v2188 = vsel %vm388, %v2185, 0.0
    %2189 = vadd.xlane.f32.xlu0 %v2188
    %v2190 = vpop.xlane.xlu0 %2189
    %v2191 = vsel %vm388, %v2187, 0.0
    %2192 = vadd.xlane.f32.xlu0 %v2191
    %v2193 = vpop.xlane.xlu0 %2192
    %v2194 = vrcp.pop %v2190
    %v2195 = vrcp.pop %v2193
    %v2196 = vmul.f32 %v2185, %v2194
    %v2197 = vmul.f32 %v2187, %v2195
    %v2198 = vpack.c.bf16 %v2196, %v2196
    %v2199 = vpack.c.bf16 %v2197, %v2197
    %v2201 = vsel %vm388, %v2198, 0
    %v2204 = vsel %vm416, %v2136, 0
    %2206 = vmatpush.bf16.msra.mxu0 0
    %2207 = vmatpush.bf16.msra.mxu0 0
    %2208 = vmatpush.bf16.msra.mxu0 0
    %2209 = vmatpush.bf16.msra.mxu0 0
    %2210 = vmatpush.bf16.msra.mxu0 0
    %2211 = vmatpush.bf16.msra.mxu0 0
    %2212 = vmatpush.bf16.msra.mxu0 0
    %2213 = vmatpush.bf16.msra.mxu0 %v2204
    %2214 = vmatmul.bf16.gmra.mxu0 %v2201
    %v2215 = vpop.f32.mrf.mxu0
    %v2216 = vadd.f32 0.0, %v2215
    %v2217 = vpop.f32.mrf.mxu0
    %2218 = vdwg.mxu0
    %v2220 = vsel %vm388, %v2199, 0
    %v2223 = vsel %vm416, %v2137, 0
    %2225 = vmatpush.bf16.msra.mxu0 0
    %2226 = vmatpush.bf16.msra.mxu0 0
    %2227 = vmatpush.bf16.msra.mxu0 0
    %2228 = vmatpush.bf16.msra.mxu0 0
    %2229 = vmatpush.bf16.msra.mxu0 0
    %2230 = vmatpush.bf16.msra.mxu0 0
    %2231 = vmatpush.bf16.msra.mxu0 0
    %2232 = vmatpush.bf16.msra.mxu0 %v2223
    %2233 = vmatmul.bf16.gmra.mxu0 %v2220
    %v2234 = vpop.f32.mrf.mxu0
    %v2235 = vadd.f32 0.0, %v2234
    %v2236 = vpop.f32.mrf.mxu0
    %2237 = vdwg.mxu0
    %2238 = vst [vmem:[#allocation1] ss:$4 sm:$0xff] %v2058
    %s2239 = scalar_lea.vmem [#allocation1], 1
    %2240 = vst [vmem:[%s2239] ss:$4 sm:$0xff] %v2092
    %s2241 = scalar_lea.vmem [#allocation1], 2
    %2242 = vst [vmem:[%s2241] ss:$4 sm:$0xff] %v2093
    %v2243 = vld.sshfl [vmem:[#allocation1] sm:$0xff pattern:$0x73625140]
    %s2244 = scalar_lea.vmem [#allocation1], 32
    %2245 = vst [vmem:[%s2244] ss:$4 sm:$0xff] %v2094
    %s2246 = scalar_lea.vmem [#allocation1], 33
    %2247 = vst [vmem:[%s2246] ss:$4 sm:$0xff] %v2060
    %s2248 = scalar_lea.vmem [#allocation1], 34
    %2249 = vst [vmem:[%s2248] ss:$4 sm:$0xff] %v2095
    %v2250 = vld.sshfl [vmem:[#allocation1 + $0x20] sm:$0xff pattern:$0x73625140]
    %v2253 = vpack.c.bf16 %v2243, %v2243
    %v2254 = vpack.c.bf16 %v2250, %v2250
    %2255 = vst [vmem:[#allocation1] ss:$4 sm:$0xff] %v2086
    %s2256 = scalar_lea.vmem [#allocation1], 1
    %2257 = vst [vmem:[%s2256] ss:$4 sm:$0xff] %v2098
    %s2258 = scalar_lea.vmem [#allocation1], 2
    %2259 = vst [vmem:[%s2258] ss:$4 sm:$0xff] %v2099
    %v2260 = vld.sshfl [vmem:[#allocation1] sm:$0xff pattern:$0x73625140]
    %s2261 = scalar_lea.vmem [#allocation1], 32
    %2262 = vst [vmem:[%s2261] ss:$4 sm:$0xff] %v2100
    %s2263 = scalar_lea.vmem [#allocation1], 33
    %2264 = vst [vmem:[%s2263] ss:$4 sm:$0xff] %v2088
    %s2265 = scalar_lea.vmem [#allocation1], 34
    %2266 = vst [vmem:[%s2265] ss:$4 sm:$0xff] %v2101
    %v2267 = vld.sshfl [vmem:[#allocation1 + $0x20] sm:$0xff pattern:$0x73625140]
    %v2270 = vpack.c.bf16 %v2260, %v2260
    %v2271 = vpack.c.bf16 %v2267, %v2267
    %v2273 = vunpack.c.l.b16 %v2102
    %v2274 = vpack.c.b16 %v2273, %v2273
    %2275 = vrot.lane.b32.xlu0 %v2274, 120
    %v2276 = vpop.permute.xlu0 %2275
    %v2278 = vunpack.c.l.b16 %v2253
    %v2279 = vpack.c.b16 %v2278, %v2278
    %2280 = vrot.lane.b32.xlu0 %v2279, 120
    %v2281 = vpop.permute.xlu0 %2280
    %v2283 = vsel %vm349, %v2276, 0
    %v2286 = vsel %vm349, %v2281, 0
    %2288 = vmatpush.bf16.xpose.msra.mxu0 0
    %2289 = vmatpush.bf16.xpose.msra.mxu0 0
    %2290 = vmatpush.bf16.xpose.msra.mxu0 0
    %2291 = vmatpush.bf16.xpose.msra.mxu0 0
    %2292 = vmatpush.bf16.xpose.msra.mxu0 0
    %2293 = vmatpush.bf16.xpose.msra.mxu0 0
    %2294 = vmatpush.bf16.xpose.msra.mxu0 0
    %2295 = vmatpush.bf16.xpose.msra.mxu0 %v2286
    %2296 = vmatmul.bf16.gmra.mxu0 %v2283
    %v2297 = vpop.f32.mrf.mxu0
    %v2298 = vadd.f32 0.0, %v2297
    %v2299 = vpop.f32.mrf.mxu0
    %2300 = vdwg.mxu0
    %v2302 = vunpack.c.l.b16 %v2103
    %v2303 = vpack.c.b16 %v2302, %v2302
    %2304 = vrot.lane.b32.xlu0 %v2303, 120
    %v2305 = vpop.permute.xlu0 %2304
    %v2307 = vunpack.c.l.b16 %v2254
    %v2308 = vpack.c.b16 %v2307, %v2307
    %2309 = vrot.lane.b32.xlu0 %v2308, 120
    %v2310 = vpop.permute.xlu0 %2309
    %v2312 = vsel %vm349, %v2305, 0
    %v2315 = vsel %vm349, %v2310, 0
    %2317 = vmatpush.bf16.xpose.msra.mxu0 0
    %2318 = vmatpush.bf16.xpose.msra.mxu0 0
    %2319 = vmatpush.bf16.xpose.msra.mxu0 0
    %2320 = vmatpush.bf16.xpose.msra.mxu0 0
    %2321 = vmatpush.bf16.xpose.msra.mxu0 0
    %2322 = vmatpush.bf16.xpose.msra.mxu0 0
    %2323 = vmatpush.bf16.xpose.msra.mxu0 0
    %2324 = vmatpush.bf16.xpose.msra.mxu0 %v2315
    %2325 = vmatmul.bf16.gmra.mxu0 %v2312
    %v2326 = vpop.f32.mrf.mxu0
    %v2327 = vadd.f32 0.0, %v2326
    %v2328 = vpop.f32.mrf.mxu0
    %2329 = vdwg.mxu0
    %v2330 = vsel %vm388, %v2298, -inf
    %2331 = vmax.xlane.f32.xlu0 %v2330
    %v2332 = vpop.xlane.xlu0 %2331
    %v2333 = vsel %vm388, %v2327, -inf
    %2334 = vmax.xlane.f32.xlu0 %v2333
    %v2335 = vpop.xlane.xlu0 %2334
    %v2336 = vsub.f32 %v2298, %v2332
    %v2337 = vsub.f32 %v2327, %v2335
    %v2338 = vmul.f32 %v2336, 1.442695
    %v2339 = vpow.pop %v2338
    %v2340 = vmul.f32 %v2337, 1.442695
    %v2341 = vpow.pop %v2340
    %v2342 = vsel %vm388, %v2339, 0.0
    %2343 = vadd.xlane.f32.xlu0 %v2342
    %v2344 = vpop.xlane.xlu0 %2343
    %v2345 = vsel %vm388, %v2341, 0.0
    %2346 = vadd.xlane.f32.xlu0 %v2345
    %v2347 = vpop.xlane.xlu0 %2346
    %v2348 = vrcp.pop %v2344
    %v2349 = vrcp.pop %v2347
    %v2350 = vmul.f32 %v2339, %v2348
    %v2351 = vmul.f32 %v2341, %v2349
    %v2352 = vpack.c.bf16 %v2350, %v2350
    %v2353 = vpack.c.bf16 %v2351, %v2351
    %v2355 = vunpack.c.l.b16 %v2270
    %v2356 = vpack.c.b16 %v2355, %v2355
    %2357 = vrot.lane.b32.xlu0 %v2356, 120
    %v2358 = vpop.permute.xlu0 %2357
    %v2360 = vsel %vm388, %v2352, 0
    %v2363 = vsel %vm416, %v2358, 0
    %2365 = vmatpush.bf16.msra.mxu0 0
    %2366 = vmatpush.bf16.msra.mxu0 0
    %2367 = vmatpush.bf16.msra.mxu0 0
    %2368 = vmatpush.bf16.msra.mxu0 0
    %2369 = vmatpush.bf16.msra.mxu0 0
    %2370 = vmatpush.bf16.msra.mxu0 0
    %2371 = vmatpush.bf16.msra.mxu0 0
    %2372 = vmatpush.bf16.msra.mxu0 %v2363
    %2373 = vmatmul.bf16.gmra.mxu0 %v2360
    %v2374 = vpop.f32.mrf.mxu0
    %v2375 = vadd.f32 0.0, %v2374
    %v2376 = vpop.f32.mrf.mxu0
    %2377 = vdwg.mxu0
    %v2379 = vunpack.c.l.b16 %v2271
    %v2380 = vpack.c.b16 %v2379, %v2379
    %2381 = vrot.lane.b32.xlu0 %v2380, 120
    %v2382 = vpop.permute.xlu0 %2381
    %v2384 = vsel %vm388, %v2353, 0
    %v2387 = vsel %vm416, %v2382, 0
    %2389 = vmatpush.bf16.msra.mxu0 0
    %2390 = vmatpush.bf16.msra.mxu0 0
    %2391 = vmatpush.bf16.msra.mxu0 0
    %2392 = vmatpush.bf16.msra.mxu0 0
    %2393 = vmatpush.bf16.msra.mxu0 0
    %2394 = vmatpush.bf16.msra.mxu0 0
    %2395 = vmatpush.bf16.msra.mxu0 0
    %2396 = vmatpush.bf16.msra.mxu0 %v2387
    %2397 = vmatmul.bf16.gmra.mxu0 %v2384
    %v2398 = vpop.f32.mrf.mxu0
    %v2399 = vadd.f32 0.0, %v2398
    %v2400 = vpop.f32.mrf.mxu0
    %2401 = vdwg.mxu0
    %2402 = vst [vmem:[#allocation1] ss:$4 sm:$0xff] %v2058
    %s2403 = scalar_lea.vmem [#allocation1], 1
    %2404 = vst [vmem:[%s2403] ss:$4 sm:$0xff] %v2092
    %s2405 = scalar_lea.vmem [#allocation1], 2
    %2406 = vst [vmem:[%s2405] ss:$4 sm:$0xff] %v2093
    %v2407 = vld.sshfl [vmem:[#allocation1] sm:$0xff pattern:$0x73625140]
    %s2408 = scalar_lea.vmem [#allocation1], 32
    %2409 = vst [vmem:[%s2408] ss:$4 sm:$0xff] %v2094
    %s2410 = scalar_lea.vmem [#allocation1], 33
    %2411 = vst [vmem:[%s2410] ss:$4 sm:$0xff] %v2060
    %s2412 = scalar_lea.vmem [#allocation1], 34
    %2413 = vst [vmem:[%s2412] ss:$4 sm:$0xff] %v2095
    %v2414 = vld.sshfl [vmem:[#allocation1 + $0x20] sm:$0xff pattern:$0x73625140]
    %v2417 = vpack.c.bf16 %v2407, %v2407
    %v2418 = vpack.c.bf16 %v2414, %v2414
    %2419 = vst [vmem:[#allocation1] ss:$4 sm:$0xff] %v2086
    %s2420 = scalar_lea.vmem [#allocation1], 1
    %2421 = vst [vmem:[%s2420] ss:$4 sm:$0xff] %v2098
    %s2422 = scalar_lea.vmem [#allocation1], 2
    %2423 = vst [vmem:[%s2422] ss:$4 sm:$0xff] %v2099
    %v2424 = vld.sshfl [vmem:[#allocation1] sm:$0xff pattern:$0x73625140]
    %s2425 = scalar_lea.vmem [#allocation1], 32
    %2426 = vst [vmem:[%s2425] ss:$4 sm:$0xff] %v2100
    %s2427 = scalar_lea.vmem [#allocation1], 33
    %2428 = vst [vmem:[%s2427] ss:$4 sm:$0xff] %v2088
    %s2429 = scalar_lea.vmem [#allocation1], 34
    %2430 = vst [vmem:[%s2429] ss:$4 sm:$0xff] %v2101
    %v2431 = vld.sshfl [vmem:[#allocation1 + $0x20] sm:$0xff pattern:$0x73625140]
    %v2434 = vpack.c.bf16 %v2424, %v2424
    %v2435 = vpack.c.bf16 %v2431, %v2431
    %2436 = vrot.lane.b32.xlu0 %v2274, 112
    %v2437 = vpop.permute.xlu0 %2436
    %v2439 = vunpack.c.l.b16 %v2417
    %v2440 = vpack.c.b16 %v2439, %v2439
    %2441 = vrot.lane.b32.xlu0 %v2440, 112
    %v2442 = vpop.permute.xlu0 %2441
    %v2444 = vsel %vm349, %v2437, 0
    %v2447 = vsel %vm349, %v2442, 0
    %2449 = vmatpush.bf16.xpose.msra.mxu0 0
    %2450 = vmatpush.bf16.xpose.msra.mxu0 0
    %2451 = vmatpush.bf16.xpose.msra.mxu0 0
    %2452 = vmatpush.bf16.xpose.msra.mxu0 0
    %2453 = vmatpush.bf16.xpose.msra.mxu0 0
    %2454 = vmatpush.bf16.xpose.msra.mxu0 0
    %2455 = vmatpush.bf16.xpose.msra.mxu0 0
    %2456 = vmatpush.bf16.xpose.msra.mxu0 %v2447
    %2457 = vmatmul.bf16.gmra.mxu0 %v2444
    %v2458 = vpop.f32.mrf.mxu0
    %v2459 = vadd.f32 0.0, %v2458
    %v2460 = vpop.f32.mrf.mxu0
    %2461 = vdwg.mxu0
    %2462 = vrot.lane.b32.xlu0 %v2303, 112
    %v2463 = vpop.permute.xlu0 %2462
    %v2465 = vunpack.c.l.b16 %v2418
    %v2466 = vpack.c.b16 %v2465, %v2465
    %2467 = vrot.lane.b32.xlu0 %v2466, 112
    %v2468 = vpop.permute.xlu0 %2467
    %v2470 = vsel %vm349, %v2463, 0
    %v2473 = vsel %vm349, %v2468, 0
    %2475 = vmatpush.bf16.xpose.msra.mxu0 0
    %2476 = vmatpush.bf16.xpose.msra.mxu0 0
    %2477 = vmatpush.bf16.xpose.msra.mxu0 0
    %2478 = vmatpush.bf16.xpose.msra.mxu0 0
    %2479 = vmatpush.bf16.xpose.msra.mxu0 0
    %2480 = vmatpush.bf16.xpose.msra.mxu0 0
    %2481 = vmatpush.bf16.xpose.msra.mxu0 0
    %2482 = vmatpush.bf16.xpose.msra.mxu0 %v2473
    %2483 = vmatmul.bf16.gmra.mxu0 %v2470
    %v2484 = vpop.f32.mrf.mxu0
    %v2485 = vadd.f32 0.0, %v2484
    %v2486 = vpop.f32.mrf.mxu0
    %2487 = vdwg.mxu0
    %v2488 = vsel %vm388, %v2459, -inf
    %2489 = vmax.xlane.f32.xlu0 %v2488
    %v2490 = vpop.xlane.xlu0 %2489
    %v2491 = vsel %vm388, %v2485, -inf
    %2492 = vmax.xlane.f32.xlu0 %v2491
    %v2493 = vpop.xlane.xlu0 %2492
    %v2494 = vsub.f32 %v2459, %v2490
    %v2495 = vsub.f32 %v2485, %v2493
    %v2496 = vmul.f32 %v2494, 1.442695
    %v2497 = vpow.pop %v2496
    %v2498 = vmul.f32 %v2495, 1.442695
    %v2499 = vpow.pop %v2498
    %v2500 = vsel %vm388, %v2497, 0.0
    %2501 = vadd.xlane.f32.xlu0 %v2500
    %v2502 = vpop.xlane.xlu0 %2501
    %v2503 = vsel %vm388, %v2499, 0.0
    %2504 = vadd.xlane.f32.xlu0 %v2503
    %v2505 = vpop.xlane.xlu0 %2504
    %v2506 = vrcp.pop %v2502
    %v2507 = vrcp.pop %v2505
    %v2508 = vmul.f32 %v2497, %v2506
    %v2509 = vmul.f32 %v2499, %v2507
    %v2510 = vpack.c.bf16 %v2508, %v2508
    %v2511 = vpack.c.bf16 %v2509, %v2509
    %v2513 = vunpack.c.l.b16 %v2434
    %v2514 = vpack.c.b16 %v2513, %v2513
    %2515 = vrot.lane.b32.xlu0 %v2514, 112
    %v2516 = vpop.permute.xlu0 %2515
    %v2518 = vsel %vm388, %v2510, 0
    %v2521 = vsel %vm416, %v2516, 0
    %2523 = vmatpush.bf16.msra.mxu0 0
    %2524 = vmatpush.bf16.msra.mxu0 0
    %2525 = vmatpush.bf16.msra.mxu0 0
    %2526 = vmatpush.bf16.msra.mxu0 0
    %2527 = vmatpush.bf16.msra.mxu0 0
    %2528 = vmatpush.bf16.msra.mxu0 0
    %2529 = vmatpush.bf16.msra.mxu0 0
    %2530 = vmatpush.bf16.msra.mxu0 %v2521
    %2531 = vmatmul.bf16.gmra.mxu0 %v2518
    %v2532 = vpop.f32.mrf.mxu0
    %v2533 = vadd.f32 0.0, %v2532
    %v2534 = vpop.f32.mrf.mxu0
    %2535 = vdwg.mxu0
    %v2537 = vunpack.c.l.b16 %v2435
    %v2538 = vpack.c.b16 %v2537, %v2537
    %2539 = vrot.lane.b32.xlu0 %v2538, 112
    %v2540 = vpop.permute.xlu0 %2539
    %v2542 = vsel %vm388, %v2511, 0
    %v2545 = vsel %vm416, %v2540, 0
    %2547 = vmatpush.bf16.msra.mxu0 0
    %2548 = vmatpush.bf16.msra.mxu0 0
    %2549 = vmatpush.bf16.msra.mxu0 0
    %2550 = vmatpush.bf16.msra.mxu0 0
    %2551 = vmatpush.bf16.msra.mxu0 0
    %2552 = vmatpush.bf16.msra.mxu0 0
    %2553 = vmatpush.bf16.msra.mxu0 0
    %2554 = vmatpush.bf16.msra.mxu0 %v2545
    %2555 = vmatmul.bf16.gmra.mxu0 %v2542
    %v2556 = vpop.f32.mrf.mxu0
    %v2557 = vadd.f32 0.0, %v2556
    %v2558 = vpop.f32.mrf.mxu0
    %2559 = vdwg.mxu0
    %2560 = vst [vmem:[#allocation1] ss:$4 sm:$0xff] %v2058
    %s2561 = scalar_lea.vmem [#allocation1], 1
    %2562 = vst [vmem:[%s2561] ss:$4 sm:$0xff] %v2092
    %s2563 = scalar_lea.vmem [#allocation1], 2
    %2564 = vst [vmem:[%s2563] ss:$4 sm:$0xff] %v2093
    %v2565 = vld.sshfl [vmem:[#allocation1] sm:$0xff pattern:$0x73625140]
    %s2566 = scalar_lea.vmem [#allocation1], 32
    %2567 = vst [vmem:[%s2566] ss:$4 sm:$0xff] %v2094
    %s2568 = scalar_lea.vmem [#allocation1], 33
    %2569 = vst [vmem:[%s2568] ss:$4 sm:$0xff] %v2060
    %s2570 = scalar_lea.vmem [#allocation1], 34
    %2571 = vst [vmem:[%s2570] ss:$4 sm:$0xff] %v2095
    %v2572 = vld.sshfl [vmem:[#allocation1 + $0x20] sm:$0xff pattern:$0x73625140]
    %v2575 = vpack.c.bf16 %v2565, %v2565
    %v2576 = vpack.c.bf16 %v2572, %v2572
    %2577 = vst [vmem:[#allocation1] ss:$4 sm:$0xff] %v2086
    %s2578 = scalar_lea.vmem [#allocation1], 1
    %2579 = vst [vmem:[%s2578] ss:$4 sm:$0xff] %v2098
    %s2580 = scalar_lea.vmem [#allocation1], 2
    %2581 = vst [vmem:[%s2580] ss:$4 sm:$0xff] %v2099
    %v2582 = vld.sshfl [vmem:[#allocation1] sm:$0xff pattern:$0x73625140]
    %s2583 = scalar_lea.vmem [#allocation1], 32
    %2584 = vst [vmem:[%s2583] ss:$4 sm:$0xff] %v2100
    %s2585 = scalar_lea.vmem [#allocation1], 33
    %2586 = vst [vmem:[%s2585] ss:$4 sm:$0xff] %v2088
    %s2587 = scalar_lea.vmem [#allocation1], 34
    %2588 = vst [vmem:[%s2587] ss:$4 sm:$0xff] %v2101
    %v2589 = vld.sshfl [vmem:[#allocation1 + $0x20] sm:$0xff pattern:$0x73625140]
    %v2592 = vpack.c.bf16 %v2582, %v2582
    %v2593 = vpack.c.bf16 %v2589, %v2589
    %2594 = vrot.lane.b32.xlu0 %v2274, 104
    %v2595 = vpop.permute.xlu0 %2594
    %v2597 = vunpack.c.l.b16 %v2575
    %v2598 = vpack.c.b16 %v2597, %v2597
    %2599 = vrot.lane.b32.xlu0 %v2598, 104
    %v2600 = vpop.permute.xlu0 %2599
    %v2602 = vsel %vm349, %v2595, 0
    %v2605 = vsel %vm349, %v2600, 0
    %2607 = vmatpush.bf16.xpose.msra.mxu0 0
    %2608 = vmatpush.bf16.xpose.msra.mxu0 0
    %2609 = vmatpush.bf16.xpose.msra.mxu0 0
    %2610 = vmatpush.bf16.xpose.msra.mxu0 0
    %2611 = vmatpush.bf16.xpose.msra.mxu0 0
    %2612 = vmatpush.bf16.xpose.msra.mxu0 0
    %2613 = vmatpush.bf16.xpose.msra.mxu0 0
    %2614 = vmatpush.bf16.xpose.msra.mxu0 %v2605
    %2615 = vmatmul.bf16.gmra.mxu0 %v2602
    %v2616 = vpop.f32.mrf.mxu0
    %v2617 = vadd.f32 0.0, %v2616
    %v2618 = vpop.f32.mrf.mxu0
    %2619 = vdwg.mxu0
    %2620 = vrot.lane.b32.xlu0 %v2303, 104
    %v2621 = vpop.permute.xlu0 %2620
    %v2623 = vunpack.c.l.b16 %v2576
    %v2624 = vpack.c.b16 %v2623, %v2623
    %2625 = vrot.lane.b32.xlu0 %v2624, 104
    %v2626 = vpop.permute.xlu0 %2625
    %v2628 = vsel %vm349, %v2621, 0
    %v2631 = vsel %vm349, %v2626, 0
    %2633 = vmatpush.bf16.xpose.msra.mxu0 0
    %2634 = vmatpush.bf16.xpose.msra.mxu0 0
    %2635 = vmatpush.bf16.xpose.msra.mxu0 0
    %2636 = vmatpush.bf16.xpose.msra.mxu0 0
    %2637 = vmatpush.bf16.xpose.msra.mxu0 0
    %2638 = vmatpush.bf16.xpose.msra.mxu0 0
    %2639 = vmatpush.bf16.xpose.msra.mxu0 0
    %2640 = vmatpush.bf16.xpose.msra.mxu0 %v2631
    %2641 = vmatmul.bf16.gmra.mxu0 %v2628
    %v2642 = vpop.f32.mrf.mxu0
    %v2643 = vadd.f32 0.0, %v2642
    %v2644 = vpop.f32.mrf.mxu0
    %2645 = vdwg.mxu0
    %v2646 = vsel %vm388, %v2617, -inf
    %2647 = vmax.xlane.f32.xlu0 %v2646
    %v2648 = vpop.xlane.xlu0 %2647
    %v2649 = vsel %vm388, %v2643, -inf
    %2650 = vmax.xlane.f32.xlu0 %v2649
    %v2651 = vpop.xlane.xlu0 %2650
    %v2652 = vsub.f32 %v2617, %v2648
    %v2653 = vsub.f32 %v2643, %v2651
    %v2654 = vmul.f32 %v2652, 1.442695
    %v2655 = vpow.pop %v2654
    %v2656 = vmul.f32 %v2653, 1.442695
    %v2657 = vpow.pop %v2656
    %v2658 = vsel %vm388, %v2655, 0.0
    %2659 = vadd.xlane.f32.xlu0 %v2658
    %v2660 = vpop.xlane.xlu0 %2659
    %v2661 = vsel %vm388, %v2657, 0.0
    %2662 = vadd.xlane.f32.xlu0 %v2661
    %v2663 = vpop.xlane.xlu0 %2662
    %v2664 = vrcp.pop %v2660
    %v2665 = vrcp.pop %v2663
    %v2666 = vmul.f32 %v2655, %v2664
    %v2667 = vmul.f32 %v2657, %v2665
    %v2668 = vpack.c.bf16 %v2666, %v2666
    %v2669 = vpack.c.bf16 %v2667, %v2667
    %v2671 = vunpack.c.l.b16 %v2592
    %v2672 = vpack.c.b16 %v2671, %v2671
    %2673 = vrot.lane.b32.xlu0 %v2672, 104
    %v2674 = vpop.permute.xlu0 %2673
    %v2676 = vsel %vm388, %v2668, 0
    %v2679 = vsel %vm416, %v2674, 0
    %2681 = vmatpush.bf16.msra.mxu0 0
    %2682 = vmatpush.bf16.msra.mxu0 0
    %2683 = vmatpush.bf16.msra.mxu0 0
    %2684 = vmatpush.bf16.msra.mxu0 0
    %2685 = vmatpush.bf16.msra.mxu0 0
    %2686 = vmatpush.bf16.msra.mxu0 0
    %2687 = vmatpush.bf16.msra.mxu0 0
    %2688 = vmatpush.bf16.msra.mxu0 %v2679
    %2689 = vmatmul.bf16.gmra.mxu0 %v2676
    %v2690 = vpop.f32.mrf.mxu0
    %v2691 = vadd.f32 0.0, %v2690
    %v2692 = vpop.f32.mrf.mxu0
    %2693 = vdwg.mxu0
    %v2695 = vunpack.c.l.b16 %v2593
    %v2696 = vpack.c.b16 %v2695, %v2695
    %2697 = vrot.lane.b32.xlu0 %v2696, 104
    %v2698 = vpop.permute.xlu0 %2697
    %v2700 = vsel %vm388, %v2669, 0
    %v2703 = vsel %vm416, %v2698, 0
    %2705 = vmatpush.bf16.msra.mxu0 0
    %2706 = vmatpush.bf16.msra.mxu0 0
    %2707 = vmatpush.bf16.msra.mxu0 0
    %2708 = vmatpush.bf16.msra.mxu0 0
    %2709 = vmatpush.bf16.msra.mxu0 0
    %2710 = vmatpush.bf16.msra.mxu0 0
    %2711 = vmatpush.bf16.msra.mxu0 0
    %2712 = vmatpush.bf16.msra.mxu0 %v2703
    %2713 = vmatmul.bf16.gmra.mxu0 %v2700
    %v2714 = vpop.f32.mrf.mxu0
    %v2715 = vadd.f32 0.0, %v2714
    %v2716 = vpop.f32.mrf.mxu0
    %2717 = vdwg.mxu0
    %2720 = vrot.lane.b32.xlu0 %v2375, 8
    %v2721 = vpop.permute.xlu0 %2720
    %2722 = vrot.lane.b32.xlu0 %v2399, 8
    %v2723 = vpop.permute.xlu0 %2722
    %2728 = vrot.lane.b32.xlu0 %v2533, 16
    %v2729 = vpop.permute.xlu0 %2728
    %2730 = vrot.lane.b32.xlu0 %v2557, 16
    %v2731 = vpop.permute.xlu0 %2730
    %2736 = vrot.lane.b32.xlu0 %v2691, 24
    %v2737 = vpop.permute.xlu0 %2736
    %2738 = vrot.lane.b32.xlu0 %v2715, 24
    %v2739 = vpop.permute.xlu0 %2738
    %v2742 = vsel %vm349, %v2216, %v2721
    %v2743 = vsel %vm349, %v2235, %v2723
    %v2744 = vsel %vm257, %v2742, %v2729
    %v2745 = vsel %vm257, %v2743, %v2731
    %v2746 = vsel %vm960, %v2744, %v2737
    %v2747 = vsel %vm960, %v2745, %v2739
    %v2748 = vpack.c.bf16 %v2747, %v2746
    %s2749 = scalar_lea.vmem %s8, 16
    %v2750 = vld [vmem:[%s2749] sm:$0xf]
    %v2751 = vld [vmem:[%s2749 + $0x4] sm:$0xf]
    %v2752 = vld [vmem:[%s2749 + $0x8] sm:$0xf]
    %v2753 = vld [vmem:[%s2749 + $0xc] sm:$0xf]
    %v2758 = vunpack.c.l.b16 %v2750
    %v2759 = vunpack.c.l.b16 %v2751
    %v2760 = vunpack.c.l.b16 %v2752
    %v2761 = vunpack.c.l.b16 %v2753
    %v2762 = vpack.c.b16 %v2759, %v2758
    %v2763 = vpack.c.b16 %v2761, %v2760
    %v2767 = vsel %vm227, %v2748, 0
    %2769 = vmatpush.bf16.msra.mxu0 0
    %2770 = vmatpush.bf16.msra.mxu0 0
    %2771 = vmatpush.bf16.msra.mxu0 0
    %2772 = vmatpush.bf16.msra.mxu0 0
    %2773 = vmatpush.bf16.msra.mxu0 0
    %2774 = vmatpush.bf16.msra.mxu0 0
    %2775 = vmatpush.bf16.msra.mxu0 %v2763
    %2776 = vmatpush.bf16.msra.mxu0 %v2762
    %2777 = vmatmul.bf16.gmra.mxu0 %v2767
    %v2778 = vpop.f32.mrf.mxu0
    %v2779 = vadd.f32 0.0, %v2778
    %v2780 = vpop.f32.mrf.mxu0
    %v2781 = vadd.f32 0.0, %v2780
    %2782 = vdwg.mxu0
    %v2783 = vadd.f32 %v1992, %v2779
    %v2784 = vadd.f32 %v1993, %v2781
    %s2785 = scalar_lea.vmem %s9, 1
    %v2786 = vld [vmem:[%s2785] sm:$0x1]
    %v2788 = vperm.slane %v2786, 0
    %v2790 = vadd.f32 %v2783, %v2788
    %v2791 = vadd.f32 %v2784, %v2788
    %s2792 = scalar_lea.vmem [#allocation7], 1
    %v2793 = vld [vmem:[%s2792] sm:$0x1]
    %s2794 = scalar_lea.vmem [#allocation8], 1
    %v2795 = vld [vmem:[%s2794] sm:$0x1]
    %v2796 = vsel %vm227, %v2790, 0.0
    %2797 = vadd.xlane.f32.xlu0 %v2796
    %v2798 = vpop.xlane.xlu0 %2797
    %v2799 = vsel %vm227, %v2791, 0.0
    %2800 = vadd.xlane.f32.xlu0 %v2799
    %v2801 = vpop.xlane.xlu0 %2800
    %v2802 = vmul.f32 %v2798, %v1019
    %v2803 = vmul.f32 %v2801, %v1019
    %v2804 = vsub.f32 %v2790, %v2802
    %v2805 = vsub.f32 %v2791, %v2803
    %v2806 = vmul.f32 %v2804, %v2804
    %v2807 = vmul.f32 %v2805, %v2805
    %v2808 = vsel %vm227, %v2806, 0.0
    %2809 = vadd.xlane.f32.xlu0 %v2808
    %v2810 = vpop.xlane.xlu0 %2809
    %v2811 = vsel %vm227, %v2807, 0.0
    %2812 = vadd.xlane.f32.xlu0 %v2811
    %v2813 = vpop.xlane.xlu0 %2812
    %v2814 = vmul.f32 %v2810, %v1019
    %v2815 = vmul.f32 %v2813, %v1019
    %v2816 = vadd.f32 %v2814, 1e-05
    %v2817 = vadd.f32 %v2815, 1e-05
    %v2818 = vrsqrt.pop %v2816
    %v2819 = vmul.f32 %v2818, %v2816
    %v2820 = vmul.f32 %v2819, %v2818
    %v2821 = vmul.f32 0.5, %v2820
    %v2822 = vsub.f32 1.5, %v2821
    %v2823 = vmul.f32 %v2818, %v2822
    %vm2824 = vweird.f32 %v2816
    %vm2825 = vweird.f32 %v2818
    %vm2826 = vmor %vm2824, %vm2825
    %v2827 = vsel %vm2826, %v2818, %v2823
    %v2828 = vrsqrt.pop %v2817
    %v2829 = vmul.f32 %v2828, %v2817
    %v2830 = vmul.f32 %v2829, %v2828
    %v2831 = vmul.f32 0.5, %v2830
    %v2832 = vsub.f32 1.5, %v2831
    %v2833 = vmul.f32 %v2828, %v2832
    %vm2834 = vweird.f32 %v2817
    %vm2835 = vweird.f32 %v2828
    %vm2836 = vmor %vm2834, %vm2835
    %v2837 = vsel %vm2836, %v2828, %v2833
    %v2838 = vmul.f32 %v2804, %v2827
    %v2839 = vmul.f32 %v2805, %v2837
    %v2841 = vperm.slane %v2793, 0
    %v2843 = vmul.f32 %v2838, %v2841
    %v2844 = vmul.f32 %v2839, %v2841
    %v2846 = vperm.slane %v2795, 0
    %v2848 = vadd.f32 %v2843, %v2846
    %v2849 = vadd.f32 %v2844, %v2846
    %v2850 = vpack.c.bf16 %v2849, %v2848
    %s2851 = scalar_lea.vmem %s12, 16
    %v2852 = vld [vmem:[%s2851] sm:$0xf]
    %v2853 = vld [vmem:[%s2851 + $0x4] sm:$0xf]
    %v2854 = vld [vmem:[%s2851 + $0x8] sm:$0xf]
    %v2855 = vld [vmem:[%s2851 + $0xc] sm:$0xf]
    %v2860 = vunpack.c.l.b16 %v2852
    %v2861 = vunpack.c.l.b16 %v2853
    %v2862 = vunpack.c.l.b16 %v2854
    %v2863 = vunpack.c.l.b16 %v2855
    %v2864 = vpack.c.b16 %v2861, %v2860
    %v2865 = vpack.c.b16 %v2863, %v2862
    %v2869 = vsel %vm227, %v2850, 0
    %2871 = vmatpush.bf16.msra.mxu0 0
    %2872 = vmatpush.bf16.msra.mxu0 0
    %2873 = vmatpush.bf16.msra.mxu0 0
    %2874 = vmatpush.bf16.msra.mxu0 0
    %2875 = vmatpush.bf16.msra.mxu0 0
    %2876 = vmatpush.bf16.msra.mxu0 0
    %2877 = vmatpush.bf16.msra.mxu0 %v2865
    %2878 = vmatpush.bf16.msra.mxu0 %v2864
    %2879 = vmatmul.bf16.gmra.mxu0 %v2869
    %v2880 = vpop.f32.mrf.mxu0
    %v2881 = vadd.f32 0.0, %v2880
    %v2882 = vpop.f32.mrf.mxu0
    %v2883 = vadd.f32 0.0, %v2882
    %2884 = vdwg.mxu0
    %s2885 = scalar_lea.vmem %s13, 16
    %v2886 = vld [vmem:[%s2885] sm:$0xf]
    %v2887 = vld [vmem:[%s2885 + $0x4] sm:$0xf]
    %v2888 = vld [vmem:[%s2885 + $0x8] sm:$0xf]
    %v2889 = vld [vmem:[%s2885 + $0xc] sm:$0xf]
    %v2894 = vunpack.c.l.b16 %v2886
    %v2895 = vunpack.c.l.b16 %v2887
    %v2896 = vunpack.c.l.b16 %v2888
    %v2897 = vunpack.c.l.b16 %v2889
    %v2898 = vpack.c.b16 %v2895, %v2894
    %v2899 = vpack.c.b16 %v2897, %v2896
    %2902 = vmatpush.bf16.msra.mxu0 0
    %2903 = vmatpush.bf16.msra.mxu0 0
    %2904 = vmatpush.bf16.msra.mxu0 0
    %2905 = vmatpush.bf16.msra.mxu0 0
    %2906 = vmatpush.bf16.msra.mxu0 0
    %2907 = vmatpush.bf16.msra.mxu0 0
    %2908 = vmatpush.bf16.msra.mxu0 %v2899
    %2909 = vmatpush.bf16.msra.mxu0 %v2898
    %2910 = vmatmul.bf16.gmra.mxu0 %v2869
    %v2911 = vpop.f32.mrf.mxu0
    %v2912 = vadd.f32 0.0, %v2911
    %v2913 = vpop.f32.mrf.mxu0
    %v2914 = vadd.f32 0.0, %v2913
    %2915 = vdwg.mxu0
    %s2916 = scalar_lea.vmem %s14, 16
    %v2917 = vld [vmem:[%s2916] sm:$0xf]
    %v2918 = vld [vmem:[%s2916 + $0x4] sm:$0xf]
    %v2919 = vld [vmem:[%s2916 + $0x8] sm:$0xf]
    %v2920 = vld [vmem:[%s2916 + $0xc] sm:$0xf]
    %v2925 = vunpack.c.l.b16 %v2917
    %v2926 = vunpack.c.l.b16 %v2918
    %v2927 = vunpack.c.l.b16 %v2919
    %v2928 = vunpack.c.l.b16 %v2920
    %v2929 = vpack.c.b16 %v2926, %v2925
    %v2930 = vpack.c.b16 %v2928, %v2927
    %2933 = vmatpush.bf16.msra.mxu0 0
    %2934 = vmatpush.bf16.msra.mxu0 0
    %2935 = vmatpush.bf16.msra.mxu0 0
    %2936 = vmatpush.bf16.msra.mxu0 0
    %2937 = vmatpush.bf16.msra.mxu0 0
    %2938 = vmatpush.bf16.msra.mxu0 0
    %2939 = vmatpush.bf16.msra.mxu0 %v2930
    %2940 = vmatpush.bf16.msra.mxu0 %v2929
    %2941 = vmatmul.bf16.gmra.mxu0 %v2869
    %v2942 = vpop.f32.mrf.mxu0
    %v2943 = vadd.f32 0.0, %v2942
    %v2944 = vpop.f32.mrf.mxu0
    %v2945 = vadd.f32 0.0, %v2944
    %2946 = vdwg.mxu0
    %v2947 = vpack.c.bf16 %v2881, %v2881
    %v2948 = vpack.c.bf16 %v2883, %v2883
    %v2949 = vpack.c.bf16 %v2912, %v2912
    %v2950 = vpack.c.bf16 %v2914, %v2914
    %v2951 = vpack.c.bf16 %v2943, %v2943
    %v2952 = vpack.c.bf16 %v2945, %v2945
    %v2954 = vsel %vm257, %v2947, 0
    %v2957 = vsel %vm257, %v2949, 0
    %2959 = vmatpush.bf16.xpose.msra.mxu0 0
    %2960 = vmatpush.bf16.xpose.msra.mxu0 0
    %2961 = vmatpush.bf16.xpose.msra.mxu0 0
    %2962 = vmatpush.bf16.xpose.msra.mxu0 0
    %2963 = vmatpush.bf16.xpose.msra.mxu0 0
    %2964 = vmatpush.bf16.xpose.msra.mxu0 0
    %2965 = vmatpush.bf16.xpose.msra.mxu0 0
    %2966 = vmatpush.bf16.xpose.msra.mxu0 %v2957
    %2967 = vmatmul.bf16.gmra.mxu0 %v2954
    %v2968 = vpop.f32.mrf.mxu0
    %v2969 = vadd.f32 0.0, %v2968
    %v2970 = vpop.f32.mrf.mxu0
    %2971 = vdwg.mxu0
    %v2973 = vsel %vm257, %v2948, 0
    %v2976 = vsel %vm257, %v2950, 0
    %2978 = vmatpush.bf16.xpose.msra.mxu0 0
    %2979 = vmatpush.bf16.xpose.msra.mxu0 0
    %2980 = vmatpush.bf16.xpose.msra.mxu0 0
    %2981 = vmatpush.bf16.xpose.msra.mxu0 0
    %2982 = vmatpush.bf16.xpose.msra.mxu0 0
    %2983 = vmatpush.bf16.xpose.msra.mxu0 0
    %2984 = vmatpush.bf16.xpose.msra.mxu0 0
    %2985 = vmatpush.bf16.xpose.msra.mxu0 %v2976
    %2986 = vmatmul.bf16.gmra.mxu0 %v2973
    %v2987 = vpop.f32.mrf.mxu0
    %v2988 = vadd.f32 0.0, %v2987
    %v2989 = vpop.f32.mrf.mxu0
    %2990 = vdwg.mxu0
    %v2991 = vsel %vm349, %v2969, -inf
    %2992 = vmax.xlane.f32.xlu0 %v2991
    %v2993 = vpop.xlane.xlu0 %2992
    %v2994 = vsel %vm349, %v2988, -inf
    %2995 = vmax.xlane.f32.xlu0 %v2994
    %v2996 = vpop.xlane.xlu0 %2995
    %v2997 = vsub.f32 %v2969, %v2993
    %v2998 = vsub.f32 %v2988, %v2996
    %v2999 = vmul.f32 %v2997, 1.442695
    %v3000 = vpow.pop %v2999
    %v3001 = vmul.f32 %v2998, 1.442695
    %v3002 = vpow.pop %v3001
    %v3003 = vsel %vm349, %v3000, 0.0
    %3004 = vadd.xlane.f32.xlu0 %v3003
    %v3005 = vpop.xlane.xlu0 %3004
    %v3006 = vsel %vm349, %v3002, 0.0
    %3007 = vadd.xlane.f32.xlu0 %v3006
    %v3008 = vpop.xlane.xlu0 %3007
    %v3009 = vrcp.pop %v3005
    %v3010 = vrcp.pop %v3008
    %v3011 = vmul.f32 %v3000, %v3009
    %v3012 = vmul.f32 %v3002, %v3010
    %v3013 = vpack.c.bf16 %v3011, %v3011
    %v3014 = vpack.c.bf16 %v3012, %v3012
    %v3016 = vsel %vm349, %v3013, 0
    %v3019 = vsel %vm1233, %v2951, 0
    %3021 = vmatpush.bf16.msra.mxu0 0
    %3022 = vmatpush.bf16.msra.mxu0 0
    %3023 = vmatpush.bf16.msra.mxu0 0
    %3024 = vmatpush.bf16.msra.mxu0 0
    %3025 = vmatpush.bf16.msra.mxu0 0
    %3026 = vmatpush.bf16.msra.mxu0 0
    %3027 = vmatpush.bf16.msra.mxu0 0
    %3028 = vmatpush.bf16.msra.mxu0 %v3019
    %3029 = vmatmul.bf16.gmra.mxu0 %v3016
    %v3030 = vpop.f32.mrf.mxu0
    %v3031 = vadd.f32 0.0, %v3030
    %v3032 = vpop.f32.mrf.mxu0
    %3033 = vdwg.mxu0
    %v3035 = vsel %vm349, %v3014, 0
    %v3038 = vsel %vm1233, %v2952, 0
    %3040 = vmatpush.bf16.msra.mxu0 0
    %3041 = vmatpush.bf16.msra.mxu0 0
    %3042 = vmatpush.bf16.msra.mxu0 0
    %3043 = vmatpush.bf16.msra.mxu0 0
    %3044 = vmatpush.bf16.msra.mxu0 0
    %3045 = vmatpush.bf16.msra.mxu0 0
    %3046 = vmatpush.bf16.msra.mxu0 0
    %3047 = vmatpush.bf16.msra.mxu0 %v3038
    %3048 = vmatmul.bf16.gmra.mxu0 %v3035
    %v3049 = vpop.f32.mrf.mxu0
    %v3050 = vadd.f32 0.0, %v3049
    %v3051 = vpop.f32.mrf.mxu0
    %3052 = vdwg.mxu0
    %v3054 = vunpack.c.l.b16 %v2947
    %v3055 = vpack.c.b16 %v3054, %v3054
    %3056 = vrot.lane.b32.xlu0 %v3055, 112
    %v3057 = vpop.permute.xlu0 %3056
    %v3059 = vunpack.c.l.b16 %v2949
    %v3060 = vpack.c.b16 %v3059, %v3059
    %3061 = vrot.lane.b32.xlu0 %v3060, 112
    %v3062 = vpop.permute.xlu0 %3061
    %v3064 = vsel %vm257, %v3057, 0
    %v3067 = vsel %vm257, %v3062, 0
    %3069 = vmatpush.bf16.xpose.msra.mxu0 0
    %3070 = vmatpush.bf16.xpose.msra.mxu0 0
    %3071 = vmatpush.bf16.xpose.msra.mxu0 0
    %3072 = vmatpush.bf16.xpose.msra.mxu0 0
    %3073 = vmatpush.bf16.xpose.msra.mxu0 0
    %3074 = vmatpush.bf16.xpose.msra.mxu0 0
    %3075 = vmatpush.bf16.xpose.msra.mxu0 0
    %3076 = vmatpush.bf16.xpose.msra.mxu0 %v3067
    %3077 = vmatmul.bf16.gmra.mxu0 %v3064
    %v3078 = vpop.f32.mrf.mxu0
    %v3079 = vadd.f32 0.0, %v3078
    %v3080 = vpop.f32.mrf.mxu0
    %3081 = vdwg.mxu0
    %v3083 = vunpack.c.l.b16 %v2948
    %v3084 = vpack.c.b16 %v3083, %v3083
    %3085 = vrot.lane.b32.xlu0 %v3084, 112
    %v3086 = vpop.permute.xlu0 %3085
    %v3088 = vunpack.c.l.b16 %v2950
    %v3089 = vpack.c.b16 %v3088, %v3088
    %3090 = vrot.lane.b32.xlu0 %v3089, 112
    %v3091 = vpop.permute.xlu0 %3090
    %v3093 = vsel %vm257, %v3086, 0
    %v3096 = vsel %vm257, %v3091, 0
    %3098 = vmatpush.bf16.xpose.msra.mxu0 0
    %3099 = vmatpush.bf16.xpose.msra.mxu0 0
    %3100 = vmatpush.bf16.xpose.msra.mxu0 0
    %3101 = vmatpush.bf16.xpose.msra.mxu0 0
    %3102 = vmatpush.bf16.xpose.msra.mxu0 0
    %3103 = vmatpush.bf16.xpose.msra.mxu0 0
    %3104 = vmatpush.bf16.xpose.msra.mxu0 0
    %3105 = vmatpush.bf16.xpose.msra.mxu0 %v3096
    %3106 = vmatmul.bf16.gmra.mxu0 %v3093
    %v3107 = vpop.f32.mrf.mxu0
    %v3108 = vadd.f32 0.0, %v3107
    %v3109 = vpop.f32.mrf.mxu0
    %3110 = vdwg.mxu0
    %v3111 = vsel %vm349, %v3079, -inf
    %3112 = vmax.xlane.f32.xlu0 %v3111
    %v3113 = vpop.xlane.xlu0 %3112
    %v3114 = vsel %vm349, %v3108, -inf
    %3115 = vmax.xlane.f32.xlu0 %v3114
    %v3116 = vpop.xlane.xlu0 %3115
    %v3117 = vsub.f32 %v3079, %v3113
    %v3118 = vsub.f32 %v3108, %v3116
    %v3119 = vmul.f32 %v3117, 1.442695
    %v3120 = vpow.pop %v3119
    %v3121 = vmul.f32 %v3118, 1.442695
    %v3122 = vpow.pop %v3121
    %v3123 = vsel %vm349, %v3120, 0.0
    %3124 = vadd.xlane.f32.xlu0 %v3123
    %v3125 = vpop.xlane.xlu0 %3124
    %v3126 = vsel %vm349, %v3122, 0.0
    %3127 = vadd.xlane.f32.xlu0 %v3126
    %v3128 = vpop.xlane.xlu0 %3127
    %v3129 = vrcp.pop %v3125
    %v3130 = vrcp.pop %v3128
    %v3131 = vmul.f32 %v3120, %v3129
    %v3132 = vmul.f32 %v3122, %v3130
    %v3133 = vpack.c.bf16 %v3131, %v3131
    %v3134 = vpack.c.bf16 %v3132, %v3132
    %v3136 = vunpack.c.l.b16 %v2951
    %v3137 = vpack.c.b16 %v3136, %v3136
    %3138 = vrot.lane.b32.xlu0 %v3137, 112
    %v3139 = vpop.permute.xlu0 %3138
    %v3141 = vsel %vm349, %v3133, 0
    %v3144 = vsel %vm1233, %v3139, 0
    %3146 = vmatpush.bf16.msra.mxu0 0
    %3147 = vmatpush.bf16.msra.mxu0 0
    %3148 = vmatpush.bf16.msra.mxu0 0
    %3149 = vmatpush.bf16.msra.mxu0 0
    %3150 = vmatpush.bf16.msra.mxu0 0
    %3151 = vmatpush.bf16.msra.mxu0 0
    %3152 = vmatpush.bf16.msra.mxu0 0
    %3153 = vmatpush.bf16.msra.mxu0 %v3144
    %3154 = vmatmul.bf16.gmra.mxu0 %v3141
    %v3155 = vpop.f32.mrf.mxu0
    %v3156 = vadd.f32 0.0, %v3155
    %v3157 = vpop.f32.mrf.mxu0
    %3158 = vdwg.mxu0
    %v3160 = vunpack.c.l.b16 %v2952
    %v3161 = vpack.c.b16 %v3160, %v3160
    %3162 = vrot.lane.b32.xlu0 %v3161, 112
    %v3163 = vpop.permute.xlu0 %3162
    %v3165 = vsel %vm349, %v3134, 0
    %v3168 = vsel %vm1233, %v3163, 0
    %3170 = vmatpush.bf16.msra.mxu0 0
    %3171 = vmatpush.bf16.msra.mxu0 0
    %3172 = vmatpush.bf16.msra.mxu0 0
    %3173 = vmatpush.bf16.msra.mxu0 0
    %3174 = vmatpush.bf16.msra.mxu0 0
    %3175 = vmatpush.bf16.msra.mxu0 0
    %3176 = vmatpush.bf16.msra.mxu0 0
    %3177 = vmatpush.bf16.msra.mxu0 %v3168
    %3178 = vmatmul.bf16.gmra.mxu0 %v3165
    %v3179 = vpop.f32.mrf.mxu0
    %v3180 = vadd.f32 0.0, %v3179
    %v3181 = vpop.f32.mrf.mxu0
    %3182 = vdwg.mxu0
    %3183 = vrot.lane.b32.xlu0 %v3055, 96
    %v3184 = vpop.permute.xlu0 %3183
    %3185 = vrot.lane.b32.xlu0 %v3060, 96
    %v3186 = vpop.permute.xlu0 %3185
    %v3188 = vsel %vm257, %v3184, 0
    %v3191 = vsel %vm257, %v3186, 0
    %3193 = vmatpush.bf16.xpose.msra.mxu0 0
    %3194 = vmatpush.bf16.xpose.msra.mxu0 0
    %3195 = vmatpush.bf16.xpose.msra.mxu0 0
    %3196 = vmatpush.bf16.xpose.msra.mxu0 0
    %3197 = vmatpush.bf16.xpose.msra.mxu0 0
    %3198 = vmatpush.bf16.xpose.msra.mxu0 0
    %3199 = vmatpush.bf16.xpose.msra.mxu0 0
    %3200 = vmatpush.bf16.xpose.msra.mxu0 %v3191
    %3201 = vmatmul.bf16.gmra.mxu0 %v3188
    %v3202 = vpop.f32.mrf.mxu0
    %v3203 = vadd.f32 0.0, %v3202
    %v3204 = vpop.f32.mrf.mxu0
    %3205 = vdwg.mxu0
    %3206 = vrot.lane.b32.xlu0 %v3084, 96
    %v3207 = vpop.permute.xlu0 %3206
    %3208 = vrot.lane.b32.xlu0 %v3089, 96
    %v3209 = vpop.permute.xlu0 %3208
    %v3211 = vsel %vm257, %v3207, 0
    %v3214 = vsel %vm257, %v3209, 0
    %3216 = vmatpush.bf16.xpose.msra.mxu0 0
    %3217 = vmatpush.bf16.xpose.msra.mxu0 0
    %3218 = vmatpush.bf16.xpose.msra.mxu0 0
    %3219 = vmatpush.bf16.xpose.msra.mxu0 0
    %3220 = vmatpush.bf16.xpose.msra.mxu0 0
    %3221 = vmatpush.bf16.xpose.msra.mxu0 0
    %3222 = vmatpush.bf16.xpose.msra.mxu0 0
    %3223 = vmatpush.bf16.xpose.msra.mxu0 %v3214
    %3224 = vmatmul.bf16.gmra.mxu0 %v3211
    %v3225 = vpop.f32.mrf.mxu0
    %v3226 = vadd.f32 0.0, %v3225
    %v3227 = vpop.f32.mrf.mxu0
    %3228 = vdwg.mxu0
    %v3229 = vsel %vm349, %v3203, -inf
    %3230 = vmax.xlane.f32.xlu0 %v3229
    %v3231 = vpop.xlane.xlu0 %3230
    %v3232 = vsel %vm349, %v3226, -inf
    %3233 = vmax.xlane.f32.xlu0 %v3232
    %v3234 = vpop.xlane.xlu0 %3233
    %v3235 = vsub.f32 %v3203, %v3231
    %v3236 = vsub.f32 %v3226, %v3234
    %v3237 = vmul.f32 %v3235, 1.442695
    %v3238 = vpow.pop %v3237
    %v3239 = vmul.f32 %v3236, 1.442695
    %v3240 = vpow.pop %v3239
    %v3241 = vsel %vm349, %v3238, 0.0
    %3242 = vadd.xlane.f32.xlu0 %v3241
    %v3243 = vpop.xlane.xlu0 %3242
    %v3244 = vsel %vm349, %v3240, 0.0
    %3245 = vadd.xlane.f32.xlu0 %v3244
    %v3246 = vpop.xlane.xlu0 %3245
    %v3247 = vrcp.pop %v3243
    %v3248 = vrcp.pop %v3246
    %v3249 = vmul.f32 %v3238, %v3247
    %v3250 = vmul.f32 %v3240, %v3248
    %v3251 = vpack.c.bf16 %v3249, %v3249
    %v3252 = vpack.c.bf16 %v3250, %v3250
    %3253 = vrot.lane.b32.xlu0 %v3137, 96
    %v3254 = vpop.permute.xlu0 %3253
    %v3256 = vsel %vm349, %v3251, 0
    %v3259 = vsel %vm1233, %v3254, 0
    %3261 = vmatpush.bf16.msra.mxu0 0
    %3262 = vmatpush.bf16.msra.mxu0 0
    %3263 = vmatpush.bf16.msra.mxu0 0
    %3264 = vmatpush.bf16.msra.mxu0 0
    %3265 = vmatpush.bf16.msra.mxu0 0
    %3266 = vmatpush.bf16.msra.mxu0 0
    %3267 = vmatpush.bf16.msra.mxu0 0
    %3268 = vmatpush.bf16.msra.mxu0 %v3259
    %3269 = vmatmul.bf16.gmra.mxu0 %v3256
    %v3270 = vpop.f32.mrf.mxu0
    %v3271 = vadd.f32 0.0, %v3270
    %v3272 = vpop.f32.mrf.mxu0
    %3273 = vdwg.mxu0
    %3274 = vrot.lane.b32.xlu0 %v3161, 96
    %v3275 = vpop.permute.xlu0 %3274
    %v3277 = vsel %vm349, %v3252, 0
    %v3280 = vsel %vm1233, %v3275, 0
    %3282 = vmatpush.bf16.msra.mxu0 0
    %3283 = vmatpush.bf16.msra.mxu0 0
    %3284 = vmatpush.bf16.msra.mxu0 0
    %3285 = vmatpush.bf16.msra.mxu0 0
    %3286 = vmatpush.bf16.msra.mxu0 0
    %3287 = vmatpush.bf16.msra.mxu0 0
    %3288 = vmatpush.bf16.msra.mxu0 0
    %3289 = vmatpush.bf16.msra.mxu0 %v3280
    %3290 = vmatmul.bf16.gmra.mxu0 %v3277
    %v3291 = vpop.f32.mrf.mxu0
    %v3292 = vadd.f32 0.0, %v3291
    %v3293 = vpop.f32.mrf.mxu0
    %3294 = vdwg.mxu0
    %3295 = vrot.lane.b32.xlu0 %v3055, 80
    %v3296 = vpop.permute.xlu0 %3295
    %3297 = vrot.lane.b32.xlu0 %v3060, 80
    %v3298 = vpop.permute.xlu0 %3297
    %v3300 = vsel %vm257, %v3296, 0
    %v3303 = vsel %vm257, %v3298, 0
    %3305 = vmatpush.bf16.xpose.msra.mxu0 0
    %3306 = vmatpush.bf16.xpose.msra.mxu0 0
    %3307 = vmatpush.bf16.xpose.msra.mxu0 0
    %3308 = vmatpush.bf16.xpose.msra.mxu0 0
    %3309 = vmatpush.bf16.xpose.msra.mxu0 0
    %3310 = vmatpush.bf16.xpose.msra.mxu0 0
    %3311 = vmatpush.bf16.xpose.msra.mxu0 0
    %3312 = vmatpush.bf16.xpose.msra.mxu0 %v3303
    %3313 = vmatmul.bf16.gmra.mxu0 %v3300
    %v3314 = vpop.f32.mrf.mxu0
    %v3315 = vadd.f32 0.0, %v3314
    %v3316 = vpop.f32.mrf.mxu0
    %3317 = vdwg.mxu0
    %3318 = vrot.lane.b32.xlu0 %v3084, 80
    %v3319 = vpop.permute.xlu0 %3318
    %3320 = vrot.lane.b32.xlu0 %v3089, 80
    %v3321 = vpop.permute.xlu0 %3320
    %v3323 = vsel %vm257, %v3319, 0
    %v3326 = vsel %vm257, %v3321, 0
    %3328 = vmatpush.bf16.xpose.msra.mxu0 0
    %3329 = vmatpush.bf16.xpose.msra.mxu0 0
    %3330 = vmatpush.bf16.xpose.msra.mxu0 0
    %3331 = vmatpush.bf16.xpose.msra.mxu0 0
    %3332 = vmatpush.bf16.xpose.msra.mxu0 0
    %3333 = vmatpush.bf16.xpose.msra.mxu0 0
    %3334 = vmatpush.bf16.xpose.msra.mxu0 0
    %3335 = vmatpush.bf16.xpose.msra.mxu0 %v3326
    %3336 = vmatmul.bf16.gmra.mxu0 %v3323
    %v3337 = vpop.f32.mrf.mxu0
    %v3338 = vadd.f32 0.0, %v3337
    %v3339 = vpop.f32.mrf.mxu0
    %3340 = vdwg.mxu0
    %v3341 = vsel %vm349, %v3315, -inf
    %3342 = vmax.xlane.f32.xlu0 %v3341
    %v3343 = vpop.xlane.xlu0 %3342
    %v3344 = vsel %vm349, %v3338, -inf
    %3345 = vmax.xlane.f32.xlu0 %v3344
    %v3346 = vpop.xlane.xlu0 %3345
    %v3347 = vsub.f32 %v3315, %v3343
    %v3348 = vsub.f32 %v3338, %v3346
    %v3349 = vmul.f32 %v3347, 1.442695
    %v3350 = vpow.pop %v3349
    %v3351 = vmul.f32 %v3348, 1.442695
    %v3352 = vpow.pop %v3351
    %v3353 = vsel %vm349, %v3350, 0.0
    %3354 = vadd.xlane.f32.xlu0 %v3353
    %v3355 = vpop.xlane.xlu0 %3354
    %v3356 = vsel %vm349, %v3352, 0.0
    %3357 = vadd.xlane.f32.xlu0 %v3356
    %v3358 = vpop.xlane.xlu0 %3357
    %v3359 = vrcp.pop %v3355
    %v3360 = vrcp.pop %v3358
    %v3361 = vmul.f32 %v3350, %v3359
    %v3362 = vmul.f32 %v3352, %v3360
    %v3363 = vpack.c.bf16 %v3361, %v3361
    %v3364 = vpack.c.bf16 %v3362, %v3362
    %3365 = vrot.lane.b32.xlu0 %v3137, 80
    %v3366 = vpop.permute.xlu0 %3365
    %v3368 = vsel %vm349, %v3363, 0
    %v3371 = vsel %vm1233, %v3366, 0
    %3373 = vmatpush.bf16.msra.mxu0 0
    %3374 = vmatpush.bf16.msra.mxu0 0
    %3375 = vmatpush.bf16.msra.mxu0 0
    %3376 = vmatpush.bf16.msra.mxu0 0
    %3377 = vmatpush.bf16.msra.mxu0 0
    %3378 = vmatpush.bf16.msra.mxu0 0
    %3379 = vmatpush.bf16.msra.mxu0 0
    %3380 = vmatpush.bf16.msra.mxu0 %v3371
    %3381 = vmatmul.bf16.gmra.mxu0 %v3368
    %v3382 = vpop.f32.mrf.mxu0
    %v3383 = vadd.f32 0.0, %v3382
    %v3384 = vpop.f32.mrf.mxu0
    %3385 = vdwg.mxu0
    %3386 = vrot.lane.b32.xlu0 %v3161, 80
    %v3387 = vpop.permute.xlu0 %3386
    %v3389 = vsel %vm349, %v3364, 0
    %v3392 = vsel %vm1233, %v3387, 0
    %3394 = vmatpush.bf16.msra.mxu0 0
    %3395 = vmatpush.bf16.msra.mxu0 0
    %3396 = vmatpush.bf16.msra.mxu0 0
    %3397 = vmatpush.bf16.msra.mxu0 0
    %3398 = vmatpush.bf16.msra.mxu0 0
    %3399 = vmatpush.bf16.msra.mxu0 0
    %3400 = vmatpush.bf16.msra.mxu0 0
    %3401 = vmatpush.bf16.msra.mxu0 %v3392
    %3402 = vmatmul.bf16.gmra.mxu0 %v3389
    %v3403 = vpop.f32.mrf.mxu0
    %v3404 = vadd.f32 0.0, %v3403
    %v3405 = vpop.f32.mrf.mxu0
    %3406 = vdwg.mxu0
    %3409 = vrot.lane.b32.xlu0 %v3156, 16
    %v3410 = vpop.permute.xlu0 %3409
    %3411 = vrot.lane.b32.xlu0 %v3180, 16
    %v3412 = vpop.permute.xlu0 %3411
    %3417 = vrot.lane.b32.xlu0 %v3271, 32
    %v3418 = vpop.permute.xlu0 %3417
    %3419 = vrot.lane.b32.xlu0 %v3292, 32
    %v3420 = vpop.permute.xlu0 %3419
    %3425 = vrot.lane.b32.xlu0 %v3383, 48
    %v3426 = vpop.permute.xlu0 %3425
    %3427 = vrot.lane.b32.xlu0 %v3404, 48
    %v3428 = vpop.permute.xlu0 %3427
    %v3431 = vsel %vm257, %v3031, %v3410
    %v3432 = vsel %vm257, %v3050, %v3412
    %v3433 = vsel %vm227, %v3431, %v3418
    %v3434 = vsel %vm227, %v3432, %v3420
    %v3435 = vsel %vm1651, %v3433, %v3426
    %v3436 = vsel %vm1651, %v3434, %v3428
    %v3437 = vpack.c.bf16 %v3436, %v3435
    %s3438 = scalar_lea.vmem %s15, 32
    %v3439 = vld [vmem:[%s3438] sm:$0xf]
    %v3440 = vld [vmem:[%s3438 + $0x4] sm:$0xf]
    %v3441 = vld [vmem:[%s3438 + $0x8] sm:$0xf]
    %v3442 = vld [vmem:[%s3438 + $0xc] sm:$0xf]
    %v3443 = vld [vmem:[%s3438 + $0x10] sm:$0xf]
    %v3444 = vld [vmem:[%s3438 + $0x14] sm:$0xf]
    %v3445 = vld [vmem:[%s3438 + $0x18] sm:$0xf]
    %v3446 = vld [vmem:[%s3438 + $0x1c] sm:$0xf]
    %v3455 = vunpack.c.l.b16 %v3439
    %v3456 = vunpack.c.l.b16 %v3440
    %v3457 = vunpack.c.l.b16 %v3441
    %v3458 = vunpack.c.l.b16 %v3442
    %v3459 = vunpack.c.l.b16 %v3443
    %v3460 = vunpack.c.l.b16 %v3444
    %v3461 = vunpack.c.l.b16 %v3445
    %v3462 = vunpack.c.l.b16 %v3446
    %v3463 = vpack.c.b16 %v3456, %v3455
    %v3464 = vpack.c.b16 %v3458, %v3457
    %v3465 = vpack.c.b16 %v3460, %v3459
    %v3466 = vpack.c.b16 %v3462, %v3461
    %v3472 = vsel %vm1687, %v3437, 0
    %3474 = vmatpush.bf16.msra.mxu0 0
    %3475 = vmatpush.bf16.msra.mxu0 0
    %3476 = vmatpush.bf16.msra.mxu0 0
    %3477 = vmatpush.bf16.msra.mxu0 0
    %3478 = vmatpush.bf16.msra.mxu0 %v3466
    %3479 = vmatpush.bf16.msra.mxu0 %v3465
    %3480 = vmatpush.bf16.msra.mxu0 %v3464
    %3481 = vmatpush.bf16.msra.mxu0 %v3463
    %3482 = vmatmul.bf16.gmra.mxu0 %v3472
    %v3483 = vpop.f32.mrf.mxu0
    %v3484 = vadd.f32 0.0, %v3483
    %v3485 = vpop.f32.mrf.mxu0
    %v3486 = vadd.f32 0.0, %v3485
    %3487 = vdwg.mxu0
    %v3488 = vadd.f32 %v2790, %v3484
    %v3489 = vadd.f32 %v2791, %v3486
    %s3490 = scalar_lea.vmem [#allocation10], 1
    %v3491 = vld [vmem:[%s3490] sm:$0x1]
    %s3492 = scalar_lea.vmem [#allocation11], 1
    %v3493 = vld [vmem:[%s3492] sm:$0x1]
    %v3494 = vsel %vm227, %v3488, 0.0
    %3495 = vadd.xlane.f32.xlu0 %v3494
    %v3496 = vpop.xlane.xlu0 %3495
    %v3497 = vsel %vm227, %v3489, 0.0
    %3498 = vadd.xlane.f32.xlu0 %v3497
    %v3499 = vpop.xlane.xlu0 %3498
    %v3500 = vmul.f32 %v3496, %v1019
    %v3501 = vmul.f32 %v3499, %v1019
    %v3502 = vsub.f32 %v3488, %v3500
    %v3503 = vsub.f32 %v3489, %v3501
    %v3504 = vmul.f32 %v3502, %v3502
    %v3505 = vmul.f32 %v3503, %v3503
    %v3506 = vsel %vm227, %v3504, 0.0
    %3507 = vadd.xlane.f32.xlu0 %v3506
    %v3508 = vpop.xlane.xlu0 %3507
    %v3509 = vsel %vm227, %v3505, 0.0
    %3510 = vadd.xlane.f32.xlu0 %v3509
    %v3511 = vpop.xlane.xlu0 %3510
    %v3512 = vmul.f32 %v3508, %v1019
    %v3513 = vmul.f32 %v3511, %v1019
    %v3514 = vadd.f32 %v3512, 1e-05
    %v3515 = vadd.f32 %v3513, 1e-05
    %v3516 = vrsqrt.pop %v3514
    %v3517 = vmul.f32 %v3516, %v3514
    %v3518 = vmul.f32 %v3517, %v3516
    %v3519 = vmul.f32 0.5, %v3518
    %v3520 = vsub.f32 1.5, %v3519
    %v3521 = vmul.f32 %v3516, %v3520
    %vm3522 = vweird.f32 %v3514
    %vm3523 = vweird.f32 %v3516
    %vm3524 = vmor %vm3522, %vm3523
    %v3525 = vsel %vm3524, %v3516, %v3521
    %v3526 = vrsqrt.pop %v3515
    %v3527 = vmul.f32 %v3526, %v3515
    %v3528 = vmul.f32 %v3527, %v3526
    %v3529 = vmul.f32 0.5, %v3528
    %v3530 = vsub.f32 1.5, %v3529
    %v3531 = vmul.f32 %v3526, %v3530
    %vm3532 = vweird.f32 %v3515
    %vm3533 = vweird.f32 %v3526
    %vm3534 = vmor %vm3532, %vm3533
    %v3535 = vsel %vm3534, %v3526, %v3531
    %v3536 = vmul.f32 %v3502, %v3525
    %v3537 = vmul.f32 %v3503, %v3535
    %v3539 = vperm.slane %v3491, 0
    %v3541 = vmul.f32 %v3536, %v3539
    %v3542 = vmul.f32 %v3537, %v3539
    %v3544 = vperm.slane %v3493, 0
    %v3546 = vadd.f32 %v3541, %v3544
    %v3547 = vadd.f32 %v3542, %v3544
    %v3548 = vpack.c.bf16 %v3547, %v3546
    %s3549 = scalar_lea.vmem %s18, 32
    %v3550 = vld [vmem:[%s3549] sm:$0xff]
    %v3551 = vld [vmem:[%s3549 + $0x8] sm:$0xff]
    %v3552 = vld [vmem:[%s3549 + $0x10] sm:$0xff]
    %v3553 = vld [vmem:[%s3549 + $0x18] sm:$0xff]
    %s3554 = scalar_lea.vmem %s19, 2
    %v3555 = vld [vmem:[%s3554] sm:$0x3]
    %v3557 = vperm.slane %v3555, 0
    %v3558 = vperm.slane %v3555, 1
    %v3565 = vunpack.c.l.b16 %v3550
    %v3566 = vunpack.c.h.b16 %v3550
    %v3567 = vunpack.c.l.b16 %v3551
    %v3568 = vunpack.c.h.b16 %v3551
    %v3569 = vunpack.c.l.b16 %v3552
    %v3570 = vunpack.c.h.b16 %v3552
    %v3571 = vunpack.c.l.b16 %v3553
    %v3572 = vunpack.c.h.b16 %v3553
    %v3573 = vpack.c.b16 %v3567, %v3565
    %v3574 = vpack.c.b16 %v3568, %v3566
    %v3575 = vpack.c.b16 %v3571, %v3569
    %v3576 = vpack.c.b16 %v3572, %v3570
    %v3582 = vsel %vm227, %v3548, 0
    %3584 = vmatpush.bf16.msra.mxu0 0
    %3585 = vmatpush.bf16.msra.mxu0 0
    %3586 = vmatpush.bf16.msra.mxu0 0
    %3587 = vmatpush.bf16.msra.mxu0 0
    %3588 = vmatpush.bf16.msra.mxu0 0
    %3589 = vmatpush.bf16.msra.mxu0 0
    %3590 = vmatpush.bf16.msra.mxu0 %v3575
    %3591 = vmatpush.bf16.msra.mxu0 %v3573
    %3592 = vmatmul.bf16.gmra.mxu0 %v3582
    %v3593 = vpop.f32.mrf.mxu0
    %v3594 = vadd.f32 %v3557, %v3593
    %v3595 = vpop.f32.mrf.mxu0
    %v3596 = vadd.f32 %v3557, %v3595
    %3597 = vdwg.mxu0
    %3598 = vmatpush.bf16.msra.mxu0 0
    %3599 = vmatpush.bf16.msra.mxu0 0
    %3600 = vmatpush.bf16.msra.mxu0 0
    %3601 = vmatpush.bf16.msra.mxu0 0
    %3602 = vmatpush.bf16.msra.mxu0 0
    %3603 = vmatpush.bf16.msra.mxu0 0
    %3604 = vmatpush.bf16.msra.mxu0 %v3576
    %3605 = vmatpush.bf16.msra.mxu0 %v3574
    %3606 = vmatmul.bf16.gmra.mxu0 %v3582
    %v3607 = vpop.f32.mrf.mxu0
    %v3608 = vadd.f32 %v3558, %v3607
    %v3609 = vpop.f32.mrf.mxu0
    %v3610 = vadd.f32 %v3558, %v3609
    %3611 = vdwg.mxu0
    %v3612 = vmul.f32 %v3608, 0.5
    %v3613 = vmul.f32 %v3610, 0.5
    %v3614 = vmul.f32 %v3608, 0.70710677
    %v3615 = vmul.f32 %v3610, 0.70710677
    %v3616 = vand.u32 2147483647, %v3614
    %v3617 = vand.u32 2147483647, %v3615
    %v3618 = vmul.f32 %v3616, 0.3275911
    %v3619 = vmul.f32 %v3617, 0.3275911
    %v3620 = vadd.f32 %v3618, 1.0
    %v3621 = vadd.f32 %v3619, 1.0
    %v3622 = vrcp.pop %v3620
    %v3623 = vmul.f32 %v3620, %v3622
    %v3624 = vsub.f32 1.0, %v3623
    %v3625 = vmul.f32 %v3622, %v3624
    %v3626 = vadd.f32 %v3622, %v3625
    %vm3627 = vweird.f32 %v3620
    %vm3628 = vweird.f32 %v3622
    %vm3629 = vmor %vm3627, %vm3628
    %v3630 = vsel %vm3629, %v3622, %v3626
    %v3631 = vand.u32 2147483647, %v3620
    %vm3632 = vcmp.eq.f32.partialorder %v3631, 8.507059e+37
    %v3633 = vand.u32 %v3620, 2147483648
    %v3634 = vor.u32 1.1754944e-38, %v3633
    %v3635 = vsel %vm3632, %v3634, %v3630
    %v3636 = vmul.f32 1.0, %v3635
    %v3637 = vrcp.pop %v3621
    %v3638 = vmul.f32 %v3621, %v3637
    %v3639 = vsub.f32 1.0, %v3638
    %v3640 = vmul.f32 %v3637, %v3639
    %v3641 = vadd.f32 %v3637, %v3640
    %vm3642 = vweird.f32 %v3621
    %vm3643 = vweird.f32 %v3637
    %vm3644 = vmor %vm3642, %vm3643
    %v3645 = vsel %vm3644, %v3637, %v3641
    %v3646 = vand.u32 2147483647, %v3621
    %vm3647 = vcmp.eq.f32.partialorder %v3646, 8.507059e+37
    %v3648 = vand.u32 %v3621, 2147483648
    %v3649 = vor.u32 1.1754944e-38, %v3648
    %v3650 = vsel %vm3647, %v3649, %v3645
    %v3651 = vmul.f32 1.0, %v3650
    %v3652 = vmul.f32 %v3636, 1.0614054
    %v3653 = vmul.f32 %v3651, 1.0614054
    %v3654 = vsub.f32 %v3652, 1.4531521
    %v3655 = vsub.f32 %v3653, 1.4531521
    %v3656 = vmul.f32 %v3654, %v3636
    %v3657 = vmul.f32 %v3655, %v3651
    %v3658 = vadd.f32 %v3656, 1.4214138
    %v3659 = vadd.f32 %v3657, 1.4214138
    %v3660 = vmul.f32 %v3658, %v3636
    %v3661 = vmul.f32 %v3659, %v3651
    %v3662 = vsub.f32 %v3660, 0.28449672
    %v3663 = vsub.f32 %v3661, 0.28449672
    %v3664 = vmul.f32 %v3662, %v3636
    %v3665 = vmul.f32 %v3663, %v3651
    %v3666 = vadd.f32 %v3664, 0.2548296
    %v3667 = vadd.f32 %v3665, 0.2548296
    %v3668 = vmul.f32 %v3666, %v3636
    %v3669 = vmul.f32 %v3667, %v3651
    %v3670 = vsub.f32 0.0, %v3616
    %v3671 = vsub.f32 0.0, %v3617
    %v3672 = vmul.f32 %v3670, %v3616
    %v3673 = vmul.f32 %v3671, %v3617
    %v3674 = vmul.f32 %v3672, 1.442695
    %v3675 = vpow.pop %v3674
    %v3676 = vmul.f32 %v3673, 1.442695
    %v3677 = vpow.pop %v3676
    %v3678 = vmul.f32 %v3668, %v3675
    %v3679 = vmul.f32 %v3669, %v3677
    %v3680 = vsub.f32 1.0, %v3678
    %v3681 = vsub.f32 1.0, %v3679
    %vm3682 = vcmp.ge.f32.partialorder %v3614, 0.0
    %vm3683 = vcmp.ge.f32.partialorder %v3615, 0.0
    %v3684 = vsub.f32 0.0, %v3680
    %v3685 = vsub.f32 0.0, %v3681
    %v3686 = vsel %vm3682, %v3680, %v3684
    %v3687 = vsel %vm3683, %v3681, %v3685
    %v3688 = vadd.f32 %v3686, 1.0
    %v3689 = vadd.f32 %v3687, 1.0
    %v3690 = vmul.f32 %v3612, %v3688
    %v3691 = vmul.f32 %v3613, %v3689
    %v3692 = vmul.f32 %v3594, %v3690
    %v3693 = vmul.f32 %v3596, %v3691
    %v3694 = vpack.c.bf16 %v3693, %v3692
    %s3695 = scalar_lea.vmem %s20, 64
    %v3696 = vld [vmem:[%s3695] sm:$0xf]
    %v3697 = vld [vmem:[%s3695 + $0x4] sm:$0xf]
    %v3698 = vld [vmem:[%s3695 + $0x8] sm:$0xf]
    %v3699 = vld [vmem:[%s3695 + $0xc] sm:$0xf]
    %v3700 = vld [vmem:[%s3695 + $0x10] sm:$0xf]
    %v3701 = vld [vmem:[%s3695 + $0x14] sm:$0xf]
    %v3702 = vld [vmem:[%s3695 + $0x18] sm:$0xf]
    %v3703 = vld [vmem:[%s3695 + $0x1c] sm:$0xf]
    %v3704 = vld [vmem:[%s3695 + $0x20] sm:$0xf]
    %v3705 = vld [vmem:[%s3695 + $0x24] sm:$0xf]
    %v3706 = vld [vmem:[%s3695 + $0x28] sm:$0xf]
    %v3707 = vld [vmem:[%s3695 + $0x2c] sm:$0xf]
    %v3708 = vld [vmem:[%s3695 + $0x30] sm:$0xf]
    %v3709 = vld [vmem:[%s3695 + $0x34] sm:$0xf]
    %v3710 = vld [vmem:[%s3695 + $0x38] sm:$0xf]
    %v3711 = vld [vmem:[%s3695 + $0x3c] sm:$0xf]
    %v3728 = vunpack.c.l.b16 %v3696
    %v3729 = vunpack.c.l.b16 %v3697
    %v3730 = vunpack.c.l.b16 %v3698
    %v3731 = vunpack.c.l.b16 %v3699
    %v3732 = vunpack.c.l.b16 %v3700
    %v3733 = vunpack.c.l.b16 %v3701
    %v3734 = vunpack.c.l.b16 %v3702
    %v3735 = vunpack.c.l.b16 %v3703
    %v3736 = vunpack.c.l.b16 %v3704
    %v3737 = vunpack.c.l.b16 %v3705
    %v3738 = vunpack.c.l.b16 %v3706
    %v3739 = vunpack.c.l.b16 %v3707
    %v3740 = vunpack.c.l.b16 %v3708
    %v3741 = vunpack.c.l.b16 %v3709
    %v3742 = vunpack.c.l.b16 %v3710
    %v3743 = vunpack.c.l.b16 %v3711
    %v3744 = vpack.c.b16 %v3729, %v3728
    %v3745 = vpack.c.b16 %v3731, %v3730
    %v3746 = vpack.c.b16 %v3733, %v3732
    %v3747 = vpack.c.b16 %v3735, %v3734
    %v3748 = vpack.c.b16 %v3737, %v3736
    %v3749 = vpack.c.b16 %v3739, %v3738
    %v3750 = vpack.c.b16 %v3741, %v3740
    %v3751 = vpack.c.b16 %v3743, %v3742
    %3760 = vmatpush.bf16.msra.mxu0 %v3751
    %3761 = vmatpush.bf16.msra.mxu0 %v3750
    %3762 = vmatpush.bf16.msra.mxu0 %v3749
    %3763 = vmatpush.bf16.msra.mxu0 %v3748
    %3764 = vmatpush.bf16.msra.mxu0 %v3747
    %3765 = vmatpush.bf16.msra.mxu0 %v3746
    %3766 = vmatpush.bf16.msra.mxu0 %v3745
    %3767 = vmatpush.bf16.msra.mxu0 %v3744
    %3768 = vmatmul.bf16.gmra.mxu0 %v3694
    %v3769 = vpop.f32.mrf.mxu0
    %v3770 = vadd.f32 0.0, %v3769
    %v3771 = vpop.f32.mrf.mxu0
    %v3772 = vadd.f32 0.0, %v3771
    %3773 = vdwg.mxu0
    %v3774 = vadd.f32 %v3488, %v3770
    %v3775 = vadd.f32 %v3489, %v3772
    %s3776 = scalar_lea.vmem %s21, 1
    %v3777 = vld [vmem:[%s3776] sm:$0x1]
    %v3779 = vperm.slane %v3777, 0
    %v3781 = vadd.f32 %v3774, %v3779
    %v3782 = vadd.f32 %v3775, %v3779
    %v3783 = vld [vmem:[%s22] sm:$0x1]
    %v3784 = vld [vmem:[%s23] sm:$0x1]
    %v3787 = vrot.slane %v3782, 7
    %vm3788 = vcmask 1041409
    %v3789 = vsel %vm3788, %v3787, %v3781
    %vm3791 = vcmask 254976
    %v3792 = vsel %vm3791, %v3789, 0.0
    %3793 = vadd.xlane.f32.xlu0 %v3792
    %v3794 = vpop.xlane.xlu0 %3793
    %v3795 = vmul.f32 %v3794, %v1019
    %v3797 = vrot.slane %v3795, 1
    %v3800 = vsub.f32 %v3781, %v3795
    %v3801 = vsub.f32 %v3782, %v3797
    %v3802 = vmul.f32 %v3800, %v3800
    %v3803 = vmul.f32 %v3801, %v3801
    %v3806 = vrot.slane %v3803, 7
    %v3807 = vsel %vm3788, %v3806, %v3802
    %v3809 = vsel %vm3791, %v3807, 0.0
    %3810 = vadd.xlane.f32.xlu0 %v3809
    %v3811 = vpop.xlane.xlu0 %3810
    %v3812 = vmul.f32 %v3811, %v1019
    %v3813 = vadd.f32 %v3812, 1e-05
    %v3814 = vrsqrt.pop %v3813
    %v3815 = vmul.f32 %v3814, %v3813
    %v3816 = vmul.f32 %v3815, %v3814
    %v3817 = vmul.f32 0.5, %v3816
    %v3818 = vsub.f32 1.5, %v3817
    %v3819 = vmul.f32 %v3814, %v3818
    %vm3820 = vweird.f32 %v3813
    %vm3821 = vweird.f32 %v3814
    %vm3822 = vmor %vm3820, %vm3821
    %v3823 = vsel %vm3822, %v3814, %v3819
    %v3825 = vrot.slane %v3823, 1
    %v3828 = vmul.f32 %v3800, %v3823
    %v3829 = vmul.f32 %v3801, %v3825
    %v3831 = vperm.slane %v3783, 0
    %v3833 = vmul.f32 %v3828, %v3831
    %v3834 = vmul.f32 %v3829, %v3831
    %v3836 = vperm.slane %v3784, 0
    %v3838 = vadd.f32 %v3833, %v3836
    %v3839 = vadd.f32 %v3834, %v3836
    %v3840 = vmax.f32 %v3838, 0.0
    %v3841 = vmax.f32 %v3839, 0.0
    %v3842 = vpack.c.bf16 %v3840, %v3840
    %v3843 = vpack.c.bf16 %v3841, %v3841
    %v3844 = vld [vmem:[%s24] sm:$0xf]
    %v3845 = vld [vmem:[%s24 + $0x4] sm:$0xf]
    %v3846 = vld [vmem:[%s24 + $0x8] sm:$0xf]
    %v3847 = vld [vmem:[%s24 + $0xc] sm:$0xf]
    %v3848 = vld [vmem:[#allocation2] sm:$0x1]
    %v3850 = vperm.slane %v3848, 0
    %v3854 = vunpack.c.l.b16 %v3842
    %v3855 = vunpack.c.l.b16 %v3843
    %v3856 = vrot.slane %v3855, 7
    %v3857 = vsel %vm3788, %v3856, %v3854
    %v3858 = vpack.c.b16 %v3857, %v3857
    %v3863 = vunpack.c.l.b16 %v3844
    %v3864 = vunpack.c.l.b16 %v3845
    %v3865 = vunpack.c.l.b16 %v3846
    %v3866 = vunpack.c.l.b16 %v3847
    %v3867 = vpack.c.b16 %v3864, %v3863
    %v3868 = vpack.c.b16 %v3866, %v3865
    %v3872 = vsel %vm227, %v3858, 0
    %3874 = vmatpush.bf16.msra.mxu0 0
    %3875 = vmatpush.bf16.msra.mxu0 0
    %3876 = vmatpush.bf16.msra.mxu0 0
    %3877 = vmatpush.bf16.msra.mxu0 0
    %3878 = vmatpush.bf16.msra.mxu0 0
    %3879 = vmatpush.bf16.msra.mxu0 0
    %3880 = vmatpush.bf16.msra.mxu0 %v3868
    %3881 = vmatpush.bf16.msra.mxu0 %v3867
    %3882 = vmatmul.bf16.gmra.mxu0 %v3872
    %v3883 = vpop.f32.mrf.mxu0
    %v3884 = vadd.f32 %v3850, %v3883
    %v3885 = vpop.f32.mrf.mxu0
    %3886 = vdwg.mxu0
    %v3888 = vrot.slane %v3884, 1
    %vm3890 = vcmask 0
    %3891 = vst.msk [vmem:[%s26] sm:$0x1] %vm3890, %v3884
    %3892 = vst.msk [vmem:[%s26 + $0x1] sm:$0x1] %vm3890, %v3888
    // Predicated region
    $region130: #{tpu_custom_call.1} parent=1 // pred_check
      _
    $region131: #{tpu_custom_call.1} parent=1 // pred_check_branch
      %3894 = sbr.rel (0) target = $region133
    $region132: #{tpu_custom_call.1} parent=1 // pred_region
      _
    $region133: #{tpu_custom_call.1} parent=1 // pred_fallthru
      _
    // Predicated region
    $region134: #{tpu_custom_call.1} parent=1 // pred_check
      _
    $region135: #{tpu_custom_call.1} parent=1 // pred_check_branch
      %3896 = sbr.rel (0) target = $region137
    $region136: #{tpu_custom_call.1} parent=1 // pred_region
      _
    $region137: #{tpu_custom_call.1} parent=1 // pred_fallthru
      _
    %3897 = vsyncpa [#allocation4], 1
    %3898 = vsyncpa [#allocation6], 1
    %3899 = vsyncpa [#allocation9], 1
    %3900 = vsyncpa [#allocation12], 1

</llo_original>
